<compile_context>
chip_gen: v5e
topology: v5e:2x2
jax: 0.10.0
libtpu: 0.0.40
codegen_flags: <defaults>
</compile_context>

<pallas_src>
import jax
import jax.numpy as jnp
from jax import lax
from jax.experimental import pallas as pl
from jax.experimental.pallas import tpu as pltpu

_NEG_SLOPE = 0.01   # F.leaky_relu default negative_slope
_BN_EPS = 1e-4      # BatchNorm2d eps


# --------------------------------------------------------------------------
# Weight / constant preparation (runs once, outside jit).
# --------------------------------------------------------------------------

def _band(ksize, width, pad):
    # T[q, m, w] = 1.0 where m == w + q - pad  (column zero-padding folded in:
    # out-of-range taps simply have no row m and therefore weight 0).
    q = lax.broadcasted_iota(jnp.int32, (ksize, width, width), 0)
    m = lax.broadcasted_iota(jnp.int32, (ksize, width, width), 1)
    w = lax.broadcasted_iota(jnp.int32, (ksize, width, width), 2)
    return (m == w + q - pad).astype(jnp.float32)


def prepare_params(w_conv1, w_conv2, w_fc):
    """Fold conv column padding into banded bf16 matmul weights, permute fc1,
    and precompute the pooling / BatchNorm selection constants.

    w_conv1: (8, 1, 5, 5), w_conv2: (4, 8, 5, 5), w_fc: (32, 1024) (torch layout).
    """
    f32, bf16 = jnp.float32, jnp.bfloat16

    # conv1: fused over the 5 kh taps -> (5*64, 512).
    # Output lane layout: par*256 + o*32 + j  with output col w = 2*j + par,
    # so the column maxpool is max(lanes[:256], lanes[256:]).
    t1 = _band(5, 64, 2)                                      # (5, 64, 64) [q, m, w]
    b1 = jnp.einsum('opq,qmw->pmow', w_conv1[:, 0], t1)       # (5, 64, 8, 64)
    b1 = b1.reshape(5, 64, 8, 32, 2)                          # w -> (j, par)
    b1 = b1.transpose(0, 1, 4, 2, 3)                          # (p, m, par, o, j)
    b1 = b1.reshape(5 * 64, 512).astype(bf16)

    # conv2: per-tap (5, 256, 128); input lanes c*32+m, output lanes par*64+o*16+j.
    t2 = _band(5, 32, 2)                                      # (5, 32, 32)
    b2 = jnp.einsum('ocpq,qmw->pcmow', w_conv2, t2)           # (5, 8, 32, 4, 32)
    b2 = b2.reshape(5, 8, 32, 4, 16, 2)                       # w -> (j, par)
    b2 = b2.transpose(0, 1, 2, 5, 3, 4)                       # (p, c, m, par, o, j)
    b2 = b2.reshape(5, 256, 128).astype(bf16)

    # fc1: wfc3[i, o*16 + j, k] = w_fc[k, o*256 + i*16 + j]  (torch flatten order).
    zd = w_fc.shape[0]
    wfc3 = (w_fc.reshape(zd, 4, 16, 16)
            .transpose(2, 1, 3, 0)                            # (i, o, j, k)
            .reshape(16, 64, zd).astype(bf16))

    # Stage-1 row-pool selector: out rows [0,32) pick even input rows, [32,64) odd.
    r = lax.broadcasted_iota(jnp.int32, (64, 64), 0)
    h = lax.broadcasted_iota(jnp.int32, (64, 64), 1)
    sel_r1 = jnp.where(r < 32, h == 2 * r, h == 2 * (r - 32) + 1).astype(bf16)

    # BatchNorm per-channel indicator matrices (reduce lanes -> channel, and back).
    l1 = lax.broadcasted_iota(jnp.int32, (512, 8), 0)
    o1 = lax.broadcasted_iota(jnp.int32, (512, 8), 1)
    ind1 = (((l1 % 256) // 32) == o1).astype(f32)
    ind1t = ind1.T
    l2 = lax.broadcasted_iota(jnp.int32, (128, 4), 0)
    o2 = lax.broadcasted_iota(jnp.int32, (128, 4), 1)
    ind2 = (((l2 % 64) // 16) == o2).astype(f32)
    ind2t = ind2.T

    return b1, b2, wfc3, sel_r1, ind1, ind1t, ind2, ind2t


# --------------------------------------------------------------------------
# In-kernel helpers.
# --------------------------------------------------------------------------

def _bn_leaky(acc, ind_ref, indt_ref, count):
    # One pass of column sums / sums-of-squares over the f32 accumulator, then
    # per-channel reduce (lanes -> channel) and broadcast back with tiny
    # indicator matmuls.  Training-mode batch stats, affine=False.
    colsum = jnp.sum(acc, axis=0, keepdims=True)                      # (1, L)
    colsq = jnp.sum(acc * acc, axis=0, keepdims=True)                 # (1, L)
    csum = jnp.dot(colsum, ind_ref[...], preferred_element_type=jnp.float32)  # (1, C)
    csq = jnp.dot(colsq, ind_ref[...], preferred_element_type=jnp.float32)    # (1, C)
    mean = csum / count
    var = jnp.maximum(csq / count - mean * mean, 0.0)                 # guard cancellation
    scale = lax.rsqrt(var + _BN_EPS)
    mv = jnp.dot(mean, indt_ref[...], preferred_element_type=jnp.float32)     # (1, L)
    sv = jnp.dot(scale, indt_ref[...], preferred_element_type=jnp.float32)    # (1, L)
    y = (acc - mv) * sv
    return jnp.where(y >= 0, y, _NEG_SLOPE * y)


# --------------------------------------------------------------------------
# Fused kernel.
# --------------------------------------------------------------------------

def _deep_svdd_kernel(x_ref, b1_ref, b2_ref, wfc_ref, selr1_ref,
                      ind1_ref, ind1t_ref, ind2_ref, ind2t_ref,
                      z_ref, xp_ref, a1_ref):
    # x_ref   : (N, 64, 64) bf16   input (channel squeezed, cast in wrapper)
    # b1_ref  : (320, 512)  bf16   conv1 banded weights (taps fused on K)
    # b2_ref  : (5, 256, 128) bf16 conv2 banded weights (per tap)
    # wfc_ref : (16, 64, 32) bf16  fc1 weights, split over pooled rows i
    # selr1_ref: (64, 64)    bf16  stage-1 row-pool (even|odd) selector
    # ind*_ref: BatchNorm per-channel indicator matrices (f32)
    # z_ref   : (N, 32) f32        output embedding
    # xp_ref  : (N, 68, 64) bf16   scratch: row-padded conv1 input
    # a1_ref  : (N, 36, 256) bf16  scratch: row-padded stage-1 pooled output
    n = x_ref.shape[0]
    bf16 = jnp.bfloat16
    f32 = jnp.float32

    # ---- conv1: row-pad (borders only), then ONE fused banded MXU matmul ----
    xp_ref[:, 0:2, :] = jnp.zeros((n, 2, 64), bf16)
    xp_ref[:, 66:68, :] = jnp.zeros((n, 2, 64), bf16)
    xp_ref[:, 2:66, :] = x_ref[...]

    xs = jnp.concatenate(
        [xp_ref[:, p:p + 64, :].reshape(n * 64, 64) for p in range(5)], axis=1)
    acc1 = jnp.dot(xs, b1_ref[...], preferred_element_type=f32)       # (N*64, 512)

    # ---- bn1 + leaky_relu ----
    y1 = _bn_leaky(acc1, ind1_ref, ind1t_ref, float(n * 64 * 64))

    # ---- maxpool 2x2: columns via lane-half max (layout trick, no matmul),
    #      rows via one small precomputed selection einsum + sublane-half max.
    hm1 = jnp.maximum(y1[:, :256], y1[:, 256:])                       # (N*64, 256)
    hm1 = hm1.astype(bf16).reshape(n, 64, 256)
    sel = jnp.broadcast_to(selr1_ref[...], (n, 64, 64))
    s1 = jnp.einsum('nrh,nhw->nrw', sel, hm1, preferred_element_type=f32)
    pooled1 = jnp.maximum(s1[:, :32, :], s1[:, 32:, :])               # (N, 32, 256)

    # ---- conv2: row-pad pooled1 (borders only), 5 banded MXU matmuls K=256 ----
    a1_ref[:, 0:2, :] = jnp.zeros((n, 2, 256), bf16)
    a1_ref[:, 34:36, :] = jnp.zeros((n, 2, 256), bf16)
    a1_ref[:, 2:34, :] = pooled1.astype(bf16)

    acc2 = None
    for p in range(5):
        ys = a1_ref[:, p:p + 32, :].reshape(n * 32, 256)
        t = jnp.dot(ys, b2_ref[p], preferred_element_type=f32)
        acc2 = t if acc2 is None else acc2 + t                        # (N*32, 128)

    # ---- bn2 + leaky_relu ----
    y2 = _bn_leaky(acc2, ind2_ref, ind2t_ref, float(n * 32 * 32))

    # ---- maxpool 2x2 (columns via lane-half max) ...
    hm2 = jnp.maximum(y2[:, :64], y2[:, 64:])                         # (N*32, 64)
    hm2 = hm2.reshape(n, 32, 64)

    # ... and fuse the row pair-max + flatten + fc1 into 16 small MXU matmuls.
    zacc = None
    for i in range(16):
        pr = jnp.maximum(hm2[:, 2 * i, :], hm2[:, 2 * i + 1, :]).astype(bf16)  # (N, 64)
        t = jnp.dot(pr, wfc_ref[i], preferred_element_type=f32)                # (N, 32)
        zacc = t if zacc is None else zacc + t
    z_ref[...] = zacc


# --------------------------------------------------------------------------
# Wrapper.
# --------------------------------------------------------------------------

def deep_svdd_forward(x, params):
    # x: (N, 1, 64, 64) float32 (NCHW, like PyTorch); params from prepare_params.
    b1, b2, wfc3, sel_r1, ind1, ind1t, ind2, ind2t = params
    n = x.shape[0]
    zd = wfc3.shape[2]
    assert x.shape[1:] == (1, 64, 64), "fc1(4*16*16) implies 1x64x64 inputs"
    # Grid-less all-VMEM design (BN batch stats couple the batch): guard N so
    # live activations (+ weights) stay within the scoped VMEM budget below.
    assert n <= 32, "batch too large for the single-invocation VMEM-resident kernel"

    vmem = lambda: pl.BlockSpec(memory_space=pltpu.MemorySpace.VMEM)
    return pl.pallas_call(
        _deep_svdd_kernel,
        out_shape=jax.ShapeDtypeStruct((n, zd), jnp.float32),
        in_specs=[vmem()] * 9,
        out_specs=vmem(),
        scratch_shapes=[
            pltpu.VMEM((n, 68, 64), jnp.bfloat16),    # row-padded conv1 input
            pltpu.VMEM((n, 36, 256), jnp.bfloat16),   # row-padded stage-1 pooled output
        ],
        compiler_params=pltpu.CompilerParams(vmem_limit_bytes=32 * 1024 * 1024),
    )(x[:, 0].astype(jnp.bfloat16), b1, b2, wfc3, sel_r1, ind1, ind1t, ind2, ind2t)


# --------------------------------------------------------------------------
# Pure-XLA reference of the same module (for a sanity cross-check).
# --------------------------------------------------------------------------

def _reference_forward(x, w_conv1, w_conv2, w_fc):
    def conv(inp, w):
        return lax.conv_general_dilated(
            inp, w, window_strides=(1, 1), padding=((2, 2), (2, 2)),
            dimension_numbers=('NCHW', 'OIHW', 'NCHW'))

    def bn_leaky(v):
        mean = jnp.mean(v, axis=(0, 2, 3), keepdims=True)
        var = jnp.mean(jnp.square(v - mean), axis=(0, 2, 3), keepdims=True)
        y = (v - mean) * lax.rsqrt(var + _BN_EPS)
        return jnp.where(y >= 0, y, _NEG_SLOPE * y)

    def pool(v):
        return lax.reduce_window(v, -jnp.inf, lax.max,
                                 (1, 1, 2, 2), (1, 1, 2, 2), 'VALID')

    h = pool(bn_leaky(conv(x, w_conv1)))
    h = pool(bn_leaky(conv(h, w_conv2)))
    return h.reshape(h.shape[0], -1) @ w_fc.T


if __name__ == "__main__":
    key = jax.random.PRNGKey(0)
    kx, k1, k2, k3 = jax.random.split(key, 4)

    # Deterministic synthetic parameters (shapes from the module's __init__).
    w_conv1 = jax.random.normal(k1, (8, 1, 5, 5), jnp.float32) * 0.2     # conv1.weight
    w_conv2 = jax.random.normal(k2, (4, 8, 5, 5), jnp.float32) * 0.07    # conv2.weight
    w_fc = jax.random.normal(k3, (32, 4 * 16 * 16), jnp.float32) * 0.03  # fc1.weight

    # fc1 = Linear(4*16*16, 32) implies 64x64 inputs (two 2x maxpools -> 16x16).
    x = jax.random.normal(kx, (2, 1, 64, 64), jnp.float32)

    params = prepare_params(w_conv1, w_conv2, w_fc)   # one-time prep, outside jit
    fwd = jax.jit(deep_svdd_forward)
    z = fwd(x, params)
    jax.block_until_ready(z)
    assert z.shape == (2, 32) and z.dtype == jnp.float32

    # Sanity cross-check against the plain-XLA f32 reference (bf16 MXU operands
    # in the kernel -> loose tolerance).
    z_ref = _reference_forward(x, w_conv1, w_conv2, w_fc)
    rel_err = float(jnp.max(jnp.abs(z - z_ref)) / (jnp.max(jnp.abs(z_ref)) + 1e-6))
    assert rel_err < 5e-2, f"mismatch vs reference: rel_err={rel_err}"
    print("KERNEL_OK")
</pallas_src>

<mosaic_0001>
module attributes {stable_mosaic.version = 11 : i64} {
  func.func @_deep_svdd_kernel(%arg0: memref<2x64x64xbf16, #tpu.memory_space<vmem>>, %arg1: memref<320x512xbf16, #tpu.memory_space<vmem>>, %arg2: memref<5x256x128xbf16, #tpu.memory_space<vmem>>, %arg3: memref<16x64x32xbf16, #tpu.memory_space<vmem>>, %arg4: memref<64x64xbf16, #tpu.memory_space<vmem>>, %arg5: memref<512x8xf32, #tpu.memory_space<vmem>>, %arg6: memref<8x512xf32, #tpu.memory_space<vmem>>, %arg7: memref<128x4xf32, #tpu.memory_space<vmem>>, %arg8: memref<4x128xf32, #tpu.memory_space<vmem>>, %arg9: memref<2x32xf32, #tpu.memory_space<vmem>>, %arg10: memref<2x68x64xbf16, #tpu.memory_space<vmem>>, %arg11: memref<2x36x256xbf16, #tpu.memory_space<vmem>>) attributes {dimension_semantics = [], scalar_prefetch = 0 : i64, scratch_operands = 2 : i64, tpu.core_type = #tpu.core_type<tc>} {
    %cst = arith.constant 0.000000e+00 : bf16
    %0 = vector.broadcast %cst : bf16 to vector<2x2x64xbf16>
    %c0 = arith.constant 0 : index
    %c0_0 = arith.constant 0 : index
    %c0_1 = arith.constant 0 : index
    %1 = vector.load %arg10[%c0, %c0_0, %c0_1] : memref<2x68x64xbf16, #tpu.memory_space<vmem>>, vector<2x2x64xbf16>
    tpu.vector_store %arg10[%c0, %c0_0, %c0_1], %0 {strides = array<i32>} : memref<2x68x64xbf16, #tpu.memory_space<vmem>>, vector<2x2x64xbf16>,
    %cst_2 = arith.constant 0.000000e+00 : bf16
    %2 = vector.broadcast %cst_2 : bf16 to vector<2x2x64xbf16>
    %c0_3 = arith.constant 0 : index
    %c66 = arith.constant 66 : index
    %c0_4 = arith.constant 0 : index
    %3 = vector.load %arg10[%c0_3, %c66, %c0_4] : memref<2x68x64xbf16, #tpu.memory_space<vmem>>, vector<2x2x64xbf16>
    tpu.vector_store %arg10[%c0_3, %c66, %c0_4], %2 {strides = array<i32>} : memref<2x68x64xbf16, #tpu.memory_space<vmem>>, vector<2x2x64xbf16>,
    %c0_5 = arith.constant 0 : index
    %c0_6 = arith.constant 0 : index
    %c0_7 = arith.constant 0 : index
    %4 = vector.load %arg0[%c0_5, %c0_6, %c0_7] : memref<2x64x64xbf16, #tpu.memory_space<vmem>>, vector<2x64x64xbf16>
    %c0_8 = arith.constant 0 : index
    %c2 = arith.constant 2 : index
    %c0_9 = arith.constant 0 : index
    %5 = vector.load %arg10[%c0_8, %c2, %c0_9] : memref<2x68x64xbf16, #tpu.memory_space<vmem>>, vector<2x64x64xbf16>
    tpu.vector_store %arg10[%c0_8, %c2, %c0_9], %4 {strides = array<i32>} : memref<2x68x64xbf16, #tpu.memory_space<vmem>>, vector<2x64x64xbf16>,
    %c0_10 = arith.constant 0 : index
    %c0_11 = arith.constant 0 : index
    %c0_12 = arith.constant 0 : index
    %6 = vector.load %arg10[%c0_10, %c0_11, %c0_12] : memref<2x68x64xbf16, #tpu.memory_space<vmem>>, vector<2x64x64xbf16>
    %7 = vector.shape_cast %6 : vector<2x64x64xbf16> to vector<128x64xbf16>
    %c0_13 = arith.constant 0 : index
    %c1 = arith.constant 1 : index
    %c0_14 = arith.constant 0 : index
    %8 = vector.load %arg10[%c0_13, %c1, %c0_14] : memref<2x68x64xbf16, #tpu.memory_space<vmem>>, vector<2x64x64xbf16>
    %9 = vector.shape_cast %8 : vector<2x64x64xbf16> to vector<128x64xbf16>
    %c0_15 = arith.constant 0 : index
    %c2_16 = arith.constant 2 : index
    %c0_17 = arith.constant 0 : index
    %10 = vector.load %arg10[%c0_15, %c2_16, %c0_17] : memref<2x68x64xbf16, #tpu.memory_space<vmem>>, vector<2x64x64xbf16>
    %11 = vector.shape_cast %10 : vector<2x64x64xbf16> to vector<128x64xbf16>
    %c0_18 = arith.constant 0 : index
    %c3 = arith.constant 3 : index
    %c0_19 = arith.constant 0 : index
    %12 = vector.load %arg10[%c0_18, %c3, %c0_19] : memref<2x68x64xbf16, #tpu.memory_space<vmem>>, vector<2x64x64xbf16>
    %13 = vector.shape_cast %12 : vector<2x64x64xbf16> to vector<128x64xbf16>
    %c0_20 = arith.constant 0 : index
    %c4 = arith.constant 4 : index
    %c0_21 = arith.constant 0 : index
    %14 = vector.load %arg10[%c0_20, %c4, %c0_21] : memref<2x68x64xbf16, #tpu.memory_space<vmem>>, vector<2x64x64xbf16>
    %15 = vector.shape_cast %14 : vector<2x64x64xbf16> to vector<128x64xbf16>
    %16 = tpu.concatenate %7, %9, %11, %13, %15 in 1 : vector<128x64xbf16>, vector<128x64xbf16>, vector<128x64xbf16>, vector<128x64xbf16>, vector<128x64xbf16> -> vector<128x320xbf16>
    %c0_22 = arith.constant 0 : index
    %c0_23 = arith.constant 0 : index
    %17 = vector.load %arg1[%c0_22, %c0_23] : memref<320x512xbf16, #tpu.memory_space<vmem>>, vector<320x512xbf16>
    %cst_24 = arith.constant dense<0.000000e+00> : vector<128x512xf32>
    %18 = tpu.matmul %16, %17, %cst_24 {dimension_numbers = #tpu.dot_dimension_numbers<[1], [0], [0], [1], [0, 0, 1, 1], [], []>} : vector<128x320xbf16>, vector<320x512xbf16>, vector<128x512xf32> -> vector<128x512xf32>
    %cst_25 = arith.constant dense<0.000000e+00> : vector<512xf32>
    %19 = vector.multi_reduction <add>, %18, %cst_25 [0] : vector<128x512xf32> to vector<512xf32>
    %20 = vector.shape_cast %19 : vector<512xf32> to vector<1x512xf32>
    %21 = arith.mulf %18, %18 : vector<128x512xf32>
    %cst_26 = arith.constant dense<0.000000e+00> : vector<512xf32>
    %22 = vector.multi_reduction <add>, %21, %cst_26 [0] : vector<128x512xf32> to vector<512xf32>
    %23 = vector.shape_cast %22 : vector<512xf32> to vector<1x512xf32>
    %c0_27 = arith.constant 0 : index
    %c0_28 = arith.constant 0 : index
    %24 = vector.load %arg5[%c0_27, %c0_28] : memref<512x8xf32, #tpu.memory_space<vmem>>, vector<512x8xf32>
    %cst_29 = arith.constant dense<0.000000e+00> : vector<1x8xf32>
    %25 = tpu.matmul %20, %24, %cst_29 {dimension_numbers = #tpu.dot_dimension_numbers<[1], [0], [0], [1], [0, 0, 1, 1], [], []>} : vector<1x512xf32>, vector<512x8xf32>, vector<1x8xf32> -> vector<1x8xf32>
    %c0_30 = arith.constant 0 : index
    %c0_31 = arith.constant 0 : index
    %26 = vector.load %arg5[%c0_30, %c0_31] : memref<512x8xf32, #tpu.memory_space<vmem>>, vector<512x8xf32>
    %cst_32 = arith.constant dense<0.000000e+00> : vector<1x8xf32>
    %27 = tpu.matmul %23, %26, %cst_32 {dimension_numbers = #tpu.dot_dimension_numbers<[1], [0], [0], [1], [0, 0, 1, 1], [], []>} : vector<1x512xf32>, vector<512x8xf32>, vector<1x8xf32> -> vector<1x8xf32>
    %cst_33 = arith.constant 8.192000e+03 : f32
    %28 = vector.broadcast %cst_33 : f32 to vector<1x8xf32>
    %29 = arith.divf %25, %28 : vector<1x8xf32>
    %cst_34 = arith.constant 8.192000e+03 : f32
    %30 = vector.broadcast %cst_34 : f32 to vector<1x8xf32>
    %31 = arith.divf %27, %30 : vector<1x8xf32>
    %32 = arith.mulf %29, %29 : vector<1x8xf32>
    %33 = arith.subf %31, %32 : vector<1x8xf32>
    %cst_35 = arith.constant 0.000000e+00 : f32
    %34 = vector.broadcast %cst_35 : f32 to vector<1x8xf32>
    %35 = arith.maximumf %33, %34 : vector<1x8xf32>
    %cst_36 = arith.constant 9.99999974E-5 : f32
    %36 = vector.broadcast %cst_36 : f32 to vector<1x8xf32>
    %37 = arith.addf %35, %36 : vector<1x8xf32>
    %38 = math.rsqrt %37 : vector<1x8xf32>
    %c0_37 = arith.constant 0 : index
    %c0_38 = arith.constant 0 : index
    %39 = vector.load %arg6[%c0_37, %c0_38] : memref<8x512xf32, #tpu.memory_space<vmem>>, vector<8x512xf32>
    %cst_39 = arith.constant dense<0.000000e+00> : vector<1x512xf32>
    %40 = tpu.matmul %29, %39, %cst_39 {dimension_numbers = #tpu.dot_dimension_numbers<[1], [0], [0], [1], [0, 0, 1, 1], [], []>} : vector<1x8xf32>, vector<8x512xf32>, vector<1x512xf32> -> vector<1x512xf32>
    %c0_40 = arith.constant 0 : index
    %c0_41 = arith.constant 0 : index
    %41 = vector.load %arg6[%c0_40, %c0_41] : memref<8x512xf32, #tpu.memory_space<vmem>>, vector<8x512xf32>
    %cst_42 = arith.constant dense<0.000000e+00> : vector<1x512xf32>
    %42 = tpu.matmul %38, %41, %cst_42 {dimension_numbers = #tpu.dot_dimension_numbers<[1], [0], [0], [1], [0, 0, 1, 1], [], []>} : vector<1x8xf32>, vector<8x512xf32>, vector<1x512xf32> -> vector<1x512xf32>
    %43 = vector.broadcast %40 : vector<1x512xf32> to vector<128x512xf32>
    %44 = arith.subf %18, %43 : vector<128x512xf32>
    %45 = vector.broadcast %42 : vector<1x512xf32> to vector<128x512xf32>
    %46 = arith.mulf %44, %45 : vector<128x512xf32>
    %cst_43 = arith.constant 0.000000e+00 : f32
    %47 = vector.broadcast %cst_43 : f32 to vector<128x512xf32>
    %48 = arith.cmpf oge, %46, %47 : vector<128x512xf32>
    %cst_44 = arith.constant 0.00999999977 : f32
    %49 = vector.broadcast %cst_44 : f32 to vector<128x512xf32>
    %50 = arith.mulf %49, %46 : vector<128x512xf32>
    %51 = arith.select %48, %46, %50 : vector<128x512xi1>, vector<128x512xf32>
    %52 = vector.extract_strided_slice %51 {offsets = [0, 0], sizes = [128, 256], strides = [1, 1]} : vector<128x512xf32> to vector<128x256xf32>
    %53 = vector.extract_strided_slice %51 {offsets = [0, 256], sizes = [128, 256], strides = [1, 1]} : vector<128x512xf32> to vector<128x256xf32>
    %54 = arith.maximumf %52, %53 : vector<128x256xf32>
    %55 = arith.truncf %54 : vector<128x256xf32> to vector<128x256xbf16>
    %56 = vector.shape_cast %55 : vector<128x256xbf16> to vector<2x64x256xbf16>
    %c0_45 = arith.constant 0 : index
    %c0_46 = arith.constant 0 : index
    %57 = vector.load %arg4[%c0_45, %c0_46] : memref<64x64xbf16, #tpu.memory_space<vmem>>, vector<64x64xbf16>
    %58 = vector.shape_cast %57 : vector<64x64xbf16> to vector<1x64x64xbf16>
    %59 = vector.broadcast %58 : vector<1x64x64xbf16> to vector<2x64x64xbf16>
    "tpu.trace_start"() <{level = 10 : i32, message = "nrh,nhw->nrw"}> : () -> ()
    %cst_47 = arith.constant dense<0.000000e+00> : vector<2x64x256xf32>
    %60 = tpu.matmul %59, %56, %cst_47 {dimension_numbers = #tpu.dot_dimension_numbers<[2], [1], [1], [2], [0, 0, 0, 1, 1, 2], [0], [0]>} : vector<2x64x64xbf16>, vector<2x64x256xbf16>, vector<2x64x256xf32> -> vector<2x64x256xf32>
    "tpu.trace_stop"() : () -> ()
    %61 = vector.extract_strided_slice %60 {offsets = [0, 0, 0], sizes = [2, 32, 256], strides = [1, 1, 1]} : vector<2x64x256xf32> to vector<2x32x256xf32>
    %62 = vector.extract_strided_slice %60 {offsets = [0, 32, 0], sizes = [2, 32, 256], strides = [1, 1, 1]} : vector<2x64x256xf32> to vector<2x32x256xf32>
    %63 = arith.maximumf %61, %62 : vector<2x32x256xf32>
    %cst_48 = arith.constant 0.000000e+00 : bf16
    %64 = vector.broadcast %cst_48 : bf16 to vector<2x2x256xbf16>
    %c0_49 = arith.constant 0 : index
    %c0_50 = arith.constant 0 : index
    %c0_51 = arith.constant 0 : index
    %65 = vector.load %arg11[%c0_49, %c0_50, %c0_51] : memref<2x36x256xbf16, #tpu.memory_space<vmem>>, vector<2x2x256xbf16>
    tpu.vector_store %arg11[%c0_49, %c0_50, %c0_51], %64 {strides = array<i32>} : memref<2x36x256xbf16, #tpu.memory_space<vmem>>, vector<2x2x256xbf16>,
    %cst_52 = arith.constant 0.000000e+00 : bf16
    %66 = vector.broadcast %cst_52 : bf16 to vector<2x2x256xbf16>
    %c0_53 = arith.constant 0 : index
    %c34 = arith.constant 34 : index
    %c0_54 = arith.constant 0 : index
    %67 = vector.load %arg11[%c0_53, %c34, %c0_54] : memref<2x36x256xbf16, #tpu.memory_space<vmem>>, vector<2x2x256xbf16>
    tpu.vector_store %arg11[%c0_53, %c34, %c0_54], %66 {strides = array<i32>} : memref<2x36x256xbf16, #tpu.memory_space<vmem>>, vector<2x2x256xbf16>,
    %68 = arith.truncf %63 : vector<2x32x256xf32> to vector<2x32x256xbf16>
    %c0_55 = arith.constant 0 : index
    %c2_56 = arith.constant 2 : index
    %c0_57 = arith.constant 0 : index
    %69 = vector.load %arg11[%c0_55, %c2_56, %c0_57] : memref<2x36x256xbf16, #tpu.memory_space<vmem>>, vector<2x32x256xbf16>
    tpu.vector_store %arg11[%c0_55, %c2_56, %c0_57], %68 {strides = array<i32>} : memref<2x36x256xbf16, #tpu.memory_space<vmem>>, vector<2x32x256xbf16>,
    %c0_58 = arith.constant 0 : index
    %c0_59 = arith.constant 0 : index
    %c0_60 = arith.constant 0 : index
    %70 = vector.load %arg11[%c0_58, %c0_59, %c0_60] : memref<2x36x256xbf16, #tpu.memory_space<vmem>>, vector<2x32x256xbf16>
    %71 = vector.shape_cast %70 : vector<2x32x256xbf16> to vector<64x256xbf16>
    %c0_61 = arith.constant 0 : index
    %c0_62 = arith.constant 0 : index
    %c0_63 = arith.constant 0 : index
    %72 = vector.load %arg2[%c0_61, %c0_62, %c0_63] : memref<5x256x128xbf16, #tpu.memory_space<vmem>>, vector<1x256x128xbf16>
    %73 = vector.shape_cast %72 : vector<1x256x128xbf16> to vector<256x128xbf16>
    %cst_64 = arith.constant dense<0.000000e+00> : vector<64x128xf32>
    %74 = tpu.matmul %71, %73, %cst_64 {dimension_numbers = #tpu.dot_dimension_numbers<[1], [0], [0], [1], [0, 0, 1, 1], [], []>} : vector<64x256xbf16>, vector<256x128xbf16>, vector<64x128xf32> -> vector<64x128xf32>
    %c0_65 = arith.constant 0 : index
    %c1_66 = arith.constant 1 : index
    %c0_67 = arith.constant 0 : index
    %75 = vector.load %arg11[%c0_65, %c1_66, %c0_67] : memref<2x36x256xbf16, #tpu.memory_space<vmem>>, vector<2x32x256xbf16>
    %76 = vector.shape_cast %75 : vector<2x32x256xbf16> to vector<64x256xbf16>
    %c1_68 = arith.constant 1 : index
    %c0_69 = arith.constant 0 : index
    %c0_70 = arith.constant 0 : index
    %77 = vector.load %arg2[%c1_68, %c0_69, %c0_70] : memref<5x256x128xbf16, #tpu.memory_space<vmem>>, vector<1x256x128xbf16>
    %78 = vector.shape_cast %77 : vector<1x256x128xbf16> to vector<256x128xbf16>
    %cst_71 = arith.constant dense<0.000000e+00> : vector<64x128xf32>
    %79 = tpu.matmul %76, %78, %cst_71 {dimension_numbers = #tpu.dot_dimension_numbers<[1], [0], [0], [1], [0, 0, 1, 1], [], []>} : vector<64x256xbf16>, vector<256x128xbf16>, vector<64x128xf32> -> vector<64x128xf32>
    %80 = arith.addf %74, %79 : vector<64x128xf32>
    %c0_72 = arith.constant 0 : index
    %c2_73 = arith.constant 2 : index
    %c0_74 = arith.constant 0 : index
    %81 = vector.load %arg11[%c0_72, %c2_73, %c0_74] : memref<2x36x256xbf16, #tpu.memory_space<vmem>>, vector<2x32x256xbf16>
    %82 = vector.shape_cast %81 : vector<2x32x256xbf16> to vector<64x256xbf16>
    %c2_75 = arith.constant 2 : index
    %c0_76 = arith.constant 0 : index
    %c0_77 = arith.constant 0 : index
    %83 = vector.load %arg2[%c2_75, %c0_76, %c0_77] : memref<5x256x128xbf16, #tpu.memory_space<vmem>>, vector<1x256x128xbf16>
    %84 = vector.shape_cast %83 : vector<1x256x128xbf16> to vector<256x128xbf16>
    %cst_78 = arith.constant dense<0.000000e+00> : vector<64x128xf32>
    %85 = tpu.matmul %82, %84, %cst_78 {dimension_numbers = #tpu.dot_dimension_numbers<[1], [0], [0], [1], [0, 0, 1, 1], [], []>} : vector<64x256xbf16>, vector<256x128xbf16>, vector<64x128xf32> -> vector<64x128xf32>
    %86 = arith.addf %80, %85 : vector<64x128xf32>
    %c0_79 = arith.constant 0 : index
    %c3_80 = arith.constant 3 : index
    %c0_81 = arith.constant 0 : index
    %87 = vector.load %arg11[%c0_79, %c3_80, %c0_81] : memref<2x36x256xbf16, #tpu.memory_space<vmem>>, vector<2x32x256xbf16>
    %88 = vector.shape_cast %87 : vector<2x32x256xbf16> to vector<64x256xbf16>
    %c3_82 = arith.constant 3 : index
    %c0_83 = arith.constant 0 : index
    %c0_84 = arith.constant 0 : index
    %89 = vector.load %arg2[%c3_82, %c0_83, %c0_84] : memref<5x256x128xbf16, #tpu.memory_space<vmem>>, vector<1x256x128xbf16>
    %90 = vector.shape_cast %89 : vector<1x256x128xbf16> to vector<256x128xbf16>
    %cst_85 = arith.constant dense<0.000000e+00> : vector<64x128xf32>
    %91 = tpu.matmul %88, %90, %cst_85 {dimension_numbers = #tpu.dot_dimension_numbers<[1], [0], [0], [1], [0, 0, 1, 1], [], []>} : vector<64x256xbf16>, vector<256x128xbf16>, vector<64x128xf32> -> vector<64x128xf32>
    %92 = arith.addf %86, %91 : vector<64x128xf32>
    %c0_86 = arith.constant 0 : index
    %c4_87 = arith.constant 4 : index
    %c0_88 = arith.constant 0 : index
    %93 = vector.load %arg11[%c0_86, %c4_87, %c0_88] : memref<2x36x256xbf16, #tpu.memory_space<vmem>>, vector<2x32x256xbf16>
    %94 = vector.shape_cast %93 : vector<2x32x256xbf16> to vector<64x256xbf16>
    %c4_89 = arith.constant 4 : index
    %c0_90 = arith.constant 0 : index
    %c0_91 = arith.constant 0 : index
    %95 = vector.load %arg2[%c4_89, %c0_90, %c0_91] : memref<5x256x128xbf16, #tpu.memory_space<vmem>>, vector<1x256x128xbf16>
    %96 = vector.shape_cast %95 : vector<1x256x128xbf16> to vector<256x128xbf16>
    %cst_92 = arith.constant dense<0.000000e+00> : vector<64x128xf32>
    %97 = tpu.matmul %94, %96, %cst_92 {dimension_numbers = #tpu.dot_dimension_numbers<[1], [0], [0], [1], [0, 0, 1, 1], [], []>} : vector<64x256xbf16>, vector<256x128xbf16>, vector<64x128xf32> -> vector<64x128xf32>
    %98 = arith.addf %92, %97 : vector<64x128xf32>
    %cst_93 = arith.constant dense<0.000000e+00> : vector<128xf32>
    %99 = vector.multi_reduction <add>, %98, %cst_93 [0] : vector<64x128xf32> to vector<128xf32>
    %100 = vector.shape_cast %99 : vector<128xf32> to vector<1x128xf32>
    %101 = arith.mulf %98, %98 : vector<64x128xf32>
    %cst_94 = arith.constant dense<0.000000e+00> : vector<128xf32>
    %102 = vector.multi_reduction <add>, %101, %cst_94 [0] : vector<64x128xf32> to vector<128xf32>
    %103 = vector.shape_cast %102 : vector<128xf32> to vector<1x128xf32>
    %c0_95 = arith.constant 0 : index
    %c0_96 = arith.constant 0 : index
    %104 = vector.load %arg7[%c0_95, %c0_96] : memref<128x4xf32, #tpu.memory_space<vmem>>, vector<128x4xf32>
    %cst_97 = arith.constant dense<0.000000e+00> : vector<1x4xf32>
    %105 = tpu.matmul %100, %104, %cst_97 {dimension_numbers = #tpu.dot_dimension_numbers<[1], [0], [0], [1], [0, 0, 1, 1], [], []>} : vector<1x128xf32>, vector<128x4xf32>, vector<1x4xf32> -> vector<1x4xf32>
    %c0_98 = arith.constant 0 : index
    %c0_99 = arith.constant 0 : index
    %106 = vector.load %arg7[%c0_98, %c0_99] : memref<128x4xf32, #tpu.memory_space<vmem>>, vector<128x4xf32>
    %cst_100 = arith.constant dense<0.000000e+00> : vector<1x4xf32>
    %107 = tpu.matmul %103, %106, %cst_100 {dimension_numbers = #tpu.dot_dimension_numbers<[1], [0], [0], [1], [0, 0, 1, 1], [], []>} : vector<1x128xf32>, vector<128x4xf32>, vector<1x4xf32> -> vector<1x4xf32>
    %cst_101 = arith.constant 2.048000e+03 : f32
    %108 = vector.broadcast %cst_101 : f32 to vector<1x4xf32>
    %109 = arith.divf %105, %108 : vector<1x4xf32>
    %cst_102 = arith.constant 2.048000e+03 : f32
    %110 = vector.broadcast %cst_102 : f32 to vector<1x4xf32>
    %111 = arith.divf %107, %110 : vector<1x4xf32>
    %112 = arith.mulf %109, %109 : vector<1x4xf32>
    %113 = arith.subf %111, %112 : vector<1x4xf32>
    %cst_103 = arith.constant 0.000000e+00 : f32
    %114 = vector.broadcast %cst_103 : f32 to vector<1x4xf32>
    %115 = arith.maximumf %113, %114 : vector<1x4xf32>
    %cst_104 = arith.constant 9.99999974E-5 : f32
    %116 = vector.broadcast %cst_104 : f32 to vector<1x4xf32>
    %117 = arith.addf %115, %116 : vector<1x4xf32>
    %118 = math.rsqrt %117 : vector<1x4xf32>
    %c0_105 = arith.constant 0 : index
    %c0_106 = arith.constant 0 : index
    %119 = vector.load %arg8[%c0_105, %c0_106] : memref<4x128xf32, #tpu.memory_space<vmem>>, vector<4x128xf32>
    %cst_107 = arith.constant dense<0.000000e+00> : vector<1x128xf32>
    %120 = tpu.matmul %109, %119, %cst_107 {dimension_numbers = #tpu.dot_dimension_numbers<[1], [0], [0], [1], [0, 0, 1, 1], [], []>} : vector<1x4xf32>, vector<4x128xf32>, vector<1x128xf32> -> vector<1x128xf32>
    %c0_108 = arith.constant 0 : index
    %c0_109 = arith.constant 0 : index
    %121 = vector.load %arg8[%c0_108, %c0_109] : memref<4x128xf32, #tpu.memory_space<vmem>>, vector<4x128xf32>
    %cst_110 = arith.constant dense<0.000000e+00> : vector<1x128xf32>
    %122 = tpu.matmul %118, %121, %cst_110 {dimension_numbers = #tpu.dot_dimension_numbers<[1], [0], [0], [1], [0, 0, 1, 1], [], []>} : vector<1x4xf32>, vector<4x128xf32>, vector<1x128xf32> -> vector<1x128xf32>
    %123 = vector.broadcast %120 : vector<1x128xf32> to vector<64x128xf32>
    %124 = arith.subf %98, %123 : vector<64x128xf32>
    %125 = vector.broadcast %122 : vector<1x128xf32> to vector<64x128xf32>
    %126 = arith.mulf %124, %125 : vector<64x128xf32>
    %cst_111 = arith.constant 0.000000e+00 : f32
    %127 = vector.broadcast %cst_111 : f32 to vector<64x128xf32>
    %128 = arith.cmpf oge, %126, %127 : vector<64x128xf32>
    %cst_112 = arith.constant 0.00999999977 : f32
    %129 = vector.broadcast %cst_112 : f32 to vector<64x128xf32>
    %130 = arith.mulf %129, %126 : vector<64x128xf32>
    %131 = arith.select %128, %126, %130 : vector<64x128xi1>, vector<64x128xf32>
    %132 = vector.extract_strided_slice %131 {offsets = [0, 0], sizes = [64, 64], strides = [1, 1]} : vector<64x128xf32> to vector<64x64xf32>
    %133 = vector.extract_strided_slice %131 {offsets = [0, 64], sizes = [64, 64], strides = [1, 1]} : vector<64x128xf32> to vector<64x64xf32>
    %134 = arith.maximumf %132, %133 : vector<64x64xf32>
    %135 = vector.shape_cast %134 : vector<64x64xf32> to vector<2x32x64xf32>
    %136 = vector.extract_strided_slice %135 {offsets = [0, 0, 0], sizes = [2, 1, 64], strides = [1, 1, 1]} : vector<2x32x64xf32> to vector<2x1x64xf32>
    %137 = vector.shape_cast %136 : vector<2x1x64xf32> to vector<2x64xf32>
    %138 = vector.extract_strided_slice %135 {offsets = [0, 1, 0], sizes = [2, 1, 64], strides = [1, 1, 1]} : vector<2x32x64xf32> to vector<2x1x64xf32>
    %139 = vector.shape_cast %138 : vector<2x1x64xf32> to vector<2x64xf32>
    %140 = arith.maximumf %137, %139 : vector<2x64xf32>
    %141 = arith.truncf %140 : vector<2x64xf32> to vector<2x64xbf16>
    %c0_113 = arith.constant 0 : index
    %c0_114 = arith.constant 0 : index
    %c0_115 = arith.constant 0 : index
    %142 = vector.load %arg3[%c0_113, %c0_114, %c0_115] : memref<16x64x32xbf16, #tpu.memory_space<vmem>>, vector<1x64x32xbf16>
    %143 = vector.shape_cast %142 : vector<1x64x32xbf16> to vector<64x32xbf16>
    %cst_116 = arith.constant dense<0.000000e+00> : vector<2x32xf32>
    %144 = tpu.matmul %141, %143, %cst_116 {dimension_numbers = #tpu.dot_dimension_numbers<[1], [0], [0], [1], [0, 0, 1, 1], [], []>} : vector<2x64xbf16>, vector<64x32xbf16>, vector<2x32xf32> -> vector<2x32xf32>
    %145 = vector.extract_strided_slice %135 {offsets = [0, 2, 0], sizes = [2, 1, 64], strides = [1, 1, 1]} : vector<2x32x64xf32> to vector<2x1x64xf32>
    %146 = vector.shape_cast %145 : vector<2x1x64xf32> to vector<2x64xf32>
    %147 = vector.extract_strided_slice %135 {offsets = [0, 3, 0], sizes = [2, 1, 64], strides = [1, 1, 1]} : vector<2x32x64xf32> to vector<2x1x64xf32>
    %148 = vector.shape_cast %147 : vector<2x1x64xf32> to vector<2x64xf32>
    %149 = arith.maximumf %146, %148 : vector<2x64xf32>
    %150 = arith.truncf %149 : vector<2x64xf32> to vector<2x64xbf16>
    %c1_117 = arith.constant 1 : index
    %c0_118 = arith.constant 0 : index
    %c0_119 = arith.constant 0 : index
    %151 = vector.load %arg3[%c1_117, %c0_118, %c0_119] : memref<16x64x32xbf16, #tpu.memory_space<vmem>>, vector<1x64x32xbf16>
    %152 = vector.shape_cast %151 : vector<1x64x32xbf16> to vector<64x32xbf16>
    %cst_120 = arith.constant dense<0.000000e+00> : vector<2x32xf32>
    %153 = tpu.matmul %150, %152, %cst_120 {dimension_numbers = #tpu.dot_dimension_numbers<[1], [0], [0], [1], [0, 0, 1, 1], [], []>} : vector<2x64xbf16>, vector<64x32xbf16>, vector<2x32xf32> -> vector<2x32xf32>
    %154 = arith.addf %144, %153 : vector<2x32xf32>
    %155 = vector.extract_strided_slice %135 {offsets = [0, 4, 0], sizes = [2, 1, 64], strides = [1, 1, 1]} : vector<2x32x64xf32> to vector<2x1x64xf32>
    %156 = vector.shape_cast %155 : vector<2x1x64xf32> to vector<2x64xf32>
    %157 = vector.extract_strided_slice %135 {offsets = [0, 5, 0], sizes = [2, 1, 64], strides = [1, 1, 1]} : vector<2x32x64xf32> to vector<2x1x64xf32>
    %158 = vector.shape_cast %157 : vector<2x1x64xf32> to vector<2x64xf32>
    %159 = arith.maximumf %156, %158 : vector<2x64xf32>
    %160 = arith.truncf %159 : vector<2x64xf32> to vector<2x64xbf16>
    %c2_121 = arith.constant 2 : index
    %c0_122 = arith.constant 0 : index
    %c0_123 = arith.constant 0 : index
    %161 = vector.load %arg3[%c2_121, %c0_122, %c0_123] : memref<16x64x32xbf16, #tpu.memory_space<vmem>>, vector<1x64x32xbf16>
    %162 = vector.shape_cast %161 : vector<1x64x32xbf16> to vector<64x32xbf16>
    %cst_124 = arith.constant dense<0.000000e+00> : vector<2x32xf32>
    %163 = tpu.matmul %160, %162, %cst_124 {dimension_numbers = #tpu.dot_dimension_numbers<[1], [0], [0], [1], [0, 0, 1, 1], [], []>} : vector<2x64xbf16>, vector<64x32xbf16>, vector<2x32xf32> -> vector<2x32xf32>
    %164 = arith.addf %154, %163 : vector<2x32xf32>
    %165 = vector.extract_strided_slice %135 {offsets = [0, 6, 0], sizes = [2, 1, 64], strides = [1, 1, 1]} : vector<2x32x64xf32> to vector<2x1x64xf32>
    %166 = vector.shape_cast %165 : vector<2x1x64xf32> to vector<2x64xf32>
    %167 = vector.extract_strided_slice %135 {offsets = [0, 7, 0], sizes = [2, 1, 64], strides = [1, 1, 1]} : vector<2x32x64xf32> to vector<2x1x64xf32>
    %168 = vector.shape_cast %167 : vector<2x1x64xf32> to vector<2x64xf32>
    %169 = arith.maximumf %166, %168 : vector<2x64xf32>
    %170 = arith.truncf %169 : vector<2x64xf32> to vector<2x64xbf16>
    %c3_125 = arith.constant 3 : index
    %c0_126 = arith.constant 0 : index
    %c0_127 = arith.constant 0 : index
    %171 = vector.load %arg3[%c3_125, %c0_126, %c0_127] : memref<16x64x32xbf16, #tpu.memory_space<vmem>>, vector<1x64x32xbf16>
    %172 = vector.shape_cast %171 : vector<1x64x32xbf16> to vector<64x32xbf16>
    %cst_128 = arith.constant dense<0.000000e+00> : vector<2x32xf32>
    %173 = tpu.matmul %170, %172, %cst_128 {dimension_numbers = #tpu.dot_dimension_numbers<[1], [0], [0], [1], [0, 0, 1, 1], [], []>} : vector<2x64xbf16>, vector<64x32xbf16>, vector<2x32xf32> -> vector<2x32xf32>
    %174 = arith.addf %164, %173 : vector<2x32xf32>
    %175 = vector.extract_strided_slice %135 {offsets = [0, 8, 0], sizes = [2, 1, 64], strides = [1, 1, 1]} : vector<2x32x64xf32> to vector<2x1x64xf32>
    %176 = vector.shape_cast %175 : vector<2x1x64xf32> to vector<2x64xf32>
    %177 = vector.extract_strided_slice %135 {offsets = [0, 9, 0], sizes = [2, 1, 64], strides = [1, 1, 1]} : vector<2x32x64xf32> to vector<2x1x64xf32>
    %178 = vector.shape_cast %177 : vector<2x1x64xf32> to vector<2x64xf32>
    %179 = arith.maximumf %176, %178 : vector<2x64xf32>
    %180 = arith.truncf %179 : vector<2x64xf32> to vector<2x64xbf16>
    %c4_129 = arith.constant 4 : index
    %c0_130 = arith.constant 0 : index
    %c0_131 = arith.constant 0 : index
    %181 = vector.load %arg3[%c4_129, %c0_130, %c0_131] : memref<16x64x32xbf16, #tpu.memory_space<vmem>>, vector<1x64x32xbf16>
    %182 = vector.shape_cast %181 : vector<1x64x32xbf16> to vector<64x32xbf16>
    %cst_132 = arith.constant dense<0.000000e+00> : vector<2x32xf32>
    %183 = tpu.matmul %180, %182, %cst_132 {dimension_numbers = #tpu.dot_dimension_numbers<[1], [0], [0], [1], [0, 0, 1, 1], [], []>} : vector<2x64xbf16>, vector<64x32xbf16>, vector<2x32xf32> -> vector<2x32xf32>
    %184 = arith.addf %174, %183 : vector<2x32xf32>
    %185 = vector.extract_strided_slice %135 {offsets = [0, 10, 0], sizes = [2, 1, 64], strides = [1, 1, 1]} : vector<2x32x64xf32> to vector<2x1x64xf32>
    %186 = vector.shape_cast %185 : vector<2x1x64xf32> to vector<2x64xf32>
    %187 = vector.extract_strided_slice %135 {offsets = [0, 11, 0], sizes = [2, 1, 64], strides = [1, 1, 1]} : vector<2x32x64xf32> to vector<2x1x64xf32>
    %188 = vector.shape_cast %187 : vector<2x1x64xf32> to vector<2x64xf32>
    %189 = arith.maximumf %186, %188 : vector<2x64xf32>
    %190 = arith.truncf %189 : vector<2x64xf32> to vector<2x64xbf16>
    %c5 = arith.constant 5 : index
    %c0_133 = arith.constant 0 : index
    %c0_134 = arith.constant 0 : index
    %191 = vector.load %arg3[%c5, %c0_133, %c0_134] : memref<16x64x32xbf16, #tpu.memory_space<vmem>>, vector<1x64x32xbf16>
    %192 = vector.shape_cast %191 : vector<1x64x32xbf16> to vector<64x32xbf16>
    %cst_135 = arith.constant dense<0.000000e+00> : vector<2x32xf32>
    %193 = tpu.matmul %190, %192, %cst_135 {dimension_numbers = #tpu.dot_dimension_numbers<[1], [0], [0], [1], [0, 0, 1, 1], [], []>} : vector<2x64xbf16>, vector<64x32xbf16>, vector<2x32xf32> -> vector<2x32xf32>
    %194 = arith.addf %184, %193 : vector<2x32xf32>
    %195 = vector.extract_strided_slice %135 {offsets = [0, 12, 0], sizes = [2, 1, 64], strides = [1, 1, 1]} : vector<2x32x64xf32> to vector<2x1x64xf32>
    %196 = vector.shape_cast %195 : vector<2x1x64xf32> to vector<2x64xf32>
    %197 = vector.extract_strided_slice %135 {offsets = [0, 13, 0], sizes = [2, 1, 64], strides = [1, 1, 1]} : vector<2x32x64xf32> to vector<2x1x64xf32>
    %198 = vector.shape_cast %197 : vector<2x1x64xf32> to vector<2x64xf32>
    %199 = arith.maximumf %196, %198 : vector<2x64xf32>
    %200 = arith.truncf %199 : vector<2x64xf32> to vector<2x64xbf16>
    %c6 = arith.constant 6 : index
    %c0_136 = arith.constant 0 : index
    %c0_137 = arith.constant 0 : index
    %201 = vector.load %arg3[%c6, %c0_136, %c0_137] : memref<16x64x32xbf16, #tpu.memory_space<vmem>>, vector<1x64x32xbf16>
    %202 = vector.shape_cast %201 : vector<1x64x32xbf16> to vector<64x32xbf16>
    %cst_138 = arith.constant dense<0.000000e+00> : vector<2x32xf32>
    %203 = tpu.matmul %200, %202, %cst_138 {dimension_numbers = #tpu.dot_dimension_numbers<[1], [0], [0], [1], [0, 0, 1, 1], [], []>} : vector<2x64xbf16>, vector<64x32xbf16>, vector<2x32xf32> -> vector<2x32xf32>
    %204 = arith.addf %194, %203 : vector<2x32xf32>
    %205 = vector.extract_strided_slice %135 {offsets = [0, 14, 0], sizes = [2, 1, 64], strides = [1, 1, 1]} : vector<2x32x64xf32> to vector<2x1x64xf32>
    %206 = vector.shape_cast %205 : vector<2x1x64xf32> to vector<2x64xf32>
    %207 = vector.extract_strided_slice %135 {offsets = [0, 15, 0], sizes = [2, 1, 64], strides = [1, 1, 1]} : vector<2x32x64xf32> to vector<2x1x64xf32>
    %208 = vector.shape_cast %207 : vector<2x1x64xf32> to vector<2x64xf32>
    %209 = arith.maximumf %206, %208 : vector<2x64xf32>
    %210 = arith.truncf %209 : vector<2x64xf32> to vector<2x64xbf16>
    %c7 = arith.constant 7 : index
    %c0_139 = arith.constant 0 : index
    %c0_140 = arith.constant 0 : index
    %211 = vector.load %arg3[%c7, %c0_139, %c0_140] : memref<16x64x32xbf16, #tpu.memory_space<vmem>>, vector<1x64x32xbf16>
    %212 = vector.shape_cast %211 : vector<1x64x32xbf16> to vector<64x32xbf16>
    %cst_141 = arith.constant dense<0.000000e+00> : vector<2x32xf32>
    %213 = tpu.matmul %210, %212, %cst_141 {dimension_numbers = #tpu.dot_dimension_numbers<[1], [0], [0], [1], [0, 0, 1, 1], [], []>} : vector<2x64xbf16>, vector<64x32xbf16>, vector<2x32xf32> -> vector<2x32xf32>
    %214 = arith.addf %204, %213 : vector<2x32xf32>
    %215 = vector.extract_strided_slice %135 {offsets = [0, 16, 0], sizes = [2, 1, 64], strides = [1, 1, 1]} : vector<2x32x64xf32> to vector<2x1x64xf32>
    %216 = vector.shape_cast %215 : vector<2x1x64xf32> to vector<2x64xf32>
    %217 = vector.extract_strided_slice %135 {offsets = [0, 17, 0], sizes = [2, 1, 64], strides = [1, 1, 1]} : vector<2x32x64xf32> to vector<2x1x64xf32>
    %218 = vector.shape_cast %217 : vector<2x1x64xf32> to vector<2x64xf32>
    %219 = arith.maximumf %216, %218 : vector<2x64xf32>
    %220 = arith.truncf %219 : vector<2x64xf32> to vector<2x64xbf16>
    %c8 = arith.constant 8 : index
    %c0_142 = arith.constant 0 : index
    %c0_143 = arith.constant 0 : index
    %221 = vector.load %arg3[%c8, %c0_142, %c0_143] : memref<16x64x32xbf16, #tpu.memory_space<vmem>>, vector<1x64x32xbf16>
    %222 = vector.shape_cast %221 : vector<1x64x32xbf16> to vector<64x32xbf16>
    %cst_144 = arith.constant dense<0.000000e+00> : vector<2x32xf32>
    %223 = tpu.matmul %220, %222, %cst_144 {dimension_numbers = #tpu.dot_dimension_numbers<[1], [0], [0], [1], [0, 0, 1, 1], [], []>} : vector<2x64xbf16>, vector<64x32xbf16>, vector<2x32xf32> -> vector<2x32xf32>
    %224 = arith.addf %214, %223 : vector<2x32xf32>
    %225 = vector.extract_strided_slice %135 {offsets = [0, 18, 0], sizes = [2, 1, 64], strides = [1, 1, 1]} : vector<2x32x64xf32> to vector<2x1x64xf32>
    %226 = vector.shape_cast %225 : vector<2x1x64xf32> to vector<2x64xf32>
    %227 = vector.extract_strided_slice %135 {offsets = [0, 19, 0], sizes = [2, 1, 64], strides = [1, 1, 1]} : vector<2x32x64xf32> to vector<2x1x64xf32>
    %228 = vector.shape_cast %227 : vector<2x1x64xf32> to vector<2x64xf32>
    %229 = arith.maximumf %226, %228 : vector<2x64xf32>
    %230 = arith.truncf %229 : vector<2x64xf32> to vector<2x64xbf16>
    %c9 = arith.constant 9 : index
    %c0_145 = arith.constant 0 : index
    %c0_146 = arith.constant 0 : index
    %231 = vector.load %arg3[%c9, %c0_145, %c0_146] : memref<16x64x32xbf16, #tpu.memory_space<vmem>>, vector<1x64x32xbf16>
    %232 = vector.shape_cast %231 : vector<1x64x32xbf16> to vector<64x32xbf16>
    %cst_147 = arith.constant dense<0.000000e+00> : vector<2x32xf32>
    %233 = tpu.matmul %230, %232, %cst_147 {dimension_numbers = #tpu.dot_dimension_numbers<[1], [0], [0], [1], [0, 0, 1, 1], [], []>} : vector<2x64xbf16>, vector<64x32xbf16>, vector<2x32xf32> -> vector<2x32xf32>
    %234 = arith.addf %224, %233 : vector<2x32xf32>
    %235 = vector.extract_strided_slice %135 {offsets = [0, 20, 0], sizes = [2, 1, 64], strides = [1, 1, 1]} : vector<2x32x64xf32> to vector<2x1x64xf32>
    %236 = vector.shape_cast %235 : vector<2x1x64xf32> to vector<2x64xf32>
    %237 = vector.extract_strided_slice %135 {offsets = [0, 21, 0], sizes = [2, 1, 64], strides = [1, 1, 1]} : vector<2x32x64xf32> to vector<2x1x64xf32>
    %238 = vector.shape_cast %237 : vector<2x1x64xf32> to vector<2x64xf32>
    %239 = arith.maximumf %236, %238 : vector<2x64xf32>
    %240 = arith.truncf %239 : vector<2x64xf32> to vector<2x64xbf16>
    %c10 = arith.constant 10 : index
    %c0_148 = arith.constant 0 : index
    %c0_149 = arith.constant 0 : index
    %241 = vector.load %arg3[%c10, %c0_148, %c0_149] : memref<16x64x32xbf16, #tpu.memory_space<vmem>>, vector<1x64x32xbf16>
    %242 = vector.shape_cast %241 : vector<1x64x32xbf16> to vector<64x32xbf16>
    %cst_150 = arith.constant dense<0.000000e+00> : vector<2x32xf32>
    %243 = tpu.matmul %240, %242, %cst_150 {dimension_numbers = #tpu.dot_dimension_numbers<[1], [0], [0], [1], [0, 0, 1, 1], [], []>} : vector<2x64xbf16>, vector<64x32xbf16>, vector<2x32xf32> -> vector<2x32xf32>
    %244 = arith.addf %234, %243 : vector<2x32xf32>
    %245 = vector.extract_strided_slice %135 {offsets = [0, 22, 0], sizes = [2, 1, 64], strides = [1, 1, 1]} : vector<2x32x64xf32> to vector<2x1x64xf32>
    %246 = vector.shape_cast %245 : vector<2x1x64xf32> to vector<2x64xf32>
    %247 = vector.extract_strided_slice %135 {offsets = [0, 23, 0], sizes = [2, 1, 64], strides = [1, 1, 1]} : vector<2x32x64xf32> to vector<2x1x64xf32>
    %248 = vector.shape_cast %247 : vector<2x1x64xf32> to vector<2x64xf32>
    %249 = arith.maximumf %246, %248 : vector<2x64xf32>
    %250 = arith.truncf %249 : vector<2x64xf32> to vector<2x64xbf16>
    %c11 = arith.constant 11 : index
    %c0_151 = arith.constant 0 : index
    %c0_152 = arith.constant 0 : index
    %251 = vector.load %arg3[%c11, %c0_151, %c0_152] : memref<16x64x32xbf16, #tpu.memory_space<vmem>>, vector<1x64x32xbf16>
    %252 = vector.shape_cast %251 : vector<1x64x32xbf16> to vector<64x32xbf16>
    %cst_153 = arith.constant dense<0.000000e+00> : vector<2x32xf32>
    %253 = tpu.matmul %250, %252, %cst_153 {dimension_numbers = #tpu.dot_dimension_numbers<[1], [0], [0], [1], [0, 0, 1, 1], [], []>} : vector<2x64xbf16>, vector<64x32xbf16>, vector<2x32xf32> -> vector<2x32xf32>
    %254 = arith.addf %244, %253 : vector<2x32xf32>
    %255 = vector.extract_strided_slice %135 {offsets = [0, 24, 0], sizes = [2, 1, 64], strides = [1, 1, 1]} : vector<2x32x64xf32> to vector<2x1x64xf32>
    %256 = vector.shape_cast %255 : vector<2x1x64xf32> to vector<2x64xf32>
    %257 = vector.extract_strided_slice %135 {offsets = [0, 25, 0], sizes = [2, 1, 64], strides = [1, 1, 1]} : vector<2x32x64xf32> to vector<2x1x64xf32>
    %258 = vector.shape_cast %257 : vector<2x1x64xf32> to vector<2x64xf32>
    %259 = arith.maximumf %256, %258 : vector<2x64xf32>
    %260 = arith.truncf %259 : vector<2x64xf32> to vector<2x64xbf16>
    %c12 = arith.constant 12 : index
    %c0_154 = arith.constant 0 : index
    %c0_155 = arith.constant 0 : index
    %261 = vector.load %arg3[%c12, %c0_154, %c0_155] : memref<16x64x32xbf16, #tpu.memory_space<vmem>>, vector<1x64x32xbf16>
    %262 = vector.shape_cast %261 : vector<1x64x32xbf16> to vector<64x32xbf16>
    %cst_156 = arith.constant dense<0.000000e+00> : vector<2x32xf32>
    %263 = tpu.matmul %260, %262, %cst_156 {dimension_numbers = #tpu.dot_dimension_numbers<[1], [0], [0], [1], [0, 0, 1, 1], [], []>} : vector<2x64xbf16>, vector<64x32xbf16>, vector<2x32xf32> -> vector<2x32xf32>
    %264 = arith.addf %254, %263 : vector<2x32xf32>
    %265 = vector.extract_strided_slice %135 {offsets = [0, 26, 0], sizes = [2, 1, 64], strides = [1, 1, 1]} : vector<2x32x64xf32> to vector<2x1x64xf32>
    %266 = vector.shape_cast %265 : vector<2x1x64xf32> to vector<2x64xf32>
    %267 = vector.extract_strided_slice %135 {offsets = [0, 27, 0], sizes = [2, 1, 64], strides = [1, 1, 1]} : vector<2x32x64xf32> to vector<2x1x64xf32>
    %268 = vector.shape_cast %267 : vector<2x1x64xf32> to vector<2x64xf32>
    %269 = arith.maximumf %266, %268 : vector<2x64xf32>
    %270 = arith.truncf %269 : vector<2x64xf32> to vector<2x64xbf16>
    %c13 = arith.constant 13 : index
    %c0_157 = arith.constant 0 : index
    %c0_158 = arith.constant 0 : index
    %271 = vector.load %arg3[%c13, %c0_157, %c0_158] : memref<16x64x32xbf16, #tpu.memory_space<vmem>>, vector<1x64x32xbf16>
    %272 = vector.shape_cast %271 : vector<1x64x32xbf16> to vector<64x32xbf16>
    %cst_159 = arith.constant dense<0.000000e+00> : vector<2x32xf32>
    %273 = tpu.matmul %270, %272, %cst_159 {dimension_numbers = #tpu.dot_dimension_numbers<[1], [0], [0], [1], [0, 0, 1, 1], [], []>} : vector<2x64xbf16>, vector<64x32xbf16>, vector<2x32xf32> -> vector<2x32xf32>
    %274 = arith.addf %264, %273 : vector<2x32xf32>
    %275 = vector.extract_strided_slice %135 {offsets = [0, 28, 0], sizes = [2, 1, 64], strides = [1, 1, 1]} : vector<2x32x64xf32> to vector<2x1x64xf32>
    %276 = vector.shape_cast %275 : vector<2x1x64xf32> to vector<2x64xf32>
    %277 = vector.extract_strided_slice %135 {offsets = [0, 29, 0], sizes = [2, 1, 64], strides = [1, 1, 1]} : vector<2x32x64xf32> to vector<2x1x64xf32>
    %278 = vector.shape_cast %277 : vector<2x1x64xf32> to vector<2x64xf32>
    %279 = arith.maximumf %276, %278 : vector<2x64xf32>
    %280 = arith.truncf %279 : vector<2x64xf32> to vector<2x64xbf16>
    %c14 = arith.constant 14 : index
    %c0_160 = arith.constant 0 : index
    %c0_161 = arith.constant 0 : index
    %281 = vector.load %arg3[%c14, %c0_160, %c0_161] : memref<16x64x32xbf16, #tpu.memory_space<vmem>>, vector<1x64x32xbf16>
    %282 = vector.shape_cast %281 : vector<1x64x32xbf16> to vector<64x32xbf16>
    %cst_162 = arith.constant dense<0.000000e+00> : vector<2x32xf32>
    %283 = tpu.matmul %280, %282, %cst_162 {dimension_numbers = #tpu.dot_dimension_numbers<[1], [0], [0], [1], [0, 0, 1, 1], [], []>} : vector<2x64xbf16>, vector<64x32xbf16>, vector<2x32xf32> -> vector<2x32xf32>
    %284 = arith.addf %274, %283 : vector<2x32xf32>
    %285 = vector.extract_strided_slice %135 {offsets = [0, 30, 0], sizes = [2, 1, 64], strides = [1, 1, 1]} : vector<2x32x64xf32> to vector<2x1x64xf32>
    %286 = vector.shape_cast %285 : vector<2x1x64xf32> to vector<2x64xf32>
    %287 = vector.extract_strided_slice %135 {offsets = [0, 31, 0], sizes = [2, 1, 64], strides = [1, 1, 1]} : vector<2x32x64xf32> to vector<2x1x64xf32>
    %288 = vector.shape_cast %287 : vector<2x1x64xf32> to vector<2x64xf32>
    %289 = arith.maximumf %286, %288 : vector<2x64xf32>
    %290 = arith.truncf %289 : vector<2x64xf32> to vector<2x64xbf16>
    %c15 = arith.constant 15 : index
    %c0_163 = arith.constant 0 : index
    %c0_164 = arith.constant 0 : index
    %291 = vector.load %arg3[%c15, %c0_163, %c0_164] : memref<16x64x32xbf16, #tpu.memory_space<vmem>>, vector<1x64x32xbf16>
    %292 = vector.shape_cast %291 : vector<1x64x32xbf16> to vector<64x32xbf16>
    %cst_165 = arith.constant dense<0.000000e+00> : vector<2x32xf32>
    %293 = tpu.matmul %290, %292, %cst_165 {dimension_numbers = #tpu.dot_dimension_numbers<[1], [0], [0], [1], [0, 0, 1, 1], [], []>} : vector<2x64xbf16>, vector<64x32xbf16>, vector<2x32xf32> -> vector<2x32xf32>
    %294 = arith.addf %284, %293 : vector<2x32xf32>
    %c0_166 = arith.constant 0 : index
    %c0_167 = arith.constant 0 : index
    %295 = vector.load %arg9[%c0_166, %c0_167] : memref<2x32xf32, #tpu.memory_space<vmem>>, vector<2x32xf32>
    tpu.vector_store %arg9[%c0_166, %c0_167], %294 {strides = array<i32>} : memref<2x32xf32, #tpu.memory_space<vmem>>, vector<2x32xf32>,
    return
  }
}

</mosaic_0001>

<llo_original>
// kernel: deep_svdd_forward.1
$region0: #{deep_svdd_forward.1}
  #allocation0 [shape = 'u32[]', space=smem, size = 0x4, offset = 0x4, fixed_abs, tag = 'smem constant byte address 0x4 - core index']
  #allocation1 [shape = 'u32[72,128]{1,0:T(1,128)}', space=vmem, size = 0x9000, scoped, tag = 'internal scratch']
  #allocation2 [shape = 'bf16[2,68,64]{2,1,0:T(8,128)(2,1)}', space=vmem, size = 0x9000, scoped, tag = 'scratch operand']
  #allocation3 [shape = 'bf16[2,36,256]{2,1,0:T(8,128)(2,1)}', space=vmem, size = 0xa000, scoped, tag = 'scratch operand']
  %s0 = inlined_call_operand.vmem [shape: bf16[2,64,64], index: 0, kind: input, shape index: {}]
  %s1 = inlined_call_operand.vmem [shape: bf16[320,512], index: 1, kind: input, shape index: {}]
  %s2 = inlined_call_operand.vmem [shape: bf16[5,256,128], index: 2, kind: input, shape index: {}]
  %s3 = inlined_call_operand.vmem [shape: bf16[16,64,32], index: 3, kind: input, shape index: {}]
  %s4 = inlined_call_operand.vmem [shape: bf16[64,64], index: 4, kind: input, shape index: {}]
  %s5 = inlined_call_operand.vmem [shape: f32[512,8], index: 5, kind: input, shape index: {}]
  %s6 = inlined_call_operand.vmem [shape: f32[8,512], index: 6, kind: input, shape index: {}]
  %s7 = inlined_call_operand.vmem [shape: f32[128,4], index: 7, kind: input, shape index: {}]
  %s8 = inlined_call_operand.vmem [shape: f32[4,128], index: 8, kind: input, shape index: {}]
  %s9 = inlined_call_operand.hbm [shape: f32[2,32], index: 9, kind: output, shape index: {}]
  %s10 = sld [smem:[#allocation0]]
  $region46: #{deep_svdd_forward.1} parent=0
    _
  %s12 = ssub.s32 1, %s10
  %s13 = scalar_select 0, %s12, %s10
  $region1: #{deep_svdd_forward.1} parent=0
    #allocation4 [shape = 'u8[1024]{0}', space=vmem, size = 0x400, scoped, tag = 'output window, operand 0, single buffered']
    #allocation5 [shape = 's32[1]{0}', space=sflag, size = 0x4, scoped, tag = 'scoped memory for deep_svdd_forward.1']
    %14 = vsyncpa [#allocation5], 0
    // Predicated region
    $region2: #{deep_svdd_forward.1} parent=1 // pred_check
      _
    $region3: #{deep_svdd_forward.1} parent=1 // pred_check_branch
      %16 = sbr.rel (0) target = $region5
    $region4: #{deep_svdd_forward.1} parent=1 // pred_region
      _
    $region5: #{deep_svdd_forward.1} parent=1 // pred_fallthru
      _
    // Predicated region
    $region6: #{deep_svdd_forward.1} parent=1 // pred_check
      _
    $region7: #{deep_svdd_forward.1} parent=1 // pred_check_branch
      %18 = sbr.rel (0) target = $region9
    $region8: #{deep_svdd_forward.1} parent=1 // pred_region
      _
    $region9: #{deep_svdd_forward.1} parent=1 // pred_fallthru
      _
    // Predicated region
    $region10: #{deep_svdd_forward.1} parent=1 // pred_check
      _
    $region11: #{deep_svdd_forward.1} parent=1 // pred_check_branch
      %20 = sbr.rel (0) target = $region13
    $region12: #{deep_svdd_forward.1} parent=1 // pred_region
      _
    $region13: #{deep_svdd_forward.1} parent=1 // pred_fallthru
      _
    // Predicated region
    $region14: #{deep_svdd_forward.1} parent=1 // pred_check
      _
    $region15: #{deep_svdd_forward.1} parent=1 // pred_check_branch
      %22 = sbr.rel (0) target = $region17
    $region16: #{deep_svdd_forward.1} parent=1 // pred_region
      _
    $region17: #{deep_svdd_forward.1} parent=1 // pred_fallthru
      _
    // Predicated region
    $region18: #{deep_svdd_forward.1} parent=1 // pred_check
      _
    $region19: #{deep_svdd_forward.1} parent=1 // pred_check_branch
      %24 = sbr.rel (0) target = $region21
    $region20: #{deep_svdd_forward.1} parent=1 // pred_region
      _
    $region21: #{deep_svdd_forward.1} parent=1 // pred_fallthru
      _
    // Predicated region
    $region22: #{deep_svdd_forward.1} parent=1 // pred_check
      _
    $region23: #{deep_svdd_forward.1} parent=1 // pred_check_branch
      %26 = sbr.rel (0) target = $region25
    $region24: #{deep_svdd_forward.1} parent=1 // pred_region
      _
    $region25: #{deep_svdd_forward.1} parent=1 // pred_fallthru
      _
    // Predicated region
    $region26: #{deep_svdd_forward.1} parent=1 // pred_check
      _
    $region27: #{deep_svdd_forward.1} parent=1 // pred_check_branch
      %28 = sbr.rel (0) target = $region29
    $region28: #{deep_svdd_forward.1} parent=1 // pred_region
      _
    $region29: #{deep_svdd_forward.1} parent=1 // pred_fallthru
      _
    // Predicated region
    $region30: #{deep_svdd_forward.1} parent=1 // pred_check
      _
    $region31: #{deep_svdd_forward.1} parent=1 // pred_check_branch
      %30 = sbr.rel (0) target = $region33
    $region32: #{deep_svdd_forward.1} parent=1 // pred_region
      _
    $region33: #{deep_svdd_forward.1} parent=1 // pred_fallthru
      _
    // Predicated region
    $region34: #{deep_svdd_forward.1} parent=1 // pred_check
      _
    $region35: #{deep_svdd_forward.1} parent=1 // pred_check_branch
      %32 = sbr.rel (0) target = $region37
    $region36: #{deep_svdd_forward.1} parent=1 // pred_region
      _
    $region37: #{deep_svdd_forward.1} parent=1 // pred_fallthru
      _
    %vm34 = vcmask 516096
    %35 = vst.msk [vmem:[#allocation2] sm:$0x1] %vm34, 0
    %36 = vst.msk [vmem:[#allocation2 + $0x24] sm:$0x1] %vm34, 0
    %vm37 = vcmask 517121
    %38 = vst.msk [vmem:[#allocation2 + $0x20] sm:$0x2] %vm37, 0
    %39 = vst.msk [vmem:[#allocation2 + $0x44] sm:$0x2] %vm37, 0
    %v40 = vld [vmem:[%s0] sm:$0xf]
    %v41 = vld [vmem:[%s0 + $0x4] sm:$0xf]
    %v42 = vld [vmem:[%s0 + $0x8] sm:$0xf]
    %v43 = vld [vmem:[%s0 + $0xc] sm:$0xf]
    %v44 = vld [vmem:[%s0 + $0x10] sm:$0xf]
    %v45 = vld [vmem:[%s0 + $0x14] sm:$0xf]
    %v46 = vld [vmem:[%s0 + $0x18] sm:$0xf]
    %v47 = vld [vmem:[%s0 + $0x1c] sm:$0xf]
    %v48 = vld [vmem:[%s0 + $0x20] sm:$0xf]
    %v49 = vld [vmem:[%s0 + $0x24] sm:$0xf]
    %v50 = vld [vmem:[%s0 + $0x28] sm:$0xf]
    %v51 = vld [vmem:[%s0 + $0x2c] sm:$0xf]
    %v52 = vld [vmem:[%s0 + $0x30] sm:$0xf]
    %v53 = vld [vmem:[%s0 + $0x34] sm:$0xf]
    %v54 = vld [vmem:[%s0 + $0x38] sm:$0xf]
    %v55 = vld [vmem:[%s0 + $0x3c] sm:$0xf]
    %vm72 = vcmask 1040384
    %vm73 = vcmask 1044484
    %vm74 = vmor %vm72, %vm73
    %v75 = vrot.slane %v40, 7
    %v76 = vrot.slane %v75, 4
    %v77 = vrot.slane %v41, 7
    %v78 = vsel %vm74, %v76, %v77
    %v79 = vrot.slane %v77, 4
    %v80 = vrot.slane %v42, 7
    %v81 = vsel %vm74, %v79, %v80
    %v82 = vrot.slane %v80, 4
    %v83 = vrot.slane %v43, 7
    %v84 = vsel %vm74, %v82, %v83
    %v85 = vrot.slane %v83, 4
    %v86 = vrot.slane %v44, 7
    %v87 = vsel %vm74, %v85, %v86
    %v88 = vrot.slane %v86, 4
    %v89 = vrot.slane %v45, 7
    %v90 = vsel %vm74, %v88, %v89
    %v91 = vrot.slane %v89, 4
    %v92 = vrot.slane %v46, 7
    %v93 = vsel %vm74, %v91, %v92
    %v94 = vrot.slane %v92, 4
    %v95 = vrot.slane %v47, 7
    %v96 = vsel %vm74, %v94, %v95
    %v97 = vrot.slane %v95, 4
    %v98 = vrot.slane %v48, 7
    %v99 = vrot.slane %v98, 4
    %v100 = vrot.slane %v49, 7
    %v101 = vsel %vm74, %v99, %v100
    %v102 = vrot.slane %v100, 4
    %v103 = vrot.slane %v50, 7
    %v104 = vsel %vm74, %v102, %v103
    %v105 = vrot.slane %v103, 4
    %v106 = vrot.slane %v51, 7
    %v107 = vsel %vm74, %v105, %v106
    %v108 = vrot.slane %v106, 4
    %v109 = vrot.slane %v52, 7
    %v110 = vsel %vm74, %v108, %v109
    %v111 = vrot.slane %v109, 4
    %v112 = vrot.slane %v53, 7
    %v113 = vsel %vm74, %v111, %v112
    %v114 = vrot.slane %v112, 4
    %v115 = vrot.slane %v54, 7
    %v116 = vsel %vm74, %v114, %v115
    %v117 = vrot.slane %v115, 4
    %v118 = vrot.slane %v55, 7
    %v119 = vsel %vm74, %v117, %v118
    %v120 = vrot.slane %v118, 4
    %vm139 = vcmask 519169
    %140 = vst.msk [vmem:[#allocation2] sm:$0xe] %vm139, %v75
    %vm141 = vcmask 519168
    %142 = vst.msk [vmem:[#allocation2 + $0x4] sm:$0xf] %vm141, %v78
    %143 = vst.msk [vmem:[#allocation2 + $0x8] sm:$0xf] %vm141, %v81
    %144 = vst.msk [vmem:[#allocation2 + $0xc] sm:$0xf] %vm141, %v84
    %145 = vst.msk [vmem:[#allocation2 + $0x10] sm:$0xf] %vm141, %v87
    %146 = vst.msk [vmem:[#allocation2 + $0x14] sm:$0xf] %vm141, %v90
    %147 = vst.msk [vmem:[#allocation2 + $0x18] sm:$0xf] %vm141, %v93
    %148 = vst.msk [vmem:[#allocation2 + $0x1c] sm:$0xf] %vm141, %v96
    %149 = vst.msk [vmem:[#allocation2 + $0x20] sm:$0x1] %vm34, %v97
    %150 = vst.msk [vmem:[#allocation2 + $0x24] sm:$0xe] %vm139, %v98
    %151 = vst.msk [vmem:[#allocation2 + $0x28] sm:$0xf] %vm141, %v101
    %152 = vst.msk [vmem:[#allocation2 + $0x2c] sm:$0xf] %vm141, %v104
    %153 = vst.msk [vmem:[#allocation2 + $0x30] sm:$0xf] %vm141, %v107
    %154 = vst.msk [vmem:[#allocation2 + $0x34] sm:$0xf] %vm141, %v110
    %155 = vst.msk [vmem:[#allocation2 + $0x38] sm:$0xf] %vm141, %v113
    %156 = vst.msk [vmem:[#allocation2 + $0x3c] sm:$0xf] %vm141, %v116
    %157 = vst.msk [vmem:[#allocation2 + $0x40] sm:$0xf] %vm141, %v119
    %158 = vst.msk [vmem:[#allocation2 + $0x44] sm:$0x1] %vm34, %v120
    %v159 = vld [vmem:[#allocation2] sm:$0xf]
    %v160 = vld [vmem:[#allocation2 + $0x4] sm:$0xf]
    %v161 = vld [vmem:[#allocation2 + $0x8] sm:$0xf]
    %v162 = vld [vmem:[#allocation2 + $0xc] sm:$0xf]
    %v163 = vld [vmem:[#allocation2 + $0x10] sm:$0xf]
    %v164 = vld [vmem:[#allocation2 + $0x14] sm:$0xf]
    %v165 = vld [vmem:[#allocation2 + $0x18] sm:$0xf]
    %v166 = vld [vmem:[#allocation2 + $0x1c] sm:$0xf]
    %v167 = vld [vmem:[#allocation2 + $0x24] sm:$0xf]
    %v168 = vld [vmem:[#allocation2 + $0x28] sm:$0xf]
    %v169 = vld [vmem:[#allocation2 + $0x2c] sm:$0xf]
    %v170 = vld [vmem:[#allocation2 + $0x30] sm:$0xf]
    %v171 = vld [vmem:[#allocation2 + $0x34] sm:$0xf]
    %v172 = vld [vmem:[#allocation2 + $0x38] sm:$0xf]
    %v173 = vld [vmem:[#allocation2 + $0x3c] sm:$0xf]
    %v174 = vld [vmem:[#allocation2 + $0x40] sm:$0xf]
    %v175 = vld [vmem:[#allocation2 + $0x20] sm:$0x1]
    %v176 = vld [vmem:[#allocation2 + $0x44] sm:$0x1]
    %vm177 = vsmask.f32 3328
    %vm178 = vsmask.f32 7440
    %vm179 = vmor %vm177, %vm178
    %v181 = vshrl.u32 %v159, 16
    %v183 = vrot.slane %v181, 4
    %v184 = vshll.u32 %v159, 16
    %v186 = vrot.slane %v184, 5
    %v187 = vor.u32 %v183, %v186
    %v188 = vrot.slane %v187, 4
    %v190 = vshll.u32 %v160, 16
    %v192 = vrot.slane %v190, 5
    %v193 = vsel %vm179, %v188, %v192
    %v194 = vshrl.u32 %v160, 16
    %v196 = vrot.slane %v194, 4
    %v197 = vor.u32 %v196, %v192
    %v198 = vrot.slane %v197, 4
    %v200 = vshll.u32 %v161, 16
    %v202 = vrot.slane %v200, 5
    %v203 = vsel %vm179, %v198, %v202
    %v204 = vshrl.u32 %v161, 16
    %v206 = vrot.slane %v204, 4
    %v207 = vor.u32 %v206, %v202
    %v208 = vrot.slane %v207, 4
    %v210 = vshll.u32 %v162, 16
    %v212 = vrot.slane %v210, 5
    %v213 = vsel %vm179, %v208, %v212
    %v214 = vshrl.u32 %v162, 16
    %v216 = vrot.slane %v214, 4
    %v217 = vor.u32 %v216, %v212
    %v218 = vrot.slane %v217, 4
    %v220 = vshll.u32 %v163, 16
    %v222 = vrot.slane %v220, 5
    %v223 = vsel %vm179, %v218, %v222
    %v224 = vshrl.u32 %v163, 16
    %v226 = vrot.slane %v224, 4
    %v227 = vor.u32 %v226, %v222
    %v228 = vrot.slane %v227, 4
    %v230 = vshll.u32 %v164, 16
    %v232 = vrot.slane %v230, 5
    %v233 = vsel %vm179, %v228, %v232
    %v234 = vshrl.u32 %v164, 16
    %v236 = vrot.slane %v234, 4
    %v237 = vor.u32 %v236, %v232
    %v238 = vrot.slane %v237, 4
    %v240 = vshll.u32 %v165, 16
    %v242 = vrot.slane %v240, 5
    %v243 = vsel %vm179, %v238, %v242
    %v244 = vshrl.u32 %v165, 16
    %v246 = vrot.slane %v244, 4
    %v247 = vor.u32 %v246, %v242
    %v248 = vrot.slane %v247, 4
    %v250 = vshll.u32 %v166, 16
    %v252 = vrot.slane %v250, 5
    %v253 = vsel %vm179, %v248, %v252
    %v254 = vshrl.u32 %v166, 16
    %v256 = vrot.slane %v254, 4
    %v257 = vor.u32 %v256, %v252
    %v258 = vrot.slane %v257, 4
    %v260 = vshll.u32 %v175, 16
    %v262 = vrot.slane %v260, 5
    %v263 = vsel %vm179, %v258, %v262
    %v265 = vshrl.u32 %v167, 16
    %v267 = vrot.slane %v265, 4
    %v268 = vshll.u32 %v167, 16
    %v270 = vrot.slane %v268, 5
    %v271 = vor.u32 %v267, %v270
    %v272 = vrot.slane %v271, 4
    %v274 = vshll.u32 %v168, 16
    %v276 = vrot.slane %v274, 5
    %v277 = vsel %vm179, %v272, %v276
    %v278 = vshrl.u32 %v168, 16
    %v280 = vrot.slane %v278, 4
    %v281 = vor.u32 %v280, %v276
    %v282 = vrot.slane %v281, 4
    %v284 = vshll.u32 %v169, 16
    %v286 = vrot.slane %v284, 5
    %v287 = vsel %vm179, %v282, %v286
    %v288 = vshrl.u32 %v169, 16
    %v290 = vrot.slane %v288, 4
    %v291 = vor.u32 %v290, %v286
    %v292 = vrot.slane %v291, 4
    %v294 = vshll.u32 %v170, 16
    %v296 = vrot.slane %v294, 5
    %v297 = vsel %vm179, %v292, %v296
    %v298 = vshrl.u32 %v170, 16
    %v300 = vrot.slane %v298, 4
    %v301 = vor.u32 %v300, %v296
    %v302 = vrot.slane %v301, 4
    %v304 = vshll.u32 %v171, 16
    %v306 = vrot.slane %v304, 5
    %v307 = vsel %vm179, %v302, %v306
    %v308 = vshrl.u32 %v171, 16
    %v310 = vrot.slane %v308, 4
    %v311 = vor.u32 %v310, %v306
    %v312 = vrot.slane %v311, 4
    %v314 = vshll.u32 %v172, 16
    %v316 = vrot.slane %v314, 5
    %v317 = vsel %vm179, %v312, %v316
    %v318 = vshrl.u32 %v172, 16
    %v320 = vrot.slane %v318, 4
    %v321 = vor.u32 %v320, %v316
    %v322 = vrot.slane %v321, 4
    %v324 = vshll.u32 %v173, 16
    %v326 = vrot.slane %v324, 5
    %v327 = vsel %vm179, %v322, %v326
    %v328 = vshrl.u32 %v173, 16
    %v330 = vrot.slane %v328, 4
    %v331 = vor.u32 %v330, %v326
    %v332 = vrot.slane %v331, 4
    %v334 = vshll.u32 %v174, 16
    %v336 = vrot.slane %v334, 5
    %v337 = vsel %vm179, %v332, %v336
    %v338 = vshrl.u32 %v174, 16
    %v340 = vrot.slane %v338, 4
    %v341 = vor.u32 %v340, %v336
    %v342 = vrot.slane %v341, 4
    %v344 = vshll.u32 %v176, 16
    %v346 = vrot.slane %v344, 5
    %v347 = vsel %vm179, %v342, %v346
    %v348 = vld [vmem:[#allocation2] sm:$0xe]
    %v349 = vld [vmem:[#allocation2 + $0x24] sm:$0xe]
    %vm368 = vcmask 1042432
    %vm369 = vcmask 1046532
    %vm370 = vmor %vm368, %vm369
    %v371 = vrot.slane %v348, 5
    %v372 = vrot.slane %v371, 4
    %v373 = vrot.slane %v160, 5
    %v374 = vsel %vm370, %v372, %v373
    %v375 = vrot.slane %v373, 4
    %v376 = vrot.slane %v161, 5
    %v377 = vsel %vm370, %v375, %v376
    %v378 = vrot.slane %v376, 4
    %v379 = vrot.slane %v162, 5
    %v380 = vsel %vm370, %v378, %v379
    %v381 = vrot.slane %v379, 4
    %v382 = vrot.slane %v163, 5
    %v383 = vsel %vm370, %v381, %v382
    %v384 = vrot.slane %v382, 4
    %v385 = vrot.slane %v164, 5
    %v386 = vsel %vm370, %v384, %v385
    %v387 = vrot.slane %v385, 4
    %v388 = vrot.slane %v165, 5
    %v389 = vsel %vm370, %v387, %v388
    %v390 = vrot.slane %v388, 4
    %v391 = vrot.slane %v166, 5
    %v392 = vsel %vm370, %v390, %v391
    %v393 = vrot.slane %v391, 4
    %v394 = vrot.slane %v175, 5
    %v395 = vsel %vm370, %v393, %v394
    %v396 = vrot.slane %v349, 5
    %v397 = vrot.slane %v396, 4
    %v398 = vrot.slane %v168, 5
    %v399 = vsel %vm370, %v397, %v398
    %v400 = vrot.slane %v398, 4
    %v401 = vrot.slane %v169, 5
    %v402 = vsel %vm370, %v400, %v401
    %v403 = vrot.slane %v401, 4
    %v404 = vrot.slane %v170, 5
    %v405 = vsel %vm370, %v403, %v404
    %v406 = vrot.slane %v404, 4
    %v407 = vrot.slane %v171, 5
    %v408 = vsel %vm370, %v406, %v407
    %v409 = vrot.slane %v407, 4
    %v410 = vrot.slane %v172, 5
    %v411 = vsel %vm370, %v409, %v410
    %v412 = vrot.slane %v410, 4
    %v413 = vrot.slane %v173, 5
    %v414 = vsel %vm370, %v412, %v413
    %v415 = vrot.slane %v413, 4
    %v416 = vrot.slane %v174, 5
    %v417 = vsel %vm370, %v415, %v416
    %v418 = vrot.slane %v416, 4
    %v419 = vrot.slane %v176, 5
    %v420 = vsel %vm370, %v418, %v419
    %v421 = vld [vmem:[#allocation2 + $0x20] sm:$0x3]
    %v422 = vld [vmem:[#allocation2 + $0x44] sm:$0x3]
    %vm423 = vsmask.f32 2304
    %vm424 = vsmask.f32 6416
    %vm425 = vmor %vm423, %vm424
    %v427 = vshrl.u32 %v348, 16
    %v429 = vrot.slane %v427, 5
    %v430 = vshll.u32 %v348, 16
    %v432 = vrot.slane %v430, 6
    %v433 = vor.u32 %v429, %v432
    %v434 = vrot.slane %v433, 4
    %v435 = vrot.slane %v194, 5
    %v436 = vrot.slane %v190, 6
    %v437 = vor.u32 %v435, %v436
    %v438 = vsel %vm425, %v434, %v437
    %v439 = vrot.slane %v437, 4
    %v440 = vrot.slane %v204, 5
    %v441 = vrot.slane %v200, 6
    %v442 = vor.u32 %v440, %v441
    %v443 = vsel %vm425, %v439, %v442
    %v444 = vrot.slane %v442, 4
    %v445 = vrot.slane %v214, 5
    %v446 = vrot.slane %v210, 6
    %v447 = vor.u32 %v445, %v446
    %v448 = vsel %vm425, %v444, %v447
    %v449 = vrot.slane %v447, 4
    %v450 = vrot.slane %v224, 5
    %v451 = vrot.slane %v220, 6
    %v452 = vor.u32 %v450, %v451
    %v453 = vsel %vm425, %v449, %v452
    %v454 = vrot.slane %v452, 4
    %v455 = vrot.slane %v234, 5
    %v456 = vrot.slane %v230, 6
    %v457 = vor.u32 %v455, %v456
    %v458 = vsel %vm425, %v454, %v457
    %v459 = vrot.slane %v457, 4
    %v460 = vrot.slane %v244, 5
    %v461 = vrot.slane %v240, 6
    %v462 = vor.u32 %v460, %v461
    %v463 = vsel %vm425, %v459, %v462
    %v464 = vrot.slane %v462, 4
    %v465 = vrot.slane %v254, 5
    %v466 = vrot.slane %v250, 6
    %v467 = vor.u32 %v465, %v466
    %v468 = vsel %vm425, %v464, %v467
    %v469 = vrot.slane %v467, 4
    %v471 = vshrl.u32 %v421, 16
    %v473 = vrot.slane %v471, 5
    %v474 = vshll.u32 %v421, 16
    %v476 = vrot.slane %v474, 6
    %v477 = vor.u32 %v473, %v476
    %v478 = vsel %vm425, %v469, %v477
    %v480 = vshrl.u32 %v349, 16
    %v482 = vrot.slane %v480, 5
    %v483 = vshll.u32 %v349, 16
    %v485 = vrot.slane %v483, 6
    %v486 = vor.u32 %v482, %v485
    %v487 = vrot.slane %v486, 4
    %v488 = vrot.slane %v278, 5
    %v489 = vrot.slane %v274, 6
    %v490 = vor.u32 %v488, %v489
    %v491 = vsel %vm425, %v487, %v490
    %v492 = vrot.slane %v490, 4
    %v493 = vrot.slane %v288, 5
    %v494 = vrot.slane %v284, 6
    %v495 = vor.u32 %v493, %v494
    %v496 = vsel %vm425, %v492, %v495
    %v497 = vrot.slane %v495, 4
    %v498 = vrot.slane %v298, 5
    %v499 = vrot.slane %v294, 6
    %v500 = vor.u32 %v498, %v499
    %v501 = vsel %vm425, %v497, %v500
    %v502 = vrot.slane %v500, 4
    %v503 = vrot.slane %v308, 5
    %v504 = vrot.slane %v304, 6
    %v505 = vor.u32 %v503, %v504
    %v506 = vsel %vm425, %v502, %v505
    %v507 = vrot.slane %v505, 4
    %v508 = vrot.slane %v318, 5
    %v509 = vrot.slane %v314, 6
    %v510 = vor.u32 %v508, %v509
    %v511 = vsel %vm425, %v507, %v510
    %v512 = vrot.slane %v510, 4
    %v513 = vrot.slane %v328, 5
    %v514 = vrot.slane %v324, 6
    %v515 = vor.u32 %v513, %v514
    %v516 = vsel %vm425, %v512, %v515
    %v517 = vrot.slane %v515, 4
    %v518 = vrot.slane %v338, 5
    %v519 = vrot.slane %v334, 6
    %v520 = vor.u32 %v518, %v519
    %v521 = vsel %vm425, %v517, %v520
    %v522 = vrot.slane %v520, 4
    %v524 = vshrl.u32 %v422, 16
    %v526 = vrot.slane %v524, 5
    %v527 = vshll.u32 %v422, 16
    %v529 = vrot.slane %v527, 6
    %v530 = vor.u32 %v526, %v529
    %v531 = vsel %vm425, %v522, %v530
    %v532 = vld [vmem:[#allocation2] sm:$0xc]
    %v533 = vld [vmem:[#allocation2 + $0x24] sm:$0xc]
    %vm538 = vcmask 1041408
    %vm539 = vcmask 1045508
    %vm540 = vmor %vm538, %vm539
    %v541 = vrot.slane %v532, 6
    %v542 = vrot.slane %v541, 4
    %v543 = vrot.slane %v160, 6
    %v544 = vsel %vm540, %v542, %v543
    %v545 = vrot.slane %v543, 4
    %v546 = vrot.slane %v161, 6
    %v547 = vsel %vm540, %v545, %v546
    %v548 = vrot.slane %v546, 4
    %v549 = vrot.slane %v162, 6
    %v550 = vsel %vm540, %v548, %v549
    %v551 = vrot.slane %v549, 4
    %v552 = vrot.slane %v163, 6
    %v553 = vsel %vm540, %v551, %v552
    %v554 = vrot.slane %v552, 4
    %v555 = vrot.slane %v164, 6
    %v556 = vsel %vm540, %v554, %v555
    %v557 = vrot.slane %v555, 4
    %v558 = vrot.slane %v165, 6
    %v559 = vsel %vm540, %v557, %v558
    %v560 = vrot.slane %v558, 4
    %v561 = vrot.slane %v166, 6
    %v562 = vsel %vm540, %v560, %v561
    %v563 = vrot.slane %v561, 4
    %v564 = vrot.slane %v421, 6
    %v565 = vsel %vm540, %v563, %v564
    %v566 = vrot.slane %v533, 6
    %v567 = vrot.slane %v566, 4
    %v568 = vrot.slane %v168, 6
    %v569 = vsel %vm540, %v567, %v568
    %v570 = vrot.slane %v568, 4
    %v571 = vrot.slane %v169, 6
    %v572 = vsel %vm540, %v570, %v571
    %v573 = vrot.slane %v571, 4
    %v574 = vrot.slane %v170, 6
    %v575 = vsel %vm540, %v573, %v574
    %v576 = vrot.slane %v574, 4
    %v577 = vrot.slane %v171, 6
    %v578 = vsel %vm540, %v576, %v577
    %v579 = vrot.slane %v577, 4
    %v580 = vrot.slane %v172, 6
    %v581 = vsel %vm540, %v579, %v580
    %v582 = vrot.slane %v580, 4
    %v583 = vrot.slane %v173, 6
    %v584 = vsel %vm540, %v582, %v583
    %v585 = vrot.slane %v583, 4
    %v586 = vrot.slane %v174, 6
    %v587 = vsel %vm540, %v585, %v586
    %v588 = vrot.slane %v586, 4
    %v589 = vrot.slane %v422, 6
    %v590 = vsel %vm540, %v588, %v589
    %v593 = vunpack.c.l.b16 %v159
    %v594 = vunpack.c.l.b16 %v160
    %v595 = vunpack.c.l.b16 %v161
    %v596 = vunpack.c.l.b16 %v162
    %v597 = vunpack.c.l.b16 %v163
    %v598 = vunpack.c.l.b16 %v164
    %v599 = vunpack.c.l.b16 %v165
    %v600 = vunpack.c.l.b16 %v166
    %v601 = vunpack.c.l.b16 %v167
    %v602 = vunpack.c.l.b16 %v168
    %v603 = vunpack.c.l.b16 %v169
    %v604 = vunpack.c.l.b16 %v170
    %v605 = vunpack.c.l.b16 %v171
    %v606 = vunpack.c.l.b16 %v172
    %v607 = vunpack.c.l.b16 %v173
    %v608 = vunpack.c.l.b16 %v174
    %v609 = vpack.c.b16 %v594, %v593
    %v610 = vpack.c.b16 %v596, %v595
    %v611 = vpack.c.b16 %v598, %v597
    %v612 = vpack.c.b16 %v600, %v599
    %v613 = vpack.c.b16 %v602, %v601
    %v614 = vpack.c.b16 %v604, %v603
    %v615 = vpack.c.b16 %v606, %v605
    %v616 = vpack.c.b16 %v608, %v607
    %v617 = vunpack.c.l.b16 %v193
    %v618 = vunpack.c.l.b16 %v203
    %v619 = vunpack.c.l.b16 %v213
    %v620 = vunpack.c.l.b16 %v223
    %v621 = vunpack.c.l.b16 %v233
    %v622 = vunpack.c.l.b16 %v243
    %v623 = vunpack.c.l.b16 %v253
    %v624 = vunpack.c.l.b16 %v263
    %v625 = vunpack.c.l.b16 %v277
    %v626 = vunpack.c.l.b16 %v287
    %v627 = vunpack.c.l.b16 %v297
    %v628 = vunpack.c.l.b16 %v307
    %v629 = vunpack.c.l.b16 %v317
    %v630 = vunpack.c.l.b16 %v327
    %v631 = vunpack.c.l.b16 %v337
    %v632 = vunpack.c.l.b16 %v347
    %v633 = vpack.c.b16 %v618, %v617
    %v634 = vpack.c.b16 %v620, %v619
    %v635 = vpack.c.b16 %v622, %v621
    %v636 = vpack.c.b16 %v624, %v623
    %v637 = vpack.c.b16 %v626, %v625
    %v638 = vpack.c.b16 %v628, %v627
    %v639 = vpack.c.b16 %v630, %v629
    %v640 = vpack.c.b16 %v632, %v631
    %641 = vrot.lane.b32.xlu0 %v633, 64
    %v642 = vpop.permute.xlu0 %641
    %643 = vrot.lane.b32.xlu0 %v634, 64
    %v644 = vpop.permute.xlu0 %643
    %645 = vrot.lane.b32.xlu0 %v635, 64
    %v646 = vpop.permute.xlu0 %645
    %647 = vrot.lane.b32.xlu0 %v636, 64
    %v648 = vpop.permute.xlu0 %647
    %649 = vrot.lane.b32.xlu0 %v637, 64
    %v650 = vpop.permute.xlu0 %649
    %651 = vrot.lane.b32.xlu0 %v638, 64
    %v652 = vpop.permute.xlu0 %651
    %653 = vrot.lane.b32.xlu0 %v639, 64
    %v654 = vpop.permute.xlu0 %653
    %655 = vrot.lane.b32.xlu0 %v640, 64
    %v656 = vpop.permute.xlu0 %655
    %v657 = vunpack.c.l.b16 %v374
    %v658 = vunpack.c.l.b16 %v377
    %v659 = vunpack.c.l.b16 %v380
    %v660 = vunpack.c.l.b16 %v383
    %v661 = vunpack.c.l.b16 %v386
    %v662 = vunpack.c.l.b16 %v389
    %v663 = vunpack.c.l.b16 %v392
    %v664 = vunpack.c.l.b16 %v395
    %v665 = vunpack.c.l.b16 %v399
    %v666 = vunpack.c.l.b16 %v402
    %v667 = vunpack.c.l.b16 %v405
    %v668 = vunpack.c.l.b16 %v408
    %v669 = vunpack.c.l.b16 %v411
    %v670 = vunpack.c.l.b16 %v414
    %v671 = vunpack.c.l.b16 %v417
    %v672 = vunpack.c.l.b16 %v420
    %v673 = vpack.c.b16 %v658, %v657
    %v674 = vpack.c.b16 %v660, %v659
    %v675 = vpack.c.b16 %v662, %v661
    %v676 = vpack.c.b16 %v664, %v663
    %v677 = vpack.c.b16 %v666, %v665
    %v678 = vpack.c.b16 %v668, %v667
    %v679 = vpack.c.b16 %v670, %v669
    %v680 = vpack.c.b16 %v672, %v671
    %v681 = vunpack.c.l.b16 %v438
    %v682 = vunpack.c.l.b16 %v443
    %v683 = vunpack.c.l.b16 %v448
    %v684 = vunpack.c.l.b16 %v453
    %v685 = vunpack.c.l.b16 %v458
    %v686 = vunpack.c.l.b16 %v463
    %v687 = vunpack.c.l.b16 %v468
    %v688 = vunpack.c.l.b16 %v478
    %v689 = vunpack.c.l.b16 %v491
    %v690 = vunpack.c.l.b16 %v496
    %v691 = vunpack.c.l.b16 %v501
    %v692 = vunpack.c.l.b16 %v506
    %v693 = vunpack.c.l.b16 %v511
    %v694 = vunpack.c.l.b16 %v516
    %v695 = vunpack.c.l.b16 %v521
    %v696 = vunpack.c.l.b16 %v531
    %v697 = vpack.c.b16 %v682, %v681
    %v698 = vpack.c.b16 %v684, %v683
    %v699 = vpack.c.b16 %v686, %v685
    %v700 = vpack.c.b16 %v688, %v687
    %v701 = vpack.c.b16 %v690, %v689
    %v702 = vpack.c.b16 %v692, %v691
    %v703 = vpack.c.b16 %v694, %v693
    %v704 = vpack.c.b16 %v696, %v695
    %705 = vrot.lane.b32.xlu0 %v697, 64
    %v706 = vpop.permute.xlu0 %705
    %707 = vrot.lane.b32.xlu0 %v698, 64
    %v708 = vpop.permute.xlu0 %707
    %709 = vrot.lane.b32.xlu0 %v699, 64
    %v710 = vpop.permute.xlu0 %709
    %711 = vrot.lane.b32.xlu0 %v700, 64
    %v712 = vpop.permute.xlu0 %711
    %713 = vrot.lane.b32.xlu0 %v701, 64
    %v714 = vpop.permute.xlu0 %713
    %715 = vrot.lane.b32.xlu0 %v702, 64
    %v716 = vpop.permute.xlu0 %715
    %717 = vrot.lane.b32.xlu0 %v703, 64
    %v718 = vpop.permute.xlu0 %717
    %719 = vrot.lane.b32.xlu0 %v704, 64
    %v720 = vpop.permute.xlu0 %719
    %v721 = vunpack.c.l.b16 %v544
    %v722 = vunpack.c.l.b16 %v547
    %v723 = vunpack.c.l.b16 %v550
    %v724 = vunpack.c.l.b16 %v553
    %v725 = vunpack.c.l.b16 %v556
    %v726 = vunpack.c.l.b16 %v559
    %v727 = vunpack.c.l.b16 %v562
    %v728 = vunpack.c.l.b16 %v565
    %v729 = vunpack.c.l.b16 %v569
    %v730 = vunpack.c.l.b16 %v572
    %v731 = vunpack.c.l.b16 %v575
    %v732 = vunpack.c.l.b16 %v578
    %v733 = vunpack.c.l.b16 %v581
    %v734 = vunpack.c.l.b16 %v584
    %v735 = vunpack.c.l.b16 %v587
    %v736 = vunpack.c.l.b16 %v590
    %v737 = vpack.c.b16 %v722, %v721
    %v738 = vpack.c.b16 %v724, %v723
    %v739 = vpack.c.b16 %v726, %v725
    %v740 = vpack.c.b16 %v728, %v727
    %v741 = vpack.c.b16 %v730, %v729
    %v742 = vpack.c.b16 %v732, %v731
    %v743 = vpack.c.b16 %v734, %v733
    %v744 = vpack.c.b16 %v736, %v735
    %vm745 = vcmask 523264
    %v748 = vsel %vm745, %v609, %v642
    %v752 = vsel %vm745, %v610, %v644
    %v756 = vsel %vm745, %v611, %v646
    %v760 = vsel %vm745, %v612, %v648
    %v764 = vsel %vm745, %v613, %v650
    %v768 = vsel %vm745, %v614, %v652
    %v772 = vsel %vm745, %v615, %v654
    %v776 = vsel %vm745, %v616, %v656
    %v780 = vsel %vm745, %v673, %v706
    %v784 = vsel %vm745, %v674, %v708
    %v788 = vsel %vm745, %v675, %v710
    %v792 = vsel %vm745, %v676, %v712
    %v796 = vsel %vm745, %v677, %v714
    %v800 = vsel %vm745, %v678, %v716
    %v804 = vsel %vm745, %v679, %v718
    %v808 = vsel %vm745, %v680, %v720
    %v810 = vld [vmem:[%s1] sm:$0xff]
    %v811 = vld [vmem:[%s1 + $0x8] sm:$0xff]
    %v812 = vld [vmem:[%s1 + $0x10] sm:$0xff]
    %v813 = vld [vmem:[%s1 + $0x18] sm:$0xff]
    %v814 = vld [vmem:[%s1 + $0x20] sm:$0xff]
    %v815 = vld [vmem:[%s1 + $0x28] sm:$0xff]
    %v816 = vld [vmem:[%s1 + $0x30] sm:$0xff]
    %v817 = vld [vmem:[%s1 + $0x38] sm:$0xff]
    %v818 = vld [vmem:[%s1 + $0x40] sm:$0xff]
    %v819 = vld [vmem:[%s1 + $0x48] sm:$0xff]
    %v820 = vld [vmem:[%s1 + $0x50] sm:$0xff]
    %v821 = vld [vmem:[%s1 + $0x58] sm:$0xff]
    %v822 = vld [vmem:[%s1 + $0x60] sm:$0xff]
    %v823 = vld [vmem:[%s1 + $0x68] sm:$0xff]
    %v824 = vld [vmem:[%s1 + $0x70] sm:$0xff]
    %v825 = vld [vmem:[%s1 + $0x78] sm:$0xff]
    %v826 = vld [vmem:[%s1 + $0x80] sm:$0xff]
    %v827 = vld [vmem:[%s1 + $0x88] sm:$0xff]
    %v828 = vld [vmem:[%s1 + $0x90] sm:$0xff]
    %v829 = vld [vmem:[%s1 + $0x98] sm:$0xff]
    %v830 = vld [vmem:[%s1 + $0xa0] sm:$0xff]
    %v831 = vld [vmem:[%s1 + $0xa8] sm:$0xff]
    %v832 = vld [vmem:[%s1 + $0xb0] sm:$0xff]
    %v833 = vld [vmem:[%s1 + $0xb8] sm:$0xff]
    %v834 = vld [vmem:[%s1 + $0xc0] sm:$0xff]
    %v835 = vld [vmem:[%s1 + $0xc8] sm:$0xff]
    %v836 = vld [vmem:[%s1 + $0xd0] sm:$0xff]
    %v837 = vld [vmem:[%s1 + $0xd8] sm:$0xff]
    %v838 = vld [vmem:[%s1 + $0xe0] sm:$0xff]
    %v839 = vld [vmem:[%s1 + $0xe8] sm:$0xff]
    %v840 = vld [vmem:[%s1 + $0xf0] sm:$0xff]
    %v841 = vld [vmem:[%s1 + $0xf8] sm:$0xff]
    %v842 = vld [vmem:[%s1 + $0x100] sm:$0xff]
    %v843 = vld [vmem:[%s1 + $0x108] sm:$0xff]
    %v844 = vld [vmem:[%s1 + $0x110] sm:$0xff]
    %v845 = vld [vmem:[%s1 + $0x118] sm:$0xff]
    %v846 = vld [vmem:[%s1 + $0x120] sm:$0xff]
    %v847 = vld [vmem:[%s1 + $0x128] sm:$0xff]
    %v848 = vld [vmem:[%s1 + $0x130] sm:$0xff]
    %v849 = vld [vmem:[%s1 + $0x138] sm:$0xff]
    %v850 = vld [vmem:[%s1 + $0x140] sm:$0xff]
    %v851 = vld [vmem:[%s1 + $0x148] sm:$0xff]
    %v852 = vld [vmem:[%s1 + $0x150] sm:$0xff]
    %v853 = vld [vmem:[%s1 + $0x158] sm:$0xff]
    %v854 = vld [vmem:[%s1 + $0x160] sm:$0xff]
    %v855 = vld [vmem:[%s1 + $0x168] sm:$0xff]
    %v856 = vld [vmem:[%s1 + $0x170] sm:$0xff]
    %v857 = vld [vmem:[%s1 + $0x178] sm:$0xff]
    %v858 = vld [vmem:[%s1 + $0x180] sm:$0xff]
    %v859 = vld [vmem:[%s1 + $0x188] sm:$0xff]
    %v860 = vld [vmem:[%s1 + $0x190] sm:$0xff]
    %v861 = vld [vmem:[%s1 + $0x198] sm:$0xff]
    %v862 = vld [vmem:[%s1 + $0x1a0] sm:$0xff]
    %v863 = vld [vmem:[%s1 + $0x1a8] sm:$0xff]
    %v864 = vld [vmem:[%s1 + $0x1b0] sm:$0xff]
    %v865 = vld [vmem:[%s1 + $0x1b8] sm:$0xff]
    %v866 = vld [vmem:[%s1 + $0x1c0] sm:$0xff]
    %v867 = vld [vmem:[%s1 + $0x1c8] sm:$0xff]
    %v868 = vld [vmem:[%s1 + $0x1d0] sm:$0xff]
    %v869 = vld [vmem:[%s1 + $0x1d8] sm:$0xff]
    %v870 = vld [vmem:[%s1 + $0x1e0] sm:$0xff]
    %v871 = vld [vmem:[%s1 + $0x1e8] sm:$0xff]
    %v872 = vld [vmem:[%s1 + $0x1f0] sm:$0xff]
    %v873 = vld [vmem:[%s1 + $0x1f8] sm:$0xff]
    %v874 = vld [vmem:[%s1 + $0x200] sm:$0xff]
    %v875 = vld [vmem:[%s1 + $0x208] sm:$0xff]
    %v876 = vld [vmem:[%s1 + $0x210] sm:$0xff]
    %v877 = vld [vmem:[%s1 + $0x218] sm:$0xff]
    %v878 = vld [vmem:[%s1 + $0x220] sm:$0xff]
    %v879 = vld [vmem:[%s1 + $0x228] sm:$0xff]
    %v880 = vld [vmem:[%s1 + $0x230] sm:$0xff]
    %v881 = vld [vmem:[%s1 + $0x238] sm:$0xff]
    %v882 = vld [vmem:[%s1 + $0x240] sm:$0xff]
    %v883 = vld [vmem:[%s1 + $0x248] sm:$0xff]
    %v884 = vld [vmem:[%s1 + $0x250] sm:$0xff]
    %v885 = vld [vmem:[%s1 + $0x258] sm:$0xff]
    %v886 = vld [vmem:[%s1 + $0x260] sm:$0xff]
    %v887 = vld [vmem:[%s1 + $0x268] sm:$0xff]
    %v888 = vld [vmem:[%s1 + $0x270] sm:$0xff]
    %v889 = vld [vmem:[%s1 + $0x278] sm:$0xff]
    %v970 = vunpack.c.l.b16 %v810
    %v971 = vunpack.c.h.b16 %v810
    %v972 = vunpack.c.l.b16 %v811
    %v973 = vunpack.c.h.b16 %v811
    %v974 = vunpack.c.l.b16 %v812
    %v975 = vunpack.c.h.b16 %v812
    %v976 = vunpack.c.l.b16 %v813
    %v977 = vunpack.c.h.b16 %v813
    %v978 = vunpack.c.l.b16 %v814
    %v979 = vunpack.c.h.b16 %v814
    %v980 = vunpack.c.l.b16 %v815
    %v981 = vunpack.c.h.b16 %v815
    %v982 = vunpack.c.l.b16 %v816
    %v983 = vunpack.c.h.b16 %v816
    %v984 = vunpack.c.l.b16 %v817
    %v985 = vunpack.c.h.b16 %v817
    %v986 = vunpack.c.l.b16 %v818
    %v987 = vunpack.c.h.b16 %v818
    %v988 = vunpack.c.l.b16 %v819
    %v989 = vunpack.c.h.b16 %v819
    %v990 = vunpack.c.l.b16 %v820
    %v991 = vunpack.c.h.b16 %v820
    %v992 = vunpack.c.l.b16 %v821
    %v993 = vunpack.c.h.b16 %v821
    %v994 = vunpack.c.l.b16 %v822
    %v995 = vunpack.c.h.b16 %v822
    %v996 = vunpack.c.l.b16 %v823
    %v997 = vunpack.c.h.b16 %v823
    %v998 = vunpack.c.l.b16 %v824
    %v999 = vunpack.c.h.b16 %v824
    %v1000 = vunpack.c.l.b16 %v825
    %v1001 = vunpack.c.h.b16 %v825
    %v1002 = vunpack.c.l.b16 %v826
    %v1003 = vunpack.c.h.b16 %v826
    %v1004 = vunpack.c.l.b16 %v827
    %v1005 = vunpack.c.h.b16 %v827
    %v1006 = vunpack.c.l.b16 %v828
    %v1007 = vunpack.c.h.b16 %v828
    %v1008 = vunpack.c.l.b16 %v829
    %v1009 = vunpack.c.h.b16 %v829
    %v1010 = vunpack.c.l.b16 %v830
    %v1011 = vunpack.c.h.b16 %v830
    %v1012 = vunpack.c.l.b16 %v831
    %v1013 = vunpack.c.h.b16 %v831
    %v1014 = vunpack.c.l.b16 %v832
    %v1015 = vunpack.c.h.b16 %v832
    %v1016 = vunpack.c.l.b16 %v833
    %v1017 = vunpack.c.h.b16 %v833
    %v1018 = vunpack.c.l.b16 %v834
    %v1019 = vunpack.c.h.b16 %v834
    %v1020 = vunpack.c.l.b16 %v835
    %v1021 = vunpack.c.h.b16 %v835
    %v1022 = vunpack.c.l.b16 %v836
    %v1023 = vunpack.c.h.b16 %v836
    %v1024 = vunpack.c.l.b16 %v837
    %v1025 = vunpack.c.h.b16 %v837
    %v1026 = vunpack.c.l.b16 %v838
    %v1027 = vunpack.c.h.b16 %v838
    %v1028 = vunpack.c.l.b16 %v839
    %v1029 = vunpack.c.h.b16 %v839
    %v1030 = vunpack.c.l.b16 %v840
    %v1031 = vunpack.c.h.b16 %v840
    %v1032 = vunpack.c.l.b16 %v841
    %v1033 = vunpack.c.h.b16 %v841
    %v1034 = vunpack.c.l.b16 %v842
    %v1035 = vunpack.c.h.b16 %v842
    %v1036 = vunpack.c.l.b16 %v843
    %v1037 = vunpack.c.h.b16 %v843
    %v1038 = vunpack.c.l.b16 %v844
    %v1039 = vunpack.c.h.b16 %v844
    %v1040 = vunpack.c.l.b16 %v845
    %v1041 = vunpack.c.h.b16 %v845
    %v1042 = vunpack.c.l.b16 %v846
    %v1043 = vunpack.c.h.b16 %v846
    %v1044 = vunpack.c.l.b16 %v847
    %v1045 = vunpack.c.h.b16 %v847
    %v1046 = vunpack.c.l.b16 %v848
    %v1047 = vunpack.c.h.b16 %v848
    %v1048 = vunpack.c.l.b16 %v849
    %v1049 = vunpack.c.h.b16 %v849
    %v1050 = vunpack.c.l.b16 %v850
    %v1051 = vunpack.c.h.b16 %v850
    %v1052 = vunpack.c.l.b16 %v851
    %v1053 = vunpack.c.h.b16 %v851
    %v1054 = vunpack.c.l.b16 %v852
    %v1055 = vunpack.c.h.b16 %v852
    %v1056 = vunpack.c.l.b16 %v853
    %v1057 = vunpack.c.h.b16 %v853
    %v1058 = vunpack.c.l.b16 %v854
    %v1059 = vunpack.c.h.b16 %v854
    %v1060 = vunpack.c.l.b16 %v855
    %v1061 = vunpack.c.h.b16 %v855
    %v1062 = vunpack.c.l.b16 %v856
    %v1063 = vunpack.c.h.b16 %v856
    %v1064 = vunpack.c.l.b16 %v857
    %v1065 = vunpack.c.h.b16 %v857
    %v1066 = vunpack.c.l.b16 %v858
    %v1067 = vunpack.c.h.b16 %v858
    %v1068 = vunpack.c.l.b16 %v859
    %v1069 = vunpack.c.h.b16 %v859
    %v1070 = vunpack.c.l.b16 %v860
    %v1071 = vunpack.c.h.b16 %v860
    %v1072 = vunpack.c.l.b16 %v861
    %v1073 = vunpack.c.h.b16 %v861
    %v1074 = vunpack.c.l.b16 %v862
    %v1075 = vunpack.c.h.b16 %v862
    %v1076 = vunpack.c.l.b16 %v863
    %v1077 = vunpack.c.h.b16 %v863
    %v1078 = vunpack.c.l.b16 %v864
    %v1079 = vunpack.c.h.b16 %v864
    %v1080 = vunpack.c.l.b16 %v865
    %v1081 = vunpack.c.h.b16 %v865
    %v1082 = vunpack.c.l.b16 %v866
    %v1083 = vunpack.c.h.b16 %v866
    %v1084 = vunpack.c.l.b16 %v867
    %v1085 = vunpack.c.h.b16 %v867
    %v1086 = vunpack.c.l.b16 %v868
    %v1087 = vunpack.c.h.b16 %v868
    %v1088 = vunpack.c.l.b16 %v869
    %v1089 = vunpack.c.h.b16 %v869
    %v1090 = vunpack.c.l.b16 %v870
    %v1091 = vunpack.c.h.b16 %v870
    %v1092 = vunpack.c.l.b16 %v871
    %v1093 = vunpack.c.h.b16 %v871
    %v1094 = vunpack.c.l.b16 %v872
    %v1095 = vunpack.c.h.b16 %v872
    %v1096 = vunpack.c.l.b16 %v873
    %v1097 = vunpack.c.h.b16 %v873
    %v1098 = vunpack.c.l.b16 %v874
    %v1099 = vunpack.c.h.b16 %v874
    %v1100 = vunpack.c.l.b16 %v875
    %v1101 = vunpack.c.h.b16 %v875
    %v1102 = vunpack.c.l.b16 %v876
    %v1103 = vunpack.c.h.b16 %v876
    %v1104 = vunpack.c.l.b16 %v877
    %v1105 = vunpack.c.h.b16 %v877
    %v1106 = vunpack.c.l.b16 %v878
    %v1107 = vunpack.c.h.b16 %v878
    %v1108 = vunpack.c.l.b16 %v879
    %v1109 = vunpack.c.h.b16 %v879
    %v1110 = vunpack.c.l.b16 %v880
    %v1111 = vunpack.c.h.b16 %v880
    %v1112 = vunpack.c.l.b16 %v881
    %v1113 = vunpack.c.h.b16 %v881
    %v1114 = vunpack.c.l.b16 %v882
    %v1115 = vunpack.c.h.b16 %v882
    %v1116 = vunpack.c.l.b16 %v883
    %v1117 = vunpack.c.h.b16 %v883
    %v1118 = vunpack.c.l.b16 %v884
    %v1119 = vunpack.c.h.b16 %v884
    %v1120 = vunpack.c.l.b16 %v885
    %v1121 = vunpack.c.h.b16 %v885
    %v1122 = vunpack.c.l.b16 %v886
    %v1123 = vunpack.c.h.b16 %v886
    %v1124 = vunpack.c.l.b16 %v887
    %v1125 = vunpack.c.h.b16 %v887
    %v1126 = vunpack.c.l.b16 %v888
    %v1127 = vunpack.c.h.b16 %v888
    %v1128 = vunpack.c.l.b16 %v889
    %v1129 = vunpack.c.h.b16 %v889
    %v1130 = vpack.c.b16 %v974, %v970
    %v1131 = vpack.c.b16 %v975, %v971
    %v1132 = vpack.c.b16 %v976, %v972
    %v1133 = vpack.c.b16 %v977, %v973
    %v1134 = vpack.c.b16 %v982, %v978
    %v1135 = vpack.c.b16 %v983, %v979
    %v1136 = vpack.c.b16 %v984, %v980
    %v1137 = vpack.c.b16 %v985, %v981
    %v1138 = vpack.c.b16 %v990, %v986
    %v1139 = vpack.c.b16 %v991, %v987
    %v1140 = vpack.c.b16 %v992, %v988
    %v1141 = vpack.c.b16 %v993, %v989
    %v1142 = vpack.c.b16 %v998, %v994
    %v1143 = vpack.c.b16 %v999, %v995
    %v1144 = vpack.c.b16 %v1000, %v996
    %v1145 = vpack.c.b16 %v1001, %v997
    %v1146 = vpack.c.b16 %v1006, %v1002
    %v1147 = vpack.c.b16 %v1007, %v1003
    %v1148 = vpack.c.b16 %v1008, %v1004
    %v1149 = vpack.c.b16 %v1009, %v1005
    %v1150 = vpack.c.b16 %v1014, %v1010
    %v1151 = vpack.c.b16 %v1015, %v1011
    %v1152 = vpack.c.b16 %v1016, %v1012
    %v1153 = vpack.c.b16 %v1017, %v1013
    %v1154 = vpack.c.b16 %v1022, %v1018
    %v1155 = vpack.c.b16 %v1023, %v1019
    %v1156 = vpack.c.b16 %v1024, %v1020
    %v1157 = vpack.c.b16 %v1025, %v1021
    %v1158 = vpack.c.b16 %v1030, %v1026
    %v1159 = vpack.c.b16 %v1031, %v1027
    %v1160 = vpack.c.b16 %v1032, %v1028
    %v1161 = vpack.c.b16 %v1033, %v1029
    %v1162 = vpack.c.b16 %v1038, %v1034
    %v1163 = vpack.c.b16 %v1039, %v1035
    %v1164 = vpack.c.b16 %v1040, %v1036
    %v1165 = vpack.c.b16 %v1041, %v1037
    %v1166 = vpack.c.b16 %v1046, %v1042
    %v1167 = vpack.c.b16 %v1047, %v1043
    %v1168 = vpack.c.b16 %v1048, %v1044
    %v1169 = vpack.c.b16 %v1049, %v1045
    %v1170 = vpack.c.b16 %v1054, %v1050
    %v1171 = vpack.c.b16 %v1055, %v1051
    %v1172 = vpack.c.b16 %v1056, %v1052
    %v1173 = vpack.c.b16 %v1057, %v1053
    %v1174 = vpack.c.b16 %v1062, %v1058
    %v1175 = vpack.c.b16 %v1063, %v1059
    %v1176 = vpack.c.b16 %v1064, %v1060
    %v1177 = vpack.c.b16 %v1065, %v1061
    %v1178 = vpack.c.b16 %v1070, %v1066
    %v1179 = vpack.c.b16 %v1071, %v1067
    %v1180 = vpack.c.b16 %v1072, %v1068
    %v1181 = vpack.c.b16 %v1073, %v1069
    %v1182 = vpack.c.b16 %v1078, %v1074
    %v1183 = vpack.c.b16 %v1079, %v1075
    %v1184 = vpack.c.b16 %v1080, %v1076
    %v1185 = vpack.c.b16 %v1081, %v1077
    %v1186 = vpack.c.b16 %v1086, %v1082
    %v1187 = vpack.c.b16 %v1087, %v1083
    %v1188 = vpack.c.b16 %v1088, %v1084
    %v1189 = vpack.c.b16 %v1089, %v1085
    %v1190 = vpack.c.b16 %v1094, %v1090
    %v1191 = vpack.c.b16 %v1095, %v1091
    %v1192 = vpack.c.b16 %v1096, %v1092
    %v1193 = vpack.c.b16 %v1097, %v1093
    %v1194 = vpack.c.b16 %v1102, %v1098
    %v1195 = vpack.c.b16 %v1103, %v1099
    %v1196 = vpack.c.b16 %v1104, %v1100
    %v1197 = vpack.c.b16 %v1105, %v1101
    %v1198 = vpack.c.b16 %v1110, %v1106
    %v1199 = vpack.c.b16 %v1111, %v1107
    %v1200 = vpack.c.b16 %v1112, %v1108
    %v1201 = vpack.c.b16 %v1113, %v1109
    %v1202 = vpack.c.b16 %v1118, %v1114
    %v1203 = vpack.c.b16 %v1119, %v1115
    %v1204 = vpack.c.b16 %v1120, %v1116
    %v1205 = vpack.c.b16 %v1121, %v1117
    %v1206 = vpack.c.b16 %v1126, %v1122
    %v1207 = vpack.c.b16 %v1127, %v1123
    %v1208 = vpack.c.b16 %v1128, %v1124
    %v1209 = vpack.c.b16 %v1129, %v1125
    %v1291 = vsel %vm745, %v737, 0
    %v1294 = vsel %vm745, %v738, 0
    %v1297 = vsel %vm745, %v739, 0
    %v1300 = vsel %vm745, %v740, 0
    %v1303 = vsel %vm745, %v741, 0
    %v1306 = vsel %vm745, %v742, 0
    %v1309 = vsel %vm745, %v743, 0
    %v1312 = vsel %vm745, %v744, 0
    %1314 = vmatpush.bf16.msra.mxu0 %v1158
    %1315 = vmatpush.bf16.msra.mxu0 %v1154
    %1316 = vmatpush.bf16.msra.mxu0 %v1150
    %1317 = vmatpush.bf16.msra.mxu0 %v1146
    %1318 = vmatpush.bf16.msra.mxu0 %v1142
    %1319 = vmatpush.bf16.msra.mxu0 %v1138
    %1320 = vmatpush.bf16.msra.mxu0 %v1134
    %1321 = vmatpush.bf16.msra.mxu0 %v1130
    %1322 = vmatmul.bf16.gmra.mxu0 %v748
    %v1323 = vpop.f32.mrf.mxu0
    %v1324 = vadd.f32 0.0, %v1323
    %v1325 = vpop.f32.mrf.mxu0
    %v1326 = vadd.f32 0.0, %v1325
    %1327 = vmatmul.bf16.gmra.mxu0 %v752
    %v1328 = vpop.f32.mrf.mxu0
    %v1329 = vadd.f32 0.0, %v1328
    %v1330 = vpop.f32.mrf.mxu0
    %v1331 = vadd.f32 0.0, %v1330
    %1332 = vmatmul.bf16.gmra.mxu0 %v756
    %v1333 = vpop.f32.mrf.mxu0
    %v1334 = vadd.f32 0.0, %v1333
    %v1335 = vpop.f32.mrf.mxu0
    %v1336 = vadd.f32 0.0, %v1335
    %1337 = vmatmul.bf16.gmra.mxu0 %v760
    %v1338 = vpop.f32.mrf.mxu0
    %v1339 = vadd.f32 0.0, %v1338
    %v1340 = vpop.f32.mrf.mxu0
    %v1341 = vadd.f32 0.0, %v1340
    %1342 = vmatmul.bf16.gmra.mxu0 %v764
    %v1343 = vpop.f32.mrf.mxu0
    %v1344 = vadd.f32 0.0, %v1343
    %v1345 = vpop.f32.mrf.mxu0
    %v1346 = vadd.f32 0.0, %v1345
    %1347 = vmatmul.bf16.gmra.mxu0 %v768
    %v1348 = vpop.f32.mrf.mxu0
    %v1349 = vadd.f32 0.0, %v1348
    %v1350 = vpop.f32.mrf.mxu0
    %v1351 = vadd.f32 0.0, %v1350
    %1352 = vmatmul.bf16.gmra.mxu0 %v772
    %v1353 = vpop.f32.mrf.mxu0
    %v1354 = vadd.f32 0.0, %v1353
    %v1355 = vpop.f32.mrf.mxu0
    %v1356 = vadd.f32 0.0, %v1355
    %1357 = vmatmul.bf16.gmra.mxu0 %v776
    %v1358 = vpop.f32.mrf.mxu0
    %v1359 = vadd.f32 0.0, %v1358
    %v1360 = vpop.f32.mrf.mxu0
    %v1361 = vadd.f32 0.0, %v1360
    %1362 = vdwg.mxu0
    %1363 = vmatpush.bf16.msra.mxu0 %v1190
    %1364 = vmatpush.bf16.msra.mxu0 %v1186
    %1365 = vmatpush.bf16.msra.mxu0 %v1182
    %1366 = vmatpush.bf16.msra.mxu0 %v1178
    %1367 = vmatpush.bf16.msra.mxu0 %v1174
    %1368 = vmatpush.bf16.msra.mxu0 %v1170
    %1369 = vmatpush.bf16.msra.mxu0 %v1166
    %1370 = vmatpush.bf16.msra.mxu0 %v1162
    %1371 = vmatmul.bf16.gmra.mxu0 %v780
    %v1372 = vpop.f32.mrf.mxu0
    %v1373 = vadd.f32 %v1324, %v1372
    %v1374 = vpop.f32.mrf.mxu0
    %v1375 = vadd.f32 %v1326, %v1374
    %1376 = vmatmul.bf16.gmra.mxu0 %v784
    %v1377 = vpop.f32.mrf.mxu0
    %v1378 = vadd.f32 %v1329, %v1377
    %v1379 = vpop.f32.mrf.mxu0
    %v1380 = vadd.f32 %v1331, %v1379
    %1381 = vmatmul.bf16.gmra.mxu0 %v788
    %v1382 = vpop.f32.mrf.mxu0
    %v1383 = vadd.f32 %v1334, %v1382
    %v1384 = vpop.f32.mrf.mxu0
    %v1385 = vadd.f32 %v1336, %v1384
    %1386 = vmatmul.bf16.gmra.mxu0 %v792
    %v1387 = vpop.f32.mrf.mxu0
    %v1388 = vadd.f32 %v1339, %v1387
    %v1389 = vpop.f32.mrf.mxu0
    %v1390 = vadd.f32 %v1341, %v1389
    %1391 = vmatmul.bf16.gmra.mxu0 %v796
    %v1392 = vpop.f32.mrf.mxu0
    %v1393 = vadd.f32 %v1344, %v1392
    %v1394 = vpop.f32.mrf.mxu0
    %v1395 = vadd.f32 %v1346, %v1394
    %1396 = vmatmul.bf16.gmra.mxu0 %v800
    %v1397 = vpop.f32.mrf.mxu0
    %v1398 = vadd.f32 %v1349, %v1397
    %v1399 = vpop.f32.mrf.mxu0
    %v1400 = vadd.f32 %v1351, %v1399
    %1401 = vmatmul.bf16.gmra.mxu0 %v804
    %v1402 = vpop.f32.mrf.mxu0
    %v1403 = vadd.f32 %v1354, %v1402
    %v1404 = vpop.f32.mrf.mxu0
    %v1405 = vadd.f32 %v1356, %v1404
    %1406 = vmatmul.bf16.gmra.mxu0 %v808
    %v1407 = vpop.f32.mrf.mxu0
    %v1408 = vadd.f32 %v1359, %v1407
    %v1409 = vpop.f32.mrf.mxu0
    %v1410 = vadd.f32 %v1361, %v1409
    %1411 = vdwg.mxu0
    %1412 = vmatpush.bf16.msra.mxu0 0
    %1413 = vmatpush.bf16.msra.mxu0 0
    %1414 = vmatpush.bf16.msra.mxu0 0
    %1415 = vmatpush.bf16.msra.mxu0 0
    %1416 = vmatpush.bf16.msra.mxu0 %v1206
    %1417 = vmatpush.bf16.msra.mxu0 %v1202
    %1418 = vmatpush.bf16.msra.mxu0 %v1198
    %1419 = vmatpush.bf16.msra.mxu0 %v1194
    %1420 = vmatmul.bf16.gmra.mxu0 %v1291
    %v1421 = vpop.f32.mrf.mxu0
    %v1422 = vadd.f32 %v1373, %v1421
    %v1423 = vpop.f32.mrf.mxu0
    %v1424 = vadd.f32 %v1375, %v1423
    %1425 = vmatmul.bf16.gmra.mxu0 %v1294
    %v1426 = vpop.f32.mrf.mxu0
    %v1427 = vadd.f32 %v1378, %v1426
    %v1428 = vpop.f32.mrf.mxu0
    %v1429 = vadd.f32 %v1380, %v1428
    %1430 = vmatmul.bf16.gmra.mxu0 %v1297
    %v1431 = vpop.f32.mrf.mxu0
    %v1432 = vadd.f32 %v1383, %v1431
    %v1433 = vpop.f32.mrf.mxu0
    %v1434 = vadd.f32 %v1385, %v1433
    %1435 = vmatmul.bf16.gmra.mxu0 %v1300
    %v1436 = vpop.f32.mrf.mxu0
    %v1437 = vadd.f32 %v1388, %v1436
    %v1438 = vpop.f32.mrf.mxu0
    %v1439 = vadd.f32 %v1390, %v1438
    %1440 = vmatmul.bf16.gmra.mxu0 %v1303
    %v1441 = vpop.f32.mrf.mxu0
    %v1442 = vadd.f32 %v1393, %v1441
    %v1443 = vpop.f32.mrf.mxu0
    %v1444 = vadd.f32 %v1395, %v1443
    %1445 = vmatmul.bf16.gmra.mxu0 %v1306
    %v1446 = vpop.f32.mrf.mxu0
    %v1447 = vadd.f32 %v1398, %v1446
    %v1448 = vpop.f32.mrf.mxu0
    %v1449 = vadd.f32 %v1400, %v1448
    %1450 = vmatmul.bf16.gmra.mxu0 %v1309
    %v1451 = vpop.f32.mrf.mxu0
    %v1452 = vadd.f32 %v1403, %v1451
    %v1453 = vpop.f32.mrf.mxu0
    %v1454 = vadd.f32 %v1405, %v1453
    %1455 = vmatmul.bf16.gmra.mxu0 %v1312
    %v1456 = vpop.f32.mrf.mxu0
    %v1457 = vadd.f32 %v1408, %v1456
    %v1458 = vpop.f32.mrf.mxu0
    %v1459 = vadd.f32 %v1410, %v1458
    %1460 = vdwg.mxu0
    %1461 = vmatpush.bf16.msra.mxu0 %v1159
    %1462 = vmatpush.bf16.msra.mxu0 %v1155
    %1463 = vmatpush.bf16.msra.mxu0 %v1151
    %1464 = vmatpush.bf16.msra.mxu0 %v1147
    %1465 = vmatpush.bf16.msra.mxu0 %v1143
    %1466 = vmatpush.bf16.msra.mxu0 %v1139
    %1467 = vmatpush.bf16.msra.mxu0 %v1135
    %1468 = vmatpush.bf16.msra.mxu0 %v1131
    %1469 = vmatmul.bf16.gmra.mxu0 %v748
    %v1470 = vpop.f32.mrf.mxu0
    %v1471 = vadd.f32 0.0, %v1470
    %v1472 = vpop.f32.mrf.mxu0
    %v1473 = vadd.f32 0.0, %v1472
    %1474 = vmatmul.bf16.gmra.mxu0 %v752
    %v1475 = vpop.f32.mrf.mxu0
    %v1476 = vadd.f32 0.0, %v1475
    %v1477 = vpop.f32.mrf.mxu0
    %v1478 = vadd.f32 0.0, %v1477
    %1479 = vmatmul.bf16.gmra.mxu0 %v756
    %v1480 = vpop.f32.mrf.mxu0
    %v1481 = vadd.f32 0.0, %v1480
    %v1482 = vpop.f32.mrf.mxu0
    %v1483 = vadd.f32 0.0, %v1482
    %1484 = vmatmul.bf16.gmra.mxu0 %v760
    %v1485 = vpop.f32.mrf.mxu0
    %v1486 = vadd.f32 0.0, %v1485
    %v1487 = vpop.f32.mrf.mxu0
    %v1488 = vadd.f32 0.0, %v1487
    %1489 = vmatmul.bf16.gmra.mxu0 %v764
    %v1490 = vpop.f32.mrf.mxu0
    %v1491 = vadd.f32 0.0, %v1490
    %v1492 = vpop.f32.mrf.mxu0
    %v1493 = vadd.f32 0.0, %v1492
    %1494 = vmatmul.bf16.gmra.mxu0 %v768
    %v1495 = vpop.f32.mrf.mxu0
    %v1496 = vadd.f32 0.0, %v1495
    %v1497 = vpop.f32.mrf.mxu0
    %v1498 = vadd.f32 0.0, %v1497
    %1499 = vmatmul.bf16.gmra.mxu0 %v772
    %v1500 = vpop.f32.mrf.mxu0
    %v1501 = vadd.f32 0.0, %v1500
    %v1502 = vpop.f32.mrf.mxu0
    %v1503 = vadd.f32 0.0, %v1502
    %1504 = vmatmul.bf16.gmra.mxu0 %v776
    %v1505 = vpop.f32.mrf.mxu0
    %v1506 = vadd.f32 0.0, %v1505
    %v1507 = vpop.f32.mrf.mxu0
    %v1508 = vadd.f32 0.0, %v1507
    %1509 = vdwg.mxu0
    %1510 = vmatpush.bf16.msra.mxu0 %v1191
    %1511 = vmatpush.bf16.msra.mxu0 %v1187
    %1512 = vmatpush.bf16.msra.mxu0 %v1183
    %1513 = vmatpush.bf16.msra.mxu0 %v1179
    %1514 = vmatpush.bf16.msra.mxu0 %v1175
    %1515 = vmatpush.bf16.msra.mxu0 %v1171
    %1516 = vmatpush.bf16.msra.mxu0 %v1167
    %1517 = vmatpush.bf16.msra.mxu0 %v1163
    %1518 = vmatmul.bf16.gmra.mxu0 %v780
    %v1519 = vpop.f32.mrf.mxu0
    %v1520 = vadd.f32 %v1471, %v1519
    %v1521 = vpop.f32.mrf.mxu0
    %v1522 = vadd.f32 %v1473, %v1521
    %1523 = vmatmul.bf16.gmra.mxu0 %v784
    %v1524 = vpop.f32.mrf.mxu0
    %v1525 = vadd.f32 %v1476, %v1524
    %v1526 = vpop.f32.mrf.mxu0
    %v1527 = vadd.f32 %v1478, %v1526
    %1528 = vmatmul.bf16.gmra.mxu0 %v788
    %v1529 = vpop.f32.mrf.mxu0
    %v1530 = vadd.f32 %v1481, %v1529
    %v1531 = vpop.f32.mrf.mxu0
    %v1532 = vadd.f32 %v1483, %v1531
    %1533 = vmatmul.bf16.gmra.mxu0 %v792
    %v1534 = vpop.f32.mrf.mxu0
    %v1535 = vadd.f32 %v1486, %v1534
    %v1536 = vpop.f32.mrf.mxu0
    %v1537 = vadd.f32 %v1488, %v1536
    %1538 = vmatmul.bf16.gmra.mxu0 %v796
    %v1539 = vpop.f32.mrf.mxu0
    %v1540 = vadd.f32 %v1491, %v1539
    %v1541 = vpop.f32.mrf.mxu0
    %v1542 = vadd.f32 %v1493, %v1541
    %1543 = vmatmul.bf16.gmra.mxu0 %v800
    %v1544 = vpop.f32.mrf.mxu0
    %v1545 = vadd.f32 %v1496, %v1544
    %v1546 = vpop.f32.mrf.mxu0
    %v1547 = vadd.f32 %v1498, %v1546
    %1548 = vmatmul.bf16.gmra.mxu0 %v804
    %v1549 = vpop.f32.mrf.mxu0
    %v1550 = vadd.f32 %v1501, %v1549
    %v1551 = vpop.f32.mrf.mxu0
    %v1552 = vadd.f32 %v1503, %v1551
    %1553 = vmatmul.bf16.gmra.mxu0 %v808
    %v1554 = vpop.f32.mrf.mxu0
    %v1555 = vadd.f32 %v1506, %v1554
    %v1556 = vpop.f32.mrf.mxu0
    %v1557 = vadd.f32 %v1508, %v1556
    %1558 = vdwg.mxu0
    %1559 = vmatpush.bf16.msra.mxu0 0
    %1560 = vmatpush.bf16.msra.mxu0 0
    %1561 = vmatpush.bf16.msra.mxu0 0
    %1562 = vmatpush.bf16.msra.mxu0 0
    %1563 = vmatpush.bf16.msra.mxu0 %v1207
    %1564 = vmatpush.bf16.msra.mxu0 %v1203
    %1565 = vmatpush.bf16.msra.mxu0 %v1199
    %1566 = vmatpush.bf16.msra.mxu0 %v1195
    %1567 = vmatmul.bf16.gmra.mxu0 %v1291
    %v1568 = vpop.f32.mrf.mxu0
    %v1569 = vadd.f32 %v1520, %v1568
    %v1570 = vpop.f32.mrf.mxu0
    %v1571 = vadd.f32 %v1522, %v1570
    %1572 = vmatmul.bf16.gmra.mxu0 %v1294
    %v1573 = vpop.f32.mrf.mxu0
    %v1574 = vadd.f32 %v1525, %v1573
    %v1575 = vpop.f32.mrf.mxu0
    %v1576 = vadd.f32 %v1527, %v1575
    %1577 = vmatmul.bf16.gmra.mxu0 %v1297
    %v1578 = vpop.f32.mrf.mxu0
    %v1579 = vadd.f32 %v1530, %v1578
    %v1580 = vpop.f32.mrf.mxu0
    %v1581 = vadd.f32 %v1532, %v1580
    %1582 = vmatmul.bf16.gmra.mxu0 %v1300
    %v1583 = vpop.f32.mrf.mxu0
    %v1584 = vadd.f32 %v1535, %v1583
    %v1585 = vpop.f32.mrf.mxu0
    %v1586 = vadd.f32 %v1537, %v1585
    %1587 = vmatmul.bf16.gmra.mxu0 %v1303
    %v1588 = vpop.f32.mrf.mxu0
    %v1589 = vadd.f32 %v1540, %v1588
    %v1590 = vpop.f32.mrf.mxu0
    %v1591 = vadd.f32 %v1542, %v1590
    %1592 = vmatmul.bf16.gmra.mxu0 %v1306
    %v1593 = vpop.f32.mrf.mxu0
    %v1594 = vadd.f32 %v1545, %v1593
    %v1595 = vpop.f32.mrf.mxu0
    %v1596 = vadd.f32 %v1547, %v1595
    %1597 = vmatmul.bf16.gmra.mxu0 %v1309
    %v1598 = vpop.f32.mrf.mxu0
    %v1599 = vadd.f32 %v1550, %v1598
    %v1600 = vpop.f32.mrf.mxu0
    %v1601 = vadd.f32 %v1552, %v1600
    %1602 = vmatmul.bf16.gmra.mxu0 %v1312
    %v1603 = vpop.f32.mrf.mxu0
    %v1604 = vadd.f32 %v1555, %v1603
    %v1605 = vpop.f32.mrf.mxu0
    %v1606 = vadd.f32 %v1557, %v1605
    %1607 = vdwg.mxu0
    %1608 = vmatpush.bf16.msra.mxu0 %v1160
    %1609 = vmatpush.bf16.msra.mxu0 %v1156
    %1610 = vmatpush.bf16.msra.mxu0 %v1152
    %1611 = vmatpush.bf16.msra.mxu0 %v1148
    %1612 = vmatpush.bf16.msra.mxu0 %v1144
    %1613 = vmatpush.bf16.msra.mxu0 %v1140
    %1614 = vmatpush.bf16.msra.mxu0 %v1136
    %1615 = vmatpush.bf16.msra.mxu0 %v1132
    %1616 = vmatmul.bf16.gmra.mxu0 %v748
    %v1617 = vpop.f32.mrf.mxu0
    %v1618 = vadd.f32 0.0, %v1617
    %v1619 = vpop.f32.mrf.mxu0
    %v1620 = vadd.f32 0.0, %v1619
    %1621 = vmatmul.bf16.gmra.mxu0 %v752
    %v1622 = vpop.f32.mrf.mxu0
    %v1623 = vadd.f32 0.0, %v1622
    %v1624 = vpop.f32.mrf.mxu0
    %v1625 = vadd.f32 0.0, %v1624
    %1626 = vmatmul.bf16.gmra.mxu0 %v756
    %v1627 = vpop.f32.mrf.mxu0
    %v1628 = vadd.f32 0.0, %v1627
    %v1629 = vpop.f32.mrf.mxu0
    %v1630 = vadd.f32 0.0, %v1629
    %1631 = vmatmul.bf16.gmra.mxu0 %v760
    %v1632 = vpop.f32.mrf.mxu0
    %v1633 = vadd.f32 0.0, %v1632
    %v1634 = vpop.f32.mrf.mxu0
    %v1635 = vadd.f32 0.0, %v1634
    %1636 = vmatmul.bf16.gmra.mxu0 %v764
    %v1637 = vpop.f32.mrf.mxu0
    %v1638 = vadd.f32 0.0, %v1637
    %v1639 = vpop.f32.mrf.mxu0
    %v1640 = vadd.f32 0.0, %v1639
    %1641 = vmatmul.bf16.gmra.mxu0 %v768
    %v1642 = vpop.f32.mrf.mxu0
    %v1643 = vadd.f32 0.0, %v1642
    %v1644 = vpop.f32.mrf.mxu0
    %v1645 = vadd.f32 0.0, %v1644
    %1646 = vmatmul.bf16.gmra.mxu0 %v772
    %v1647 = vpop.f32.mrf.mxu0
    %v1648 = vadd.f32 0.0, %v1647
    %v1649 = vpop.f32.mrf.mxu0
    %v1650 = vadd.f32 0.0, %v1649
    %1651 = vmatmul.bf16.gmra.mxu0 %v776
    %v1652 = vpop.f32.mrf.mxu0
    %v1653 = vadd.f32 0.0, %v1652
    %v1654 = vpop.f32.mrf.mxu0
    %v1655 = vadd.f32 0.0, %v1654
    %1656 = vdwg.mxu0
    %1657 = vmatpush.bf16.msra.mxu0 %v1192
    %1658 = vmatpush.bf16.msra.mxu0 %v1188
    %1659 = vmatpush.bf16.msra.mxu0 %v1184
    %1660 = vmatpush.bf16.msra.mxu0 %v1180
    %1661 = vmatpush.bf16.msra.mxu0 %v1176
    %1662 = vmatpush.bf16.msra.mxu0 %v1172
    %1663 = vmatpush.bf16.msra.mxu0 %v1168
    %1664 = vmatpush.bf16.msra.mxu0 %v1164
    %1665 = vmatmul.bf16.gmra.mxu0 %v780
    %v1666 = vpop.f32.mrf.mxu0
    %v1667 = vadd.f32 %v1618, %v1666
    %v1668 = vpop.f32.mrf.mxu0
    %v1669 = vadd.f32 %v1620, %v1668
    %1670 = vmatmul.bf16.gmra.mxu0 %v784
    %v1671 = vpop.f32.mrf.mxu0
    %v1672 = vadd.f32 %v1623, %v1671
    %v1673 = vpop.f32.mrf.mxu0
    %v1674 = vadd.f32 %v1625, %v1673
    %1675 = vmatmul.bf16.gmra.mxu0 %v788
    %v1676 = vpop.f32.mrf.mxu0
    %v1677 = vadd.f32 %v1628, %v1676
    %v1678 = vpop.f32.mrf.mxu0
    %v1679 = vadd.f32 %v1630, %v1678
    %1680 = vmatmul.bf16.gmra.mxu0 %v792
    %v1681 = vpop.f32.mrf.mxu0
    %v1682 = vadd.f32 %v1633, %v1681
    %v1683 = vpop.f32.mrf.mxu0
    %v1684 = vadd.f32 %v1635, %v1683
    %1685 = vmatmul.bf16.gmra.mxu0 %v796
    %v1686 = vpop.f32.mrf.mxu0
    %v1687 = vadd.f32 %v1638, %v1686
    %v1688 = vpop.f32.mrf.mxu0
    %v1689 = vadd.f32 %v1640, %v1688
    %1690 = vmatmul.bf16.gmra.mxu0 %v800
    %v1691 = vpop.f32.mrf.mxu0
    %v1692 = vadd.f32 %v1643, %v1691
    %v1693 = vpop.f32.mrf.mxu0
    %v1694 = vadd.f32 %v1645, %v1693
    %1695 = vmatmul.bf16.gmra.mxu0 %v804
    %v1696 = vpop.f32.mrf.mxu0
    %v1697 = vadd.f32 %v1648, %v1696
    %v1698 = vpop.f32.mrf.mxu0
    %v1699 = vadd.f32 %v1650, %v1698
    %1700 = vmatmul.bf16.gmra.mxu0 %v808
    %v1701 = vpop.f32.mrf.mxu0
    %v1702 = vadd.f32 %v1653, %v1701
    %v1703 = vpop.f32.mrf.mxu0
    %v1704 = vadd.f32 %v1655, %v1703
    %1705 = vdwg.mxu0
    %1706 = vmatpush.bf16.msra.mxu0 0
    %1707 = vmatpush.bf16.msra.mxu0 0
    %1708 = vmatpush.bf16.msra.mxu0 0
    %1709 = vmatpush.bf16.msra.mxu0 0
    %1710 = vmatpush.bf16.msra.mxu0 %v1208
    %1711 = vmatpush.bf16.msra.mxu0 %v1204
    %1712 = vmatpush.bf16.msra.mxu0 %v1200
    %1713 = vmatpush.bf16.msra.mxu0 %v1196
    %1714 = vmatmul.bf16.gmra.mxu0 %v1291
    %v1715 = vpop.f32.mrf.mxu0
    %v1716 = vadd.f32 %v1667, %v1715
    %v1717 = vpop.f32.mrf.mxu0
    %v1718 = vadd.f32 %v1669, %v1717
    %1719 = vmatmul.bf16.gmra.mxu0 %v1294
    %v1720 = vpop.f32.mrf.mxu0
    %v1721 = vadd.f32 %v1672, %v1720
    %v1722 = vpop.f32.mrf.mxu0
    %v1723 = vadd.f32 %v1674, %v1722
    %1724 = vmatmul.bf16.gmra.mxu0 %v1297
    %v1725 = vpop.f32.mrf.mxu0
    %v1726 = vadd.f32 %v1677, %v1725
    %v1727 = vpop.f32.mrf.mxu0
    %v1728 = vadd.f32 %v1679, %v1727
    %1729 = vmatmul.bf16.gmra.mxu0 %v1300
    %v1730 = vpop.f32.mrf.mxu0
    %v1731 = vadd.f32 %v1682, %v1730
    %v1732 = vpop.f32.mrf.mxu0
    %v1733 = vadd.f32 %v1684, %v1732
    %1734 = vmatmul.bf16.gmra.mxu0 %v1303
    %v1735 = vpop.f32.mrf.mxu0
    %v1736 = vadd.f32 %v1687, %v1735
    %v1737 = vpop.f32.mrf.mxu0
    %v1738 = vadd.f32 %v1689, %v1737
    %1739 = vmatmul.bf16.gmra.mxu0 %v1306
    %v1740 = vpop.f32.mrf.mxu0
    %v1741 = vadd.f32 %v1692, %v1740
    %v1742 = vpop.f32.mrf.mxu0
    %v1743 = vadd.f32 %v1694, %v1742
    %1744 = vmatmul.bf16.gmra.mxu0 %v1309
    %v1745 = vpop.f32.mrf.mxu0
    %v1746 = vadd.f32 %v1697, %v1745
    %v1747 = vpop.f32.mrf.mxu0
    %v1748 = vadd.f32 %v1699, %v1747
    %1749 = vmatmul.bf16.gmra.mxu0 %v1312
    %v1750 = vpop.f32.mrf.mxu0
    %v1751 = vadd.f32 %v1702, %v1750
    %v1752 = vpop.f32.mrf.mxu0
    %v1753 = vadd.f32 %v1704, %v1752
    %1754 = vdwg.mxu0
    %1755 = vmatpush.bf16.msra.mxu0 %v1161
    %1756 = vmatpush.bf16.msra.mxu0 %v1157
    %1757 = vmatpush.bf16.msra.mxu0 %v1153
    %1758 = vmatpush.bf16.msra.mxu0 %v1149
    %1759 = vmatpush.bf16.msra.mxu0 %v1145
    %1760 = vmatpush.bf16.msra.mxu0 %v1141
    %1761 = vmatpush.bf16.msra.mxu0 %v1137
    %1762 = vmatpush.bf16.msra.mxu0 %v1133
    %1763 = vmatmul.bf16.gmra.mxu0 %v748
    %v1764 = vpop.f32.mrf.mxu0
    %v1765 = vadd.f32 0.0, %v1764
    %v1766 = vpop.f32.mrf.mxu0
    %v1767 = vadd.f32 0.0, %v1766
    %1768 = vmatmul.bf16.gmra.mxu0 %v752
    %v1769 = vpop.f32.mrf.mxu0
    %v1770 = vadd.f32 0.0, %v1769
    %v1771 = vpop.f32.mrf.mxu0
    %v1772 = vadd.f32 0.0, %v1771
    %1773 = vmatmul.bf16.gmra.mxu0 %v756
    %v1774 = vpop.f32.mrf.mxu0
    %v1775 = vadd.f32 0.0, %v1774
    %v1776 = vpop.f32.mrf.mxu0
    %v1777 = vadd.f32 0.0, %v1776
    %1778 = vmatmul.bf16.gmra.mxu0 %v760
    %v1779 = vpop.f32.mrf.mxu0
    %v1780 = vadd.f32 0.0, %v1779
    %v1781 = vpop.f32.mrf.mxu0
    %v1782 = vadd.f32 0.0, %v1781
    %1783 = vmatmul.bf16.gmra.mxu0 %v764
    %v1784 = vpop.f32.mrf.mxu0
    %v1785 = vadd.f32 0.0, %v1784
    %v1786 = vpop.f32.mrf.mxu0
    %v1787 = vadd.f32 0.0, %v1786
    %1788 = vmatmul.bf16.gmra.mxu0 %v768
    %v1789 = vpop.f32.mrf.mxu0
    %v1790 = vadd.f32 0.0, %v1789
    %v1791 = vpop.f32.mrf.mxu0
    %v1792 = vadd.f32 0.0, %v1791
    %1793 = vmatmul.bf16.gmra.mxu0 %v772
    %v1794 = vpop.f32.mrf.mxu0
    %v1795 = vadd.f32 0.0, %v1794
    %v1796 = vpop.f32.mrf.mxu0
    %v1797 = vadd.f32 0.0, %v1796
    %1798 = vmatmul.bf16.gmra.mxu0 %v776
    %v1799 = vpop.f32.mrf.mxu0
    %v1800 = vadd.f32 0.0, %v1799
    %v1801 = vpop.f32.mrf.mxu0
    %v1802 = vadd.f32 0.0, %v1801
    %1803 = vdwg.mxu0
    %1804 = vmatpush.bf16.msra.mxu0 %v1193
    %1805 = vmatpush.bf16.msra.mxu0 %v1189
    %1806 = vmatpush.bf16.msra.mxu0 %v1185
    %1807 = vmatpush.bf16.msra.mxu0 %v1181
    %1808 = vmatpush.bf16.msra.mxu0 %v1177
    %1809 = vmatpush.bf16.msra.mxu0 %v1173
    %1810 = vmatpush.bf16.msra.mxu0 %v1169
    %1811 = vmatpush.bf16.msra.mxu0 %v1165
    %1812 = vmatmul.bf16.gmra.mxu0 %v780
    %v1813 = vpop.f32.mrf.mxu0
    %v1814 = vadd.f32 %v1765, %v1813
    %v1815 = vpop.f32.mrf.mxu0
    %v1816 = vadd.f32 %v1767, %v1815
    %1817 = vmatmul.bf16.gmra.mxu0 %v784
    %v1818 = vpop.f32.mrf.mxu0
    %v1819 = vadd.f32 %v1770, %v1818
    %v1820 = vpop.f32.mrf.mxu0
    %v1821 = vadd.f32 %v1772, %v1820
    %1822 = vmatmul.bf16.gmra.mxu0 %v788
    %v1823 = vpop.f32.mrf.mxu0
    %v1824 = vadd.f32 %v1775, %v1823
    %v1825 = vpop.f32.mrf.mxu0
    %v1826 = vadd.f32 %v1777, %v1825
    %1827 = vmatmul.bf16.gmra.mxu0 %v792
    %v1828 = vpop.f32.mrf.mxu0
    %v1829 = vadd.f32 %v1780, %v1828
    %v1830 = vpop.f32.mrf.mxu0
    %v1831 = vadd.f32 %v1782, %v1830
    %1832 = vmatmul.bf16.gmra.mxu0 %v796
    %v1833 = vpop.f32.mrf.mxu0
    %v1834 = vadd.f32 %v1785, %v1833
    %v1835 = vpop.f32.mrf.mxu0
    %v1836 = vadd.f32 %v1787, %v1835
    %1837 = vmatmul.bf16.gmra.mxu0 %v800
    %v1838 = vpop.f32.mrf.mxu0
    %v1839 = vadd.f32 %v1790, %v1838
    %v1840 = vpop.f32.mrf.mxu0
    %v1841 = vadd.f32 %v1792, %v1840
    %1842 = vmatmul.bf16.gmra.mxu0 %v804
    %v1843 = vpop.f32.mrf.mxu0
    %v1844 = vadd.f32 %v1795, %v1843
    %v1845 = vpop.f32.mrf.mxu0
    %v1846 = vadd.f32 %v1797, %v1845
    %1847 = vmatmul.bf16.gmra.mxu0 %v808
    %v1848 = vpop.f32.mrf.mxu0
    %v1849 = vadd.f32 %v1800, %v1848
    %v1850 = vpop.f32.mrf.mxu0
    %v1851 = vadd.f32 %v1802, %v1850
    %1852 = vdwg.mxu0
    %1853 = vmatpush.bf16.msra.mxu0 0
    %1854 = vmatpush.bf16.msra.mxu0 0
    %1855 = vmatpush.bf16.msra.mxu0 0
    %1856 = vmatpush.bf16.msra.mxu0 0
    %1857 = vmatpush.bf16.msra.mxu0 %v1209
    %1858 = vmatpush.bf16.msra.mxu0 %v1205
    %1859 = vmatpush.bf16.msra.mxu0 %v1201
    %1860 = vmatpush.bf16.msra.mxu0 %v1197
    %1861 = vmatmul.bf16.gmra.mxu0 %v1291
    %v1862 = vpop.f32.mrf.mxu0
    %v1863 = vadd.f32 %v1814, %v1862
    %v1864 = vpop.f32.mrf.mxu0
    %v1865 = vadd.f32 %v1816, %v1864
    %1866 = vmatmul.bf16.gmra.mxu0 %v1294
    %v1867 = vpop.f32.mrf.mxu0
    %v1868 = vadd.f32 %v1819, %v1867
    %v1869 = vpop.f32.mrf.mxu0
    %v1870 = vadd.f32 %v1821, %v1869
    %1871 = vmatmul.bf16.gmra.mxu0 %v1297
    %v1872 = vpop.f32.mrf.mxu0
    %v1873 = vadd.f32 %v1824, %v1872
    %v1874 = vpop.f32.mrf.mxu0
    %v1875 = vadd.f32 %v1826, %v1874
    %1876 = vmatmul.bf16.gmra.mxu0 %v1300
    %v1877 = vpop.f32.mrf.mxu0
    %v1878 = vadd.f32 %v1829, %v1877
    %v1879 = vpop.f32.mrf.mxu0
    %v1880 = vadd.f32 %v1831, %v1879
    %1881 = vmatmul.bf16.gmra.mxu0 %v1303
    %v1882 = vpop.f32.mrf.mxu0
    %v1883 = vadd.f32 %v1834, %v1882
    %v1884 = vpop.f32.mrf.mxu0
    %v1885 = vadd.f32 %v1836, %v1884
    %1886 = vmatmul.bf16.gmra.mxu0 %v1306
    %v1887 = vpop.f32.mrf.mxu0
    %v1888 = vadd.f32 %v1839, %v1887
    %v1889 = vpop.f32.mrf.mxu0
    %v1890 = vadd.f32 %v1841, %v1889
    %1891 = vmatmul.bf16.gmra.mxu0 %v1309
    %v1892 = vpop.f32.mrf.mxu0
    %v1893 = vadd.f32 %v1844, %v1892
    %v1894 = vpop.f32.mrf.mxu0
    %v1895 = vadd.f32 %v1846, %v1894
    %1896 = vmatmul.bf16.gmra.mxu0 %v1312
    %v1897 = vpop.f32.mrf.mxu0
    %v1898 = vadd.f32 %v1849, %v1897
    %v1899 = vpop.f32.mrf.mxu0
    %v1900 = vadd.f32 %v1851, %v1899
    %1901 = vdwg.mxu0
    %v1902 = vadd.f32 %v1422, %v1424
    %v1903 = vadd.f32 %v1902, %v1427
    %v1904 = vadd.f32 %v1903, %v1429
    %v1905 = vadd.f32 %v1904, %v1432
    %v1906 = vadd.f32 %v1905, %v1434
    %v1907 = vadd.f32 %v1906, %v1437
    %v1908 = vadd.f32 %v1907, %v1439
    %v1909 = vadd.f32 %v1908, %v1442
    %v1910 = vadd.f32 %v1909, %v1444
    %v1911 = vadd.f32 %v1910, %v1447
    %v1912 = vadd.f32 %v1911, %v1449
    %v1913 = vadd.f32 %v1912, %v1452
    %v1914 = vadd.f32 %v1913, %v1454
    %v1915 = vadd.f32 %v1914, %v1457
    %v1916 = vadd.f32 %v1915, %v1459
    %v1917 = vrot.slane %v1916, 4
    %v1918 = vadd.f32 %v1916, %v1917
    %v1919 = vrot.slane %v1918, 2
    %v1920 = vadd.f32 %v1918, %v1919
    %v1921 = vrot.slane %v1920, 1
    %v1922 = vadd.f32 %v1920, %v1921
    %v1923 = vadd.f32 %v1569, %v1571
    %v1924 = vadd.f32 %v1923, %v1574
    %v1925 = vadd.f32 %v1924, %v1576
    %v1926 = vadd.f32 %v1925, %v1579
    %v1927 = vadd.f32 %v1926, %v1581
    %v1928 = vadd.f32 %v1927, %v1584
    %v1929 = vadd.f32 %v1928, %v1586
    %v1930 = vadd.f32 %v1929, %v1589
    %v1931 = vadd.f32 %v1930, %v1591
    %v1932 = vadd.f32 %v1931, %v1594
    %v1933 = vadd.f32 %v1932, %v1596
    %v1934 = vadd.f32 %v1933, %v1599
    %v1935 = vadd.f32 %v1934, %v1601
    %v1936 = vadd.f32 %v1935, %v1604
    %v1937 = vadd.f32 %v1936, %v1606
    %v1938 = vrot.slane %v1937, 4
    %v1939 = vadd.f32 %v1937, %v1938
    %v1940 = vrot.slane %v1939, 2
    %v1941 = vadd.f32 %v1939, %v1940
    %v1942 = vrot.slane %v1941, 1
    %v1943 = vadd.f32 %v1941, %v1942
    %v1944 = vadd.f32 %v1716, %v1718
    %v1945 = vadd.f32 %v1944, %v1721
    %v1946 = vadd.f32 %v1945, %v1723
    %v1947 = vadd.f32 %v1946, %v1726
    %v1948 = vadd.f32 %v1947, %v1728
    %v1949 = vadd.f32 %v1948, %v1731
    %v1950 = vadd.f32 %v1949, %v1733
    %v1951 = vadd.f32 %v1950, %v1736
    %v1952 = vadd.f32 %v1951, %v1738
    %v1953 = vadd.f32 %v1952, %v1741
    %v1954 = vadd.f32 %v1953, %v1743
    %v1955 = vadd.f32 %v1954, %v1746
    %v1956 = vadd.f32 %v1955, %v1748
    %v1957 = vadd.f32 %v1956, %v1751
    %v1958 = vadd.f32 %v1957, %v1753
    %v1959 = vrot.slane %v1958, 4
    %v1960 = vadd.f32 %v1958, %v1959
    %v1961 = vrot.slane %v1960, 2
    %v1962 = vadd.f32 %v1960, %v1961
    %v1963 = vrot.slane %v1962, 1
    %v1964 = vadd.f32 %v1962, %v1963
    %v1965 = vadd.f32 %v1863, %v1865
    %v1966 = vadd.f32 %v1965, %v1868
    %v1967 = vadd.f32 %v1966, %v1870
    %v1968 = vadd.f32 %v1967, %v1873
    %v1969 = vadd.f32 %v1968, %v1875
    %v1970 = vadd.f32 %v1969, %v1878
    %v1971 = vadd.f32 %v1970, %v1880
    %v1972 = vadd.f32 %v1971, %v1883
    %v1973 = vadd.f32 %v1972, %v1885
    %v1974 = vadd.f32 %v1973, %v1888
    %v1975 = vadd.f32 %v1974, %v1890
    %v1976 = vadd.f32 %v1975, %v1893
    %v1977 = vadd.f32 %v1976, %v1895
    %v1978 = vadd.f32 %v1977, %v1898
    %v1979 = vadd.f32 %v1978, %v1900
    %v1980 = vrot.slane %v1979, 4
    %v1981 = vadd.f32 %v1979, %v1980
    %v1982 = vrot.slane %v1981, 2
    %v1983 = vadd.f32 %v1981, %v1982
    %v1984 = vrot.slane %v1983, 1
    %v1985 = vadd.f32 %v1983, %v1984
    %v1986 = vmul.f32 %v1422, %v1422
    %v1987 = vmul.f32 %v1569, %v1569
    %v1988 = vmul.f32 %v1716, %v1716
    %v1989 = vmul.f32 %v1863, %v1863
    %v1990 = vmul.f32 %v1424, %v1424
    %v1991 = vmul.f32 %v1571, %v1571
    %v1992 = vmul.f32 %v1718, %v1718
    %v1993 = vmul.f32 %v1865, %v1865
    %v1994 = vmul.f32 %v1427, %v1427
    %v1995 = vmul.f32 %v1574, %v1574
    %v1996 = vmul.f32 %v1721, %v1721
    %v1997 = vmul.f32 %v1868, %v1868
    %v1998 = vmul.f32 %v1429, %v1429
    %v1999 = vmul.f32 %v1576, %v1576
    %v2000 = vmul.f32 %v1723, %v1723
    %v2001 = vmul.f32 %v1870, %v1870
    %v2002 = vmul.f32 %v1432, %v1432
    %v2003 = vmul.f32 %v1579, %v1579
    %v2004 = vmul.f32 %v1726, %v1726
    %v2005 = vmul.f32 %v1873, %v1873
    %v2006 = vmul.f32 %v1434, %v1434
    %v2007 = vmul.f32 %v1581, %v1581
    %v2008 = vmul.f32 %v1728, %v1728
    %v2009 = vmul.f32 %v1875, %v1875
    %v2010 = vmul.f32 %v1437, %v1437
    %v2011 = vmul.f32 %v1584, %v1584
    %v2012 = vmul.f32 %v1731, %v1731
    %v2013 = vmul.f32 %v1878, %v1878
    %v2014 = vmul.f32 %v1439, %v1439
    %v2015 = vmul.f32 %v1586, %v1586
    %v2016 = vmul.f32 %v1733, %v1733
    %v2017 = vmul.f32 %v1880, %v1880
    %v2018 = vmul.f32 %v1442, %v1442
    %v2019 = vmul.f32 %v1589, %v1589
    %v2020 = vmul.f32 %v1736, %v1736
    %v2021 = vmul.f32 %v1883, %v1883
    %v2022 = vmul.f32 %v1444, %v1444
    %v2023 = vmul.f32 %v1591, %v1591
    %v2024 = vmul.f32 %v1738, %v1738
    %v2025 = vmul.f32 %v1885, %v1885
    %v2026 = vmul.f32 %v1447, %v1447
    %v2027 = vmul.f32 %v1594, %v1594
    %v2028 = vmul.f32 %v1741, %v1741
    %v2029 = vmul.f32 %v1888, %v1888
    %v2030 = vmul.f32 %v1449, %v1449
    %v2031 = vmul.f32 %v1596, %v1596
    %v2032 = vmul.f32 %v1743, %v1743
    %v2033 = vmul.f32 %v1890, %v1890
    %v2034 = vmul.f32 %v1452, %v1452
    %v2035 = vmul.f32 %v1599, %v1599
    %v2036 = vmul.f32 %v1746, %v1746
    %v2037 = vmul.f32 %v1893, %v1893
    %v2038 = vmul.f32 %v1454, %v1454
    %v2039 = vmul.f32 %v1601, %v1601
    %v2040 = vmul.f32 %v1748, %v1748
    %v2041 = vmul.f32 %v1895, %v1895
    %v2042 = vmul.f32 %v1457, %v1457
    %v2043 = vmul.f32 %v1604, %v1604
    %v2044 = vmul.f32 %v1751, %v1751
    %v2045 = vmul.f32 %v1898, %v1898
    %v2046 = vmul.f32 %v1459, %v1459
    %v2047 = vmul.f32 %v1606, %v1606
    %v2048 = vmul.f32 %v1753, %v1753
    %v2049 = vmul.f32 %v1900, %v1900
    %v2050 = vadd.f32 %v1986, %v1990
    %v2051 = vadd.f32 %v2050, %v1994
    %v2052 = vadd.f32 %v2051, %v1998
    %v2053 = vadd.f32 %v2052, %v2002
    %v2054 = vadd.f32 %v2053, %v2006
    %v2055 = vadd.f32 %v2054, %v2010
    %v2056 = vadd.f32 %v2055, %v2014
    %v2057 = vadd.f32 %v2056, %v2018
    %v2058 = vadd.f32 %v2057, %v2022
    %v2059 = vadd.f32 %v2058, %v2026
    %v2060 = vadd.f32 %v2059, %v2030
    %v2061 = vadd.f32 %v2060, %v2034
    %v2062 = vadd.f32 %v2061, %v2038
    %v2063 = vadd.f32 %v2062, %v2042
    %v2064 = vadd.f32 %v2063, %v2046
    %v2065 = vrot.slane %v2064, 4
    %v2066 = vadd.f32 %v2064, %v2065
    %v2067 = vrot.slane %v2066, 2
    %v2068 = vadd.f32 %v2066, %v2067
    %v2069 = vrot.slane %v2068, 1
    %v2070 = vadd.f32 %v2068, %v2069
    %v2071 = vadd.f32 %v1987, %v1991
    %v2072 = vadd.f32 %v2071, %v1995
    %v2073 = vadd.f32 %v2072, %v1999
    %v2074 = vadd.f32 %v2073, %v2003
    %v2075 = vadd.f32 %v2074, %v2007
    %v2076 = vadd.f32 %v2075, %v2011
    %v2077 = vadd.f32 %v2076, %v2015
    %v2078 = vadd.f32 %v2077, %v2019
    %v2079 = vadd.f32 %v2078, %v2023
    %v2080 = vadd.f32 %v2079, %v2027
    %v2081 = vadd.f32 %v2080, %v2031
    %v2082 = vadd.f32 %v2081, %v2035
    %v2083 = vadd.f32 %v2082, %v2039
    %v2084 = vadd.f32 %v2083, %v2043
    %v2085 = vadd.f32 %v2084, %v2047
    %v2086 = vrot.slane %v2085, 4
    %v2087 = vadd.f32 %v2085, %v2086
    %v2088 = vrot.slane %v2087, 2
    %v2089 = vadd.f32 %v2087, %v2088
    %v2090 = vrot.slane %v2089, 1
    %v2091 = vadd.f32 %v2089, %v2090
    %v2092 = vadd.f32 %v1988, %v1992
    %v2093 = vadd.f32 %v2092, %v1996
    %v2094 = vadd.f32 %v2093, %v2000
    %v2095 = vadd.f32 %v2094, %v2004
    %v2096 = vadd.f32 %v2095, %v2008
    %v2097 = vadd.f32 %v2096, %v2012
    %v2098 = vadd.f32 %v2097, %v2016
    %v2099 = vadd.f32 %v2098, %v2020
    %v2100 = vadd.f32 %v2099, %v2024
    %v2101 = vadd.f32 %v2100, %v2028
    %v2102 = vadd.f32 %v2101, %v2032
    %v2103 = vadd.f32 %v2102, %v2036
    %v2104 = vadd.f32 %v2103, %v2040
    %v2105 = vadd.f32 %v2104, %v2044
    %v2106 = vadd.f32 %v2105, %v2048
    %v2107 = vrot.slane %v2106, 4
    %v2108 = vadd.f32 %v2106, %v2107
    %v2109 = vrot.slane %v2108, 2
    %v2110 = vadd.f32 %v2108, %v2109
    %v2111 = vrot.slane %v2110, 1
    %v2112 = vadd.f32 %v2110, %v2111
    %v2113 = vadd.f32 %v1989, %v1993
    %v2114 = vadd.f32 %v2113, %v1997
    %v2115 = vadd.f32 %v2114, %v2001
    %v2116 = vadd.f32 %v2115, %v2005
    %v2117 = vadd.f32 %v2116, %v2009
    %v2118 = vadd.f32 %v2117, %v2013
    %v2119 = vadd.f32 %v2118, %v2017
    %v2120 = vadd.f32 %v2119, %v2021
    %v2121 = vadd.f32 %v2120, %v2025
    %v2122 = vadd.f32 %v2121, %v2029
    %v2123 = vadd.f32 %v2122, %v2033
    %v2124 = vadd.f32 %v2123, %v2037
    %v2125 = vadd.f32 %v2124, %v2041
    %v2126 = vadd.f32 %v2125, %v2045
    %v2127 = vadd.f32 %v2126, %v2049
    %v2128 = vrot.slane %v2127, 4
    %v2129 = vadd.f32 %v2127, %v2128
    %v2130 = vrot.slane %v2129, 2
    %v2131 = vadd.f32 %v2129, %v2130
    %v2132 = vrot.slane %v2131, 1
    %v2133 = vadd.f32 %v2131, %v2132
    %v2134 = vld [vmem:[%s5] sm:$0xff]
    %v2135 = vld [vmem:[%s5 + $0x8] sm:$0xff]
    %v2136 = vld [vmem:[%s5 + $0x10] sm:$0xff]
    %v2137 = vld [vmem:[%s5 + $0x18] sm:$0xff]
    %v2138 = vld [vmem:[%s5 + $0x20] sm:$0xff]
    %v2139 = vld [vmem:[%s5 + $0x28] sm:$0xff]
    %v2140 = vld [vmem:[%s5 + $0x30] sm:$0xff]
    %v2141 = vld [vmem:[%s5 + $0x38] sm:$0xff]
    %v2142 = vld [vmem:[%s5 + $0x40] sm:$0xff]
    %v2143 = vld [vmem:[%s5 + $0x48] sm:$0xff]
    %v2144 = vld [vmem:[%s5 + $0x50] sm:$0xff]
    %v2145 = vld [vmem:[%s5 + $0x58] sm:$0xff]
    %v2146 = vld [vmem:[%s5 + $0x60] sm:$0xff]
    %v2147 = vld [vmem:[%s5 + $0x68] sm:$0xff]
    %v2148 = vld [vmem:[%s5 + $0x70] sm:$0xff]
    %v2149 = vld [vmem:[%s5 + $0x78] sm:$0xff]
    %v2150 = vld [vmem:[%s5 + $0x80] sm:$0xff]
    %v2151 = vld [vmem:[%s5 + $0x88] sm:$0xff]
    %v2152 = vld [vmem:[%s5 + $0x90] sm:$0xff]
    %v2153 = vld [vmem:[%s5 + $0x98] sm:$0xff]
    %v2154 = vld [vmem:[%s5 + $0xa0] sm:$0xff]
    %v2155 = vld [vmem:[%s5 + $0xa8] sm:$0xff]
    %v2156 = vld [vmem:[%s5 + $0xb0] sm:$0xff]
    %v2157 = vld [vmem:[%s5 + $0xb8] sm:$0xff]
    %v2158 = vld [vmem:[%s5 + $0xc0] sm:$0xff]
    %v2159 = vld [vmem:[%s5 + $0xc8] sm:$0xff]
    %v2160 = vld [vmem:[%s5 + $0xd0] sm:$0xff]
    %v2161 = vld [vmem:[%s5 + $0xd8] sm:$0xff]
    %v2162 = vld [vmem:[%s5 + $0xe0] sm:$0xff]
    %v2163 = vld [vmem:[%s5 + $0xe8] sm:$0xff]
    %v2164 = vld [vmem:[%s5 + $0xf0] sm:$0xff]
    %v2165 = vld [vmem:[%s5 + $0xf8] sm:$0xff]
    %v2166 = vld [vmem:[%s5 + $0x100] sm:$0xff]
    %v2167 = vld [vmem:[%s5 + $0x108] sm:$0xff]
    %v2168 = vld [vmem:[%s5 + $0x110] sm:$0xff]
    %v2169 = vld [vmem:[%s5 + $0x118] sm:$0xff]
    %v2170 = vld [vmem:[%s5 + $0x120] sm:$0xff]
    %v2171 = vld [vmem:[%s5 + $0x128] sm:$0xff]
    %v2172 = vld [vmem:[%s5 + $0x130] sm:$0xff]
    %v2173 = vld [vmem:[%s5 + $0x138] sm:$0xff]
    %v2174 = vld [vmem:[%s5 + $0x140] sm:$0xff]
    %v2175 = vld [vmem:[%s5 + $0x148] sm:$0xff]
    %v2176 = vld [vmem:[%s5 + $0x150] sm:$0xff]
    %v2177 = vld [vmem:[%s5 + $0x158] sm:$0xff]
    %v2178 = vld [vmem:[%s5 + $0x160] sm:$0xff]
    %v2179 = vld [vmem:[%s5 + $0x168] sm:$0xff]
    %v2180 = vld [vmem:[%s5 + $0x170] sm:$0xff]
    %v2181 = vld [vmem:[%s5 + $0x178] sm:$0xff]
    %v2182 = vld [vmem:[%s5 + $0x180] sm:$0xff]
    %v2183 = vld [vmem:[%s5 + $0x188] sm:$0xff]
    %v2184 = vld [vmem:[%s5 + $0x190] sm:$0xff]
    %v2185 = vld [vmem:[%s5 + $0x198] sm:$0xff]
    %v2186 = vld [vmem:[%s5 + $0x1a0] sm:$0xff]
    %v2187 = vld [vmem:[%s5 + $0x1a8] sm:$0xff]
    %v2188 = vld [vmem:[%s5 + $0x1b0] sm:$0xff]
    %v2189 = vld [vmem:[%s5 + $0x1b8] sm:$0xff]
    %v2190 = vld [vmem:[%s5 + $0x1c0] sm:$0xff]
    %v2191 = vld [vmem:[%s5 + $0x1c8] sm:$0xff]
    %v2192 = vld [vmem:[%s5 + $0x1d0] sm:$0xff]
    %v2193 = vld [vmem:[%s5 + $0x1d8] sm:$0xff]
    %v2194 = vld [vmem:[%s5 + $0x1e0] sm:$0xff]
    %v2195 = vld [vmem:[%s5 + $0x1e8] sm:$0xff]
    %v2196 = vld [vmem:[%s5 + $0x1f0] sm:$0xff]
    %v2197 = vld [vmem:[%s5 + $0x1f8] sm:$0xff]
    %2198 = vmatpush.msra.mxu0 %v2149
    %2199 = vmatpush.msra.mxu0 %v2148
    %2200 = vmatpush.msra.mxu0 %v2147
    %2201 = vmatpush.msra.mxu0 %v2146
    %2202 = vmatpush.msra.mxu0 %v2145
    %2203 = vmatpush.msra.mxu0 %v2144
    %2204 = vmatpush.msra.mxu0 %v2143
    %2205 = vmatpush.msra.mxu0 %v2142
    %2206 = vmatpush.msra.mxu0 %v2141
    %2207 = vmatpush.msra.mxu0 %v2140
    %2208 = vmatpush.msra.mxu0 %v2139
    %2209 = vmatpush.msra.mxu0 %v2138
    %2210 = vmatpush.msra.mxu0 %v2137
    %2211 = vmatpush.msra.mxu0 %v2136
    %2212 = vmatpush.msra.mxu0 %v2135
    %2213 = vmatpush.msra.mxu0 %v2134
    %2214 = vmatmul.f32.gmra.mxu0 %v1922
    %v2215 = vpop.f32.mrf.mxu0
    %v2216 = vadd.f32 0.0, %v2215
    %2217 = vdwg.mxu0
    %2218 = vmatpush.msra.mxu0 %v2165
    %2219 = vmatpush.msra.mxu0 %v2164
    %2220 = vmatpush.msra.mxu0 %v2163
    %2221 = vmatpush.msra.mxu0 %v2162
    %2222 = vmatpush.msra.mxu0 %v2161
    %2223 = vmatpush.msra.mxu0 %v2160
    %2224 = vmatpush.msra.mxu0 %v2159
    %2225 = vmatpush.msra.mxu0 %v2158
    %2226 = vmatpush.msra.mxu0 %v2157
    %2227 = vmatpush.msra.mxu0 %v2156
    %2228 = vmatpush.msra.mxu0 %v2155
    %2229 = vmatpush.msra.mxu0 %v2154
    %2230 = vmatpush.msra.mxu0 %v2153
    %2231 = vmatpush.msra.mxu0 %v2152
    %2232 = vmatpush.msra.mxu0 %v2151
    %2233 = vmatpush.msra.mxu0 %v2150
    %2234 = vmatmul.f32.gmra.mxu0 %v1943
    %v2235 = vpop.f32.mrf.mxu0
    %v2236 = vadd.f32 %v2216, %v2235
    %2237 = vdwg.mxu0
    %2238 = vmatpush.msra.mxu0 %v2181
    %2239 = vmatpush.msra.mxu0 %v2180
    %2240 = vmatpush.msra.mxu0 %v2179
    %2241 = vmatpush.msra.mxu0 %v2178
    %2242 = vmatpush.msra.mxu0 %v2177
    %2243 = vmatpush.msra.mxu0 %v2176
    %2244 = vmatpush.msra.mxu0 %v2175
    %2245 = vmatpush.msra.mxu0 %v2174
    %2246 = vmatpush.msra.mxu0 %v2173
    %2247 = vmatpush.msra.mxu0 %v2172
    %2248 = vmatpush.msra.mxu0 %v2171
    %2249 = vmatpush.msra.mxu0 %v2170
    %2250 = vmatpush.msra.mxu0 %v2169
    %2251 = vmatpush.msra.mxu0 %v2168
    %2252 = vmatpush.msra.mxu0 %v2167
    %2253 = vmatpush.msra.mxu0 %v2166
    %2254 = vmatmul.f32.gmra.mxu0 %v1964
    %v2255 = vpop.f32.mrf.mxu0
    %v2256 = vadd.f32 %v2236, %v2255
    %2257 = vdwg.mxu0
    %2258 = vmatpush.msra.mxu0 %v2197
    %2259 = vmatpush.msra.mxu0 %v2196
    %2260 = vmatpush.msra.mxu0 %v2195
    %2261 = vmatpush.msra.mxu0 %v2194
    %2262 = vmatpush.msra.mxu0 %v2193
    %2263 = vmatpush.msra.mxu0 %v2192
    %2264 = vmatpush.msra.mxu0 %v2191
    %2265 = vmatpush.msra.mxu0 %v2190
    %2266 = vmatpush.msra.mxu0 %v2189
    %2267 = vmatpush.msra.mxu0 %v2188
    %2268 = vmatpush.msra.mxu0 %v2187
    %2269 = vmatpush.msra.mxu0 %v2186
    %2270 = vmatpush.msra.mxu0 %v2185
    %2271 = vmatpush.msra.mxu0 %v2184
    %2272 = vmatpush.msra.mxu0 %v2183
    %2273 = vmatpush.msra.mxu0 %v2182
    %2274 = vmatmul.f32.gmra.mxu0 %v1985
    %v2275 = vpop.f32.mrf.mxu0
    %v2276 = vadd.f32 %v2256, %v2275
    %2277 = vdwg.mxu0
    %2278 = vmatpush.msra.mxu0 %v2149
    %2279 = vmatpush.msra.mxu0 %v2148
    %2280 = vmatpush.msra.mxu0 %v2147
    %2281 = vmatpush.msra.mxu0 %v2146
    %2282 = vmatpush.msra.mxu0 %v2145
    %2283 = vmatpush.msra.mxu0 %v2144
    %2284 = vmatpush.msra.mxu0 %v2143
    %2285 = vmatpush.msra.mxu0 %v2142
    %2286 = vmatpush.msra.mxu0 %v2141
    %2287 = vmatpush.msra.mxu0 %v2140
    %2288 = vmatpush.msra.mxu0 %v2139
    %2289 = vmatpush.msra.mxu0 %v2138
    %2290 = vmatpush.msra.mxu0 %v2137
    %2291 = vmatpush.msra.mxu0 %v2136
    %2292 = vmatpush.msra.mxu0 %v2135
    %2293 = vmatpush.msra.mxu0 %v2134
    %2294 = vmatmul.f32.gmra.mxu0 %v2070
    %v2295 = vpop.f32.mrf.mxu0
    %v2296 = vadd.f32 0.0, %v2295
    %2297 = vdwg.mxu0
    %2298 = vmatpush.msra.mxu0 %v2165
    %2299 = vmatpush.msra.mxu0 %v2164
    %2300 = vmatpush.msra.mxu0 %v2163
    %2301 = vmatpush.msra.mxu0 %v2162
    %2302 = vmatpush.msra.mxu0 %v2161
    %2303 = vmatpush.msra.mxu0 %v2160
    %2304 = vmatpush.msra.mxu0 %v2159
    %2305 = vmatpush.msra.mxu0 %v2158
    %2306 = vmatpush.msra.mxu0 %v2157
    %2307 = vmatpush.msra.mxu0 %v2156
    %2308 = vmatpush.msra.mxu0 %v2155
    %2309 = vmatpush.msra.mxu0 %v2154
    %2310 = vmatpush.msra.mxu0 %v2153
    %2311 = vmatpush.msra.mxu0 %v2152
    %2312 = vmatpush.msra.mxu0 %v2151
    %2313 = vmatpush.msra.mxu0 %v2150
    %2314 = vmatmul.f32.gmra.mxu0 %v2091
    %v2315 = vpop.f32.mrf.mxu0
    %v2316 = vadd.f32 %v2296, %v2315
    %2317 = vdwg.mxu0
    %2318 = vmatpush.msra.mxu0 %v2181
    %2319 = vmatpush.msra.mxu0 %v2180
    %2320 = vmatpush.msra.mxu0 %v2179
    %2321 = vmatpush.msra.mxu0 %v2178
    %2322 = vmatpush.msra.mxu0 %v2177
    %2323 = vmatpush.msra.mxu0 %v2176
    %2324 = vmatpush.msra.mxu0 %v2175
    %2325 = vmatpush.msra.mxu0 %v2174
    %2326 = vmatpush.msra.mxu0 %v2173
    %2327 = vmatpush.msra.mxu0 %v2172
    %2328 = vmatpush.msra.mxu0 %v2171
    %2329 = vmatpush.msra.mxu0 %v2170
    %2330 = vmatpush.msra.mxu0 %v2169
    %2331 = vmatpush.msra.mxu0 %v2168
    %2332 = vmatpush.msra.mxu0 %v2167
    %2333 = vmatpush.msra.mxu0 %v2166
    %2334 = vmatmul.f32.gmra.mxu0 %v2112
    %v2335 = vpop.f32.mrf.mxu0
    %v2336 = vadd.f32 %v2316, %v2335
    %2337 = vdwg.mxu0
    %2338 = vmatpush.msra.mxu0 %v2197
    %2339 = vmatpush.msra.mxu0 %v2196
    %2340 = vmatpush.msra.mxu0 %v2195
    %2341 = vmatpush.msra.mxu0 %v2194
    %2342 = vmatpush.msra.mxu0 %v2193
    %2343 = vmatpush.msra.mxu0 %v2192
    %2344 = vmatpush.msra.mxu0 %v2191
    %2345 = vmatpush.msra.mxu0 %v2190
    %2346 = vmatpush.msra.mxu0 %v2189
    %2347 = vmatpush.msra.mxu0 %v2188
    %2348 = vmatpush.msra.mxu0 %v2187
    %2349 = vmatpush.msra.mxu0 %v2186
    %2350 = vmatpush.msra.mxu0 %v2185
    %2351 = vmatpush.msra.mxu0 %v2184
    %2352 = vmatpush.msra.mxu0 %v2183
    %2353 = vmatpush.msra.mxu0 %v2182
    %2354 = vmatmul.f32.gmra.mxu0 %v2133
    %v2355 = vpop.f32.mrf.mxu0
    %v2356 = vadd.f32 %v2336, %v2355
    %2357 = vdwg.mxu0
    %v2358 = vrcp.pop 8192.0
    %v2359 = vmul.f32 8192.0, %v2358
    %v2360 = vsub.f32 1.0, %v2359
    %v2361 = vmul.f32 %v2358, %v2360
    %v2362 = vadd.f32 %v2358, %v2361
    %vm2363 = vweird.f32 %v2358
    %v2364 = vsel %vm2363, %v2358, %v2362
    %v2365 = vmul.f32 %v2276, %v2364
    %v2366 = vmul.f32 %v2356, %v2364
    %v2367 = vmul.f32 %v2365, %v2365
    %v2368 = vsub.f32 %v2366, %v2367
    %v2369 = vmax.f32 %v2368, 0.0
    %v2370 = vadd.f32 %v2369, 0.0001
    %v2371 = vrsqrt.pop %v2370
    %v2372 = vmul.f32 %v2371, %v2370
    %v2373 = vmul.f32 %v2372, %v2371
    %v2374 = vmul.f32 0.5, %v2373
    %v2375 = vsub.f32 1.5, %v2374
    %v2376 = vmul.f32 %v2371, %v2375
    %vm2377 = vweird.f32 %v2370
    %vm2378 = vweird.f32 %v2371
    %vm2379 = vmor %vm2377, %vm2378
    %v2380 = vsel %vm2379, %v2371, %v2376
    %v2381 = vld [vmem:[%s6] sm:$0xff]
    %v2382 = vld [vmem:[%s6 + $0x8] sm:$0xff]
    %v2383 = vld [vmem:[%s6 + $0x10] sm:$0xff]
    %v2384 = vld [vmem:[%s6 + $0x18] sm:$0xff]
    %vm2385 = vcmask 64512
    %v2387 = vsel %vm2385, %v2365, 0
    %2389 = vmatpush.msra.mxu0 0.0
    %2390 = vmatpush.msra.mxu0 0.0
    %2391 = vmatpush.msra.mxu0 0.0
    %2392 = vmatpush.msra.mxu0 0.0
    %2393 = vmatpush.msra.mxu0 0.0
    %2394 = vmatpush.msra.mxu0 0.0
    %2395 = vmatpush.msra.mxu0 0.0
    %2396 = vmatpush.msra.mxu0 0.0
    %2397 = vmatpush.msra.mxu0 0.0
    %2398 = vmatpush.msra.mxu0 0.0
    %2399 = vmatpush.msra.mxu0 0.0
    %2400 = vmatpush.msra.mxu0 0.0
    %2401 = vmatpush.msra.mxu0 0.0
    %2402 = vmatpush.msra.mxu0 0.0
    %2403 = vmatpush.msra.mxu0 0.0
    %2404 = vmatpush.msra.mxu0 %v2381
    %2405 = vmatmul.f32.gmra.mxu0 %v2387
    %v2406 = vpop.f32.mrf.mxu0
    %v2407 = vadd.f32 0.0, %v2406
    %2408 = vdwg.mxu0
    %2409 = vmatpush.msra.mxu0 0.0
    %2410 = vmatpush.msra.mxu0 0.0
    %2411 = vmatpush.msra.mxu0 0.0
    %2412 = vmatpush.msra.mxu0 0.0
    %2413 = vmatpush.msra.mxu0 0.0
    %2414 = vmatpush.msra.mxu0 0.0
    %2415 = vmatpush.msra.mxu0 0.0
    %2416 = vmatpush.msra.mxu0 0.0
    %2417 = vmatpush.msra.mxu0 0.0
    %2418 = vmatpush.msra.mxu0 0.0
    %2419 = vmatpush.msra.mxu0 0.0
    %2420 = vmatpush.msra.mxu0 0.0
    %2421 = vmatpush.msra.mxu0 0.0
    %2422 = vmatpush.msra.mxu0 0.0
    %2423 = vmatpush.msra.mxu0 0.0
    %2424 = vmatpush.msra.mxu0 %v2382
    %2425 = vmatmul.f32.gmra.mxu0 %v2387
    %v2426 = vpop.f32.mrf.mxu0
    %v2427 = vadd.f32 0.0, %v2426
    %2428 = vdwg.mxu0
    %2429 = vmatpush.msra.mxu0 0.0
    %2430 = vmatpush.msra.mxu0 0.0
    %2431 = vmatpush.msra.mxu0 0.0
    %2432 = vmatpush.msra.mxu0 0.0
    %2433 = vmatpush.msra.mxu0 0.0
    %2434 = vmatpush.msra.mxu0 0.0
    %2435 = vmatpush.msra.mxu0 0.0
    %2436 = vmatpush.msra.mxu0 0.0
    %2437 = vmatpush.msra.mxu0 0.0
    %2438 = vmatpush.msra.mxu0 0.0
    %2439 = vmatpush.msra.mxu0 0.0
    %2440 = vmatpush.msra.mxu0 0.0
    %2441 = vmatpush.msra.mxu0 0.0
    %2442 = vmatpush.msra.mxu0 0.0
    %2443 = vmatpush.msra.mxu0 0.0
    %2444 = vmatpush.msra.mxu0 %v2383
    %2445 = vmatmul.f32.gmra.mxu0 %v2387
    %v2446 = vpop.f32.mrf.mxu0
    %v2447 = vadd.f32 0.0, %v2446
    %2448 = vdwg.mxu0
    %2449 = vmatpush.msra.mxu0 0.0
    %2450 = vmatpush.msra.mxu0 0.0
    %2451 = vmatpush.msra.mxu0 0.0
    %2452 = vmatpush.msra.mxu0 0.0
    %2453 = vmatpush.msra.mxu0 0.0
    %2454 = vmatpush.msra.mxu0 0.0
    %2455 = vmatpush.msra.mxu0 0.0
    %2456 = vmatpush.msra.mxu0 0.0
    %2457 = vmatpush.msra.mxu0 0.0
    %2458 = vmatpush.msra.mxu0 0.0
    %2459 = vmatpush.msra.mxu0 0.0
    %2460 = vmatpush.msra.mxu0 0.0
    %2461 = vmatpush.msra.mxu0 0.0
    %2462 = vmatpush.msra.mxu0 0.0
    %2463 = vmatpush.msra.mxu0 0.0
    %2464 = vmatpush.msra.mxu0 %v2384
    %2465 = vmatmul.f32.gmra.mxu0 %v2387
    %v2466 = vpop.f32.mrf.mxu0
    %v2467 = vadd.f32 0.0, %v2466
    %2468 = vdwg.mxu0
    %v2470 = vsel %vm2385, %v2380, 0
    %2472 = vmatpush.msra.mxu0 0.0
    %2473 = vmatpush.msra.mxu0 0.0
    %2474 = vmatpush.msra.mxu0 0.0
    %2475 = vmatpush.msra.mxu0 0.0
    %2476 = vmatpush.msra.mxu0 0.0
    %2477 = vmatpush.msra.mxu0 0.0
    %2478 = vmatpush.msra.mxu0 0.0
    %2479 = vmatpush.msra.mxu0 0.0
    %2480 = vmatpush.msra.mxu0 0.0
    %2481 = vmatpush.msra.mxu0 0.0
    %2482 = vmatpush.msra.mxu0 0.0
    %2483 = vmatpush.msra.mxu0 0.0
    %2484 = vmatpush.msra.mxu0 0.0
    %2485 = vmatpush.msra.mxu0 0.0
    %2486 = vmatpush.msra.mxu0 0.0
    %2487 = vmatpush.msra.mxu0 %v2381
    %2488 = vmatmul.f32.gmra.mxu0 %v2470
    %v2489 = vpop.f32.mrf.mxu0
    %v2490 = vadd.f32 0.0, %v2489
    %2491 = vdwg.mxu0
    %2492 = vmatpush.msra.mxu0 0.0
    %2493 = vmatpush.msra.mxu0 0.0
    %2494 = vmatpush.msra.mxu0 0.0
    %2495 = vmatpush.msra.mxu0 0.0
    %2496 = vmatpush.msra.mxu0 0.0
    %2497 = vmatpush.msra.mxu0 0.0
    %2498 = vmatpush.msra.mxu0 0.0
    %2499 = vmatpush.msra.mxu0 0.0
    %2500 = vmatpush.msra.mxu0 0.0
    %2501 = vmatpush.msra.mxu0 0.0
    %2502 = vmatpush.msra.mxu0 0.0
    %2503 = vmatpush.msra.mxu0 0.0
    %2504 = vmatpush.msra.mxu0 0.0
    %2505 = vmatpush.msra.mxu0 0.0
    %2506 = vmatpush.msra.mxu0 0.0
    %2507 = vmatpush.msra.mxu0 %v2382
    %2508 = vmatmul.f32.gmra.mxu0 %v2470
    %v2509 = vpop.f32.mrf.mxu0
    %v2510 = vadd.f32 0.0, %v2509
    %2511 = vdwg.mxu0
    %2512 = vmatpush.msra.mxu0 0.0
    %2513 = vmatpush.msra.mxu0 0.0
    %2514 = vmatpush.msra.mxu0 0.0
    %2515 = vmatpush.msra.mxu0 0.0
    %2516 = vmatpush.msra.mxu0 0.0
    %2517 = vmatpush.msra.mxu0 0.0
    %2518 = vmatpush.msra.mxu0 0.0
    %2519 = vmatpush.msra.mxu0 0.0
    %2520 = vmatpush.msra.mxu0 0.0
    %2521 = vmatpush.msra.mxu0 0.0
    %2522 = vmatpush.msra.mxu0 0.0
    %2523 = vmatpush.msra.mxu0 0.0
    %2524 = vmatpush.msra.mxu0 0.0
    %2525 = vmatpush.msra.mxu0 0.0
    %2526 = vmatpush.msra.mxu0 0.0
    %2527 = vmatpush.msra.mxu0 %v2383
    %2528 = vmatmul.f32.gmra.mxu0 %v2470
    %v2529 = vpop.f32.mrf.mxu0
    %v2530 = vadd.f32 0.0, %v2529
    %2531 = vdwg.mxu0
    %2532 = vmatpush.msra.mxu0 0.0
    %2533 = vmatpush.msra.mxu0 0.0
    %2534 = vmatpush.msra.mxu0 0.0
    %2535 = vmatpush.msra.mxu0 0.0
    %2536 = vmatpush.msra.mxu0 0.0
    %2537 = vmatpush.msra.mxu0 0.0
    %2538 = vmatpush.msra.mxu0 0.0
    %2539 = vmatpush.msra.mxu0 0.0
    %2540 = vmatpush.msra.mxu0 0.0
    %2541 = vmatpush.msra.mxu0 0.0
    %2542 = vmatpush.msra.mxu0 0.0
    %2543 = vmatpush.msra.mxu0 0.0
    %2544 = vmatpush.msra.mxu0 0.0
    %2545 = vmatpush.msra.mxu0 0.0
    %2546 = vmatpush.msra.mxu0 0.0
    %2547 = vmatpush.msra.mxu0 %v2384
    %2548 = vmatmul.f32.gmra.mxu0 %v2470
    %v2549 = vpop.f32.mrf.mxu0
    %v2550 = vadd.f32 0.0, %v2549
    %2551 = vdwg.mxu0
    %v2552 = vperm.slane %v2407, 0
    %v2553 = vperm.slane %v2427, 0
    %v2554 = vperm.slane %v2447, 0
    %v2555 = vperm.slane %v2467, 0
    %v2556 = vsub.f32 %v1422, %v2552
    %v2557 = vsub.f32 %v1569, %v2553
    %v2558 = vsub.f32 %v1716, %v2554
    %v2559 = vsub.f32 %v1863, %v2555
    %v2560 = vsub.f32 %v1424, %v2552
    %v2561 = vsub.f32 %v1571, %v2553
    %v2562 = vsub.f32 %v1718, %v2554
    %v2563 = vsub.f32 %v1865, %v2555
    %v2564 = vsub.f32 %v1427, %v2552
    %v2565 = vsub.f32 %v1574, %v2553
    %v2566 = vsub.f32 %v1721, %v2554
    %v2567 = vsub.f32 %v1868, %v2555
    %v2568 = vsub.f32 %v1429, %v2552
    %v2569 = vsub.f32 %v1576, %v2553
    %v2570 = vsub.f32 %v1723, %v2554
    %v2571 = vsub.f32 %v1870, %v2555
    %v2572 = vsub.f32 %v1432, %v2552
    %v2573 = vsub.f32 %v1579, %v2553
    %v2574 = vsub.f32 %v1726, %v2554
    %v2575 = vsub.f32 %v1873, %v2555
    %v2576 = vsub.f32 %v1434, %v2552
    %v2577 = vsub.f32 %v1581, %v2553
    %v2578 = vsub.f32 %v1728, %v2554
    %v2579 = vsub.f32 %v1875, %v2555
    %v2580 = vsub.f32 %v1437, %v2552
    %v2581 = vsub.f32 %v1584, %v2553
    %v2582 = vsub.f32 %v1731, %v2554
    %v2583 = vsub.f32 %v1878, %v2555
    %v2584 = vsub.f32 %v1439, %v2552
    %v2585 = vsub.f32 %v1586, %v2553
    %v2586 = vsub.f32 %v1733, %v2554
    %v2587 = vsub.f32 %v1880, %v2555
    %v2588 = vsub.f32 %v1442, %v2552
    %v2589 = vsub.f32 %v1589, %v2553
    %v2590 = vsub.f32 %v1736, %v2554
    %v2591 = vsub.f32 %v1883, %v2555
    %v2592 = vsub.f32 %v1444, %v2552
    %v2593 = vsub.f32 %v1591, %v2553
    %v2594 = vsub.f32 %v1738, %v2554
    %v2595 = vsub.f32 %v1885, %v2555
    %v2596 = vsub.f32 %v1447, %v2552
    %v2597 = vsub.f32 %v1594, %v2553
    %v2598 = vsub.f32 %v1741, %v2554
    %v2599 = vsub.f32 %v1888, %v2555
    %v2600 = vsub.f32 %v1449, %v2552
    %v2601 = vsub.f32 %v1596, %v2553
    %v2602 = vsub.f32 %v1743, %v2554
    %v2603 = vsub.f32 %v1890, %v2555
    %v2604 = vsub.f32 %v1452, %v2552
    %v2605 = vsub.f32 %v1599, %v2553
    %v2606 = vsub.f32 %v1746, %v2554
    %v2607 = vsub.f32 %v1893, %v2555
    %v2608 = vsub.f32 %v1454, %v2552
    %v2609 = vsub.f32 %v1601, %v2553
    %v2610 = vsub.f32 %v1748, %v2554
    %v2611 = vsub.f32 %v1895, %v2555
    %v2612 = vsub.f32 %v1457, %v2552
    %v2613 = vsub.f32 %v1604, %v2553
    %v2614 = vsub.f32 %v1751, %v2554
    %v2615 = vsub.f32 %v1898, %v2555
    %v2616 = vsub.f32 %v1459, %v2552
    %v2617 = vsub.f32 %v1606, %v2553
    %v2618 = vsub.f32 %v1753, %v2554
    %v2619 = vsub.f32 %v1900, %v2555
    %v2620 = vperm.slane %v2490, 0
    %v2621 = vperm.slane %v2510, 0
    %v2622 = vperm.slane %v2530, 0
    %v2623 = vperm.slane %v2550, 0
    %v2624 = vmul.f32 %v2556, %v2620
    %v2625 = vmul.f32 %v2557, %v2621
    %v2626 = vmul.f32 %v2558, %v2622
    %v2627 = vmul.f32 %v2559, %v2623
    %v2628 = vmul.f32 %v2560, %v2620
    %v2629 = vmul.f32 %v2561, %v2621
    %v2630 = vmul.f32 %v2562, %v2622
    %v2631 = vmul.f32 %v2563, %v2623
    %v2632 = vmul.f32 %v2564, %v2620
    %v2633 = vmul.f32 %v2565, %v2621
    %v2634 = vmul.f32 %v2566, %v2622
    %v2635 = vmul.f32 %v2567, %v2623
    %v2636 = vmul.f32 %v2568, %v2620
    %v2637 = vmul.f32 %v2569, %v2621
    %v2638 = vmul.f32 %v2570, %v2622
    %v2639 = vmul.f32 %v2571, %v2623
    %v2640 = vmul.f32 %v2572, %v2620
    %v2641 = vmul.f32 %v2573, %v2621
    %v2642 = vmul.f32 %v2574, %v2622
    %v2643 = vmul.f32 %v2575, %v2623
    %v2644 = vmul.f32 %v2576, %v2620
    %v2645 = vmul.f32 %v2577, %v2621
    %v2646 = vmul.f32 %v2578, %v2622
    %v2647 = vmul.f32 %v2579, %v2623
    %v2648 = vmul.f32 %v2580, %v2620
    %v2649 = vmul.f32 %v2581, %v2621
    %v2650 = vmul.f32 %v2582, %v2622
    %v2651 = vmul.f32 %v2583, %v2623
    %v2652 = vmul.f32 %v2584, %v2620
    %v2653 = vmul.f32 %v2585, %v2621
    %v2654 = vmul.f32 %v2586, %v2622
    %v2655 = vmul.f32 %v2587, %v2623
    %v2656 = vmul.f32 %v2588, %v2620
    %v2657 = vmul.f32 %v2589, %v2621
    %v2658 = vmul.f32 %v2590, %v2622
    %v2659 = vmul.f32 %v2591, %v2623
    %v2660 = vmul.f32 %v2592, %v2620
    %v2661 = vmul.f32 %v2593, %v2621
    %v2662 = vmul.f32 %v2594, %v2622
    %v2663 = vmul.f32 %v2595, %v2623
    %v2664 = vmul.f32 %v2596, %v2620
    %v2665 = vmul.f32 %v2597, %v2621
    %v2666 = vmul.f32 %v2598, %v2622
    %v2667 = vmul.f32 %v2599, %v2623
    %v2668 = vmul.f32 %v2600, %v2620
    %v2669 = vmul.f32 %v2601, %v2621
    %v2670 = vmul.f32 %v2602, %v2622
    %v2671 = vmul.f32 %v2603, %v2623
    %v2672 = vmul.f32 %v2604, %v2620
    %v2673 = vmul.f32 %v2605, %v2621
    %v2674 = vmul.f32 %v2606, %v2622
    %v2675 = vmul.f32 %v2607, %v2623
    %v2676 = vmul.f32 %v2608, %v2620
    %v2677 = vmul.f32 %v2609, %v2621
    %v2678 = vmul.f32 %v2610, %v2622
    %v2679 = vmul.f32 %v2611, %v2623
    %v2680 = vmul.f32 %v2612, %v2620
    %v2681 = vmul.f32 %v2613, %v2621
    %v2682 = vmul.f32 %v2614, %v2622
    %v2683 = vmul.f32 %v2615, %v2623
    %v2684 = vmul.f32 %v2616, %v2620
    %v2685 = vmul.f32 %v2617, %v2621
    %v2686 = vmul.f32 %v2618, %v2622
    %v2687 = vmul.f32 %v2619, %v2623
    %vm2688 = vcmp.ge.f32.partialorder %v2624, 0.0
    %vm2689 = vcmp.ge.f32.partialorder %v2625, 0.0
    %vm2690 = vcmp.ge.f32.partialorder %v2626, 0.0
    %vm2691 = vcmp.ge.f32.partialorder %v2627, 0.0
    %vm2692 = vcmp.ge.f32.partialorder %v2628, 0.0
    %vm2693 = vcmp.ge.f32.partialorder %v2629, 0.0
    %vm2694 = vcmp.ge.f32.partialorder %v2630, 0.0
    %vm2695 = vcmp.ge.f32.partialorder %v2631, 0.0
    %vm2696 = vcmp.ge.f32.partialorder %v2632, 0.0
    %vm2697 = vcmp.ge.f32.partialorder %v2633, 0.0
    %vm2698 = vcmp.ge.f32.partialorder %v2634, 0.0
    %vm2699 = vcmp.ge.f32.partialorder %v2635, 0.0
    %vm2700 = vcmp.ge.f32.partialorder %v2636, 0.0
    %vm2701 = vcmp.ge.f32.partialorder %v2637, 0.0
    %vm2702 = vcmp.ge.f32.partialorder %v2638, 0.0
    %vm2703 = vcmp.ge.f32.partialorder %v2639, 0.0
    %vm2704 = vcmp.ge.f32.partialorder %v2640, 0.0
    %vm2705 = vcmp.ge.f32.partialorder %v2641, 0.0
    %vm2706 = vcmp.ge.f32.partialorder %v2642, 0.0
    %vm2707 = vcmp.ge.f32.partialorder %v2643, 0.0
    %vm2708 = vcmp.ge.f32.partialorder %v2644, 0.0
    %vm2709 = vcmp.ge.f32.partialorder %v2645, 0.0
    %vm2710 = vcmp.ge.f32.partialorder %v2646, 0.0
    %vm2711 = vcmp.ge.f32.partialorder %v2647, 0.0
    %vm2712 = vcmp.ge.f32.partialorder %v2648, 0.0
    %vm2713 = vcmp.ge.f32.partialorder %v2649, 0.0
    %vm2714 = vcmp.ge.f32.partialorder %v2650, 0.0
    %vm2715 = vcmp.ge.f32.partialorder %v2651, 0.0
    %vm2716 = vcmp.ge.f32.partialorder %v2652, 0.0
    %vm2717 = vcmp.ge.f32.partialorder %v2653, 0.0
    %vm2718 = vcmp.ge.f32.partialorder %v2654, 0.0
    %vm2719 = vcmp.ge.f32.partialorder %v2655, 0.0
    %vm2720 = vcmp.ge.f32.partialorder %v2656, 0.0
    %vm2721 = vcmp.ge.f32.partialorder %v2657, 0.0
    %vm2722 = vcmp.ge.f32.partialorder %v2658, 0.0
    %vm2723 = vcmp.ge.f32.partialorder %v2659, 0.0
    %vm2724 = vcmp.ge.f32.partialorder %v2660, 0.0
    %vm2725 = vcmp.ge.f32.partialorder %v2661, 0.0
    %vm2726 = vcmp.ge.f32.partialorder %v2662, 0.0
    %vm2727 = vcmp.ge.f32.partialorder %v2663, 0.0
    %vm2728 = vcmp.ge.f32.partialorder %v2664, 0.0
    %vm2729 = vcmp.ge.f32.partialorder %v2665, 0.0
    %vm2730 = vcmp.ge.f32.partialorder %v2666, 0.0
    %vm2731 = vcmp.ge.f32.partialorder %v2667, 0.0
    %vm2732 = vcmp.ge.f32.partialorder %v2668, 0.0
    %vm2733 = vcmp.ge.f32.partialorder %v2669, 0.0
    %vm2734 = vcmp.ge.f32.partialorder %v2670, 0.0
    %vm2735 = vcmp.ge.f32.partialorder %v2671, 0.0
    %vm2736 = vcmp.ge.f32.partialorder %v2672, 0.0
    %vm2737 = vcmp.ge.f32.partialorder %v2673, 0.0
    %vm2738 = vcmp.ge.f32.partialorder %v2674, 0.0
    %vm2739 = vcmp.ge.f32.partialorder %v2675, 0.0
    %vm2740 = vcmp.ge.f32.partialorder %v2676, 0.0
    %vm2741 = vcmp.ge.f32.partialorder %v2677, 0.0
    %vm2742 = vcmp.ge.f32.partialorder %v2678, 0.0
    %vm2743 = vcmp.ge.f32.partialorder %v2679, 0.0
    %vm2744 = vcmp.ge.f32.partialorder %v2680, 0.0
    %vm2745 = vcmp.ge.f32.partialorder %v2681, 0.0
    %vm2746 = vcmp.ge.f32.partialorder %v2682, 0.0
    %vm2747 = vcmp.ge.f32.partialorder %v2683, 0.0
    %vm2748 = vcmp.ge.f32.partialorder %v2684, 0.0
    %vm2749 = vcmp.ge.f32.partialorder %v2685, 0.0
    %vm2750 = vcmp.ge.f32.partialorder %v2686, 0.0
    %vm2751 = vcmp.ge.f32.partialorder %v2687, 0.0
    %v2752 = vmul.f32 %v2624, 0.01
    %v2753 = vmul.f32 %v2625, 0.01
    %v2754 = vmul.f32 %v2626, 0.01
    %v2755 = vmul.f32 %v2627, 0.01
    %v2756 = vmul.f32 %v2628, 0.01
    %v2757 = vmul.f32 %v2629, 0.01
    %v2758 = vmul.f32 %v2630, 0.01
    %v2759 = vmul.f32 %v2631, 0.01
    %v2760 = vmul.f32 %v2632, 0.01
    %v2761 = vmul.f32 %v2633, 0.01
    %v2762 = vmul.f32 %v2634, 0.01
    %v2763 = vmul.f32 %v2635, 0.01
    %v2764 = vmul.f32 %v2636, 0.01
    %v2765 = vmul.f32 %v2637, 0.01
    %v2766 = vmul.f32 %v2638, 0.01
    %v2767 = vmul.f32 %v2639, 0.01
    %v2768 = vmul.f32 %v2640, 0.01
    %v2769 = vmul.f32 %v2641, 0.01
    %v2770 = vmul.f32 %v2642, 0.01
    %v2771 = vmul.f32 %v2643, 0.01
    %v2772 = vmul.f32 %v2644, 0.01
    %v2773 = vmul.f32 %v2645, 0.01
    %v2774 = vmul.f32 %v2646, 0.01
    %v2775 = vmul.f32 %v2647, 0.01
    %v2776 = vmul.f32 %v2648, 0.01
    %v2777 = vmul.f32 %v2649, 0.01
    %v2778 = vmul.f32 %v2650, 0.01
    %v2779 = vmul.f32 %v2651, 0.01
    %v2780 = vmul.f32 %v2652, 0.01
    %v2781 = vmul.f32 %v2653, 0.01
    %v2782 = vmul.f32 %v2654, 0.01
    %v2783 = vmul.f32 %v2655, 0.01
    %v2784 = vmul.f32 %v2656, 0.01
    %v2785 = vmul.f32 %v2657, 0.01
    %v2786 = vmul.f32 %v2658, 0.01
    %v2787 = vmul.f32 %v2659, 0.01
    %v2788 = vmul.f32 %v2660, 0.01
    %v2789 = vmul.f32 %v2661, 0.01
    %v2790 = vmul.f32 %v2662, 0.01
    %v2791 = vmul.f32 %v2663, 0.01
    %v2792 = vmul.f32 %v2664, 0.01
    %v2793 = vmul.f32 %v2665, 0.01
    %v2794 = vmul.f32 %v2666, 0.01
    %v2795 = vmul.f32 %v2667, 0.01
    %v2796 = vmul.f32 %v2668, 0.01
    %v2797 = vmul.f32 %v2669, 0.01
    %v2798 = vmul.f32 %v2670, 0.01
    %v2799 = vmul.f32 %v2671, 0.01
    %v2800 = vmul.f32 %v2672, 0.01
    %v2801 = vmul.f32 %v2673, 0.01
    %v2802 = vmul.f32 %v2674, 0.01
    %v2803 = vmul.f32 %v2675, 0.01
    %v2804 = vmul.f32 %v2676, 0.01
    %v2805 = vmul.f32 %v2677, 0.01
    %v2806 = vmul.f32 %v2678, 0.01
    %v2807 = vmul.f32 %v2679, 0.01
    %v2808 = vmul.f32 %v2680, 0.01
    %v2809 = vmul.f32 %v2681, 0.01
    %v2810 = vmul.f32 %v2682, 0.01
    %v2811 = vmul.f32 %v2683, 0.01
    %v2812 = vmul.f32 %v2684, 0.01
    %v2813 = vmul.f32 %v2685, 0.01
    %v2814 = vmul.f32 %v2686, 0.01
    %v2815 = vmul.f32 %v2687, 0.01
    %v2816 = vsel %vm2688, %v2624, %v2752
    %v2817 = vsel %vm2689, %v2625, %v2753
    %v2818 = vsel %vm2690, %v2626, %v2754
    %v2819 = vsel %vm2691, %v2627, %v2755
    %v2820 = vsel %vm2692, %v2628, %v2756
    %v2821 = vsel %vm2693, %v2629, %v2757
    %v2822 = vsel %vm2694, %v2630, %v2758
    %v2823 = vsel %vm2695, %v2631, %v2759
    %v2824 = vsel %vm2696, %v2632, %v2760
    %v2825 = vsel %vm2697, %v2633, %v2761
    %v2826 = vsel %vm2698, %v2634, %v2762
    %v2827 = vsel %vm2699, %v2635, %v2763
    %v2828 = vsel %vm2700, %v2636, %v2764
    %v2829 = vsel %vm2701, %v2637, %v2765
    %v2830 = vsel %vm2702, %v2638, %v2766
    %v2831 = vsel %vm2703, %v2639, %v2767
    %v2832 = vsel %vm2704, %v2640, %v2768
    %v2833 = vsel %vm2705, %v2641, %v2769
    %v2834 = vsel %vm2706, %v2642, %v2770
    %v2835 = vsel %vm2707, %v2643, %v2771
    %v2836 = vsel %vm2708, %v2644, %v2772
    %v2837 = vsel %vm2709, %v2645, %v2773
    %v2838 = vsel %vm2710, %v2646, %v2774
    %v2839 = vsel %vm2711, %v2647, %v2775
    %v2840 = vsel %vm2712, %v2648, %v2776
    %v2841 = vsel %vm2713, %v2649, %v2777
    %v2842 = vsel %vm2714, %v2650, %v2778
    %v2843 = vsel %vm2715, %v2651, %v2779
    %v2844 = vsel %vm2716, %v2652, %v2780
    %v2845 = vsel %vm2717, %v2653, %v2781
    %v2846 = vsel %vm2718, %v2654, %v2782
    %v2847 = vsel %vm2719, %v2655, %v2783
    %v2848 = vsel %vm2720, %v2656, %v2784
    %v2849 = vsel %vm2721, %v2657, %v2785
    %v2850 = vsel %vm2722, %v2658, %v2786
    %v2851 = vsel %vm2723, %v2659, %v2787
    %v2852 = vsel %vm2724, %v2660, %v2788
    %v2853 = vsel %vm2725, %v2661, %v2789
    %v2854 = vsel %vm2726, %v2662, %v2790
    %v2855 = vsel %vm2727, %v2663, %v2791
    %v2856 = vsel %vm2728, %v2664, %v2792
    %v2857 = vsel %vm2729, %v2665, %v2793
    %v2858 = vsel %vm2730, %v2666, %v2794
    %v2859 = vsel %vm2731, %v2667, %v2795
    %v2860 = vsel %vm2732, %v2668, %v2796
    %v2861 = vsel %vm2733, %v2669, %v2797
    %v2862 = vsel %vm2734, %v2670, %v2798
    %v2863 = vsel %vm2735, %v2671, %v2799
    %v2864 = vsel %vm2736, %v2672, %v2800
    %v2865 = vsel %vm2737, %v2673, %v2801
    %v2866 = vsel %vm2738, %v2674, %v2802
    %v2867 = vsel %vm2739, %v2675, %v2803
    %v2868 = vsel %vm2740, %v2676, %v2804
    %v2869 = vsel %vm2741, %v2677, %v2805
    %v2870 = vsel %vm2742, %v2678, %v2806
    %v2871 = vsel %vm2743, %v2679, %v2807
    %v2872 = vsel %vm2744, %v2680, %v2808
    %v2873 = vsel %vm2745, %v2681, %v2809
    %v2874 = vsel %vm2746, %v2682, %v2810
    %v2875 = vsel %vm2747, %v2683, %v2811
    %v2876 = vsel %vm2748, %v2684, %v2812
    %v2877 = vsel %vm2749, %v2685, %v2813
    %v2878 = vsel %vm2750, %v2686, %v2814
    %v2879 = vsel %vm2751, %v2687, %v2815
    %v2880 = vmax.f32 %v2816, %v2818
    %v2881 = vmax.f32 %v2817, %v2819
    %v2882 = vmax.f32 %v2820, %v2822
    %v2883 = vmax.f32 %v2821, %v2823
    %v2884 = vmax.f32 %v2824, %v2826
    %v2885 = vmax.f32 %v2825, %v2827
    %v2886 = vmax.f32 %v2828, %v2830
    %v2887 = vmax.f32 %v2829, %v2831
    %v2888 = vmax.f32 %v2832, %v2834
    %v2889 = vmax.f32 %v2833, %v2835
    %v2890 = vmax.f32 %v2836, %v2838
    %v2891 = vmax.f32 %v2837, %v2839
    %v2892 = vmax.f32 %v2840, %v2842
    %v2893 = vmax.f32 %v2841, %v2843
    %v2894 = vmax.f32 %v2844, %v2846
    %v2895 = vmax.f32 %v2845, %v2847
    %v2896 = vmax.f32 %v2848, %v2850
    %v2897 = vmax.f32 %v2849, %v2851
    %v2898 = vmax.f32 %v2852, %v2854
    %v2899 = vmax.f32 %v2853, %v2855
    %v2900 = vmax.f32 %v2856, %v2858
    %v2901 = vmax.f32 %v2857, %v2859
    %v2902 = vmax.f32 %v2860, %v2862
    %v2903 = vmax.f32 %v2861, %v2863
    %v2904 = vmax.f32 %v2864, %v2866
    %v2905 = vmax.f32 %v2865, %v2867
    %v2906 = vmax.f32 %v2868, %v2870
    %v2907 = vmax.f32 %v2869, %v2871
    %v2908 = vmax.f32 %v2872, %v2874
    %v2909 = vmax.f32 %v2873, %v2875
    %v2910 = vmax.f32 %v2876, %v2878
    %v2911 = vmax.f32 %v2877, %v2879
    %v2912 = vpack.c.bf16 %v2881, %v2880
    %v2913 = vpack.c.bf16 %v2883, %v2882
    %v2914 = vpack.c.bf16 %v2885, %v2884
    %v2915 = vpack.c.bf16 %v2887, %v2886
    %v2916 = vpack.c.bf16 %v2889, %v2888
    %v2917 = vpack.c.bf16 %v2891, %v2890
    %v2918 = vpack.c.bf16 %v2893, %v2892
    %v2919 = vpack.c.bf16 %v2895, %v2894
    %v2920 = vpack.c.bf16 %v2897, %v2896
    %v2921 = vpack.c.bf16 %v2899, %v2898
    %v2922 = vpack.c.bf16 %v2901, %v2900
    %v2923 = vpack.c.bf16 %v2903, %v2902
    %v2924 = vpack.c.bf16 %v2905, %v2904
    %v2925 = vpack.c.bf16 %v2907, %v2906
    %v2926 = vpack.c.bf16 %v2909, %v2908
    %v2927 = vpack.c.bf16 %v2911, %v2910
    %v2928 = vld [vmem:[%s4] sm:$0xf]
    %v2929 = vld [vmem:[%s4 + $0x4] sm:$0xf]
    %v2930 = vld [vmem:[%s4 + $0x8] sm:$0xf]
    %v2931 = vld [vmem:[%s4 + $0xc] sm:$0xf]
    %v2932 = vld [vmem:[%s4 + $0x10] sm:$0xf]
    %v2933 = vld [vmem:[%s4 + $0x14] sm:$0xf]
    %v2934 = vld [vmem:[%s4 + $0x18] sm:$0xf]
    %v2935 = vld [vmem:[%s4 + $0x1c] sm:$0xf]
    %v2944 = vunpack.c.l.b16 %v2928
    %v2945 = vunpack.c.l.b16 %v2929
    %v2946 = vunpack.c.l.b16 %v2930
    %v2947 = vunpack.c.l.b16 %v2931
    %v2948 = vunpack.c.l.b16 %v2932
    %v2949 = vunpack.c.l.b16 %v2933
    %v2950 = vunpack.c.l.b16 %v2934
    %v2951 = vunpack.c.l.b16 %v2935
    %v2952 = vpack.c.b16 %v2945, %v2944
    %v2953 = vpack.c.b16 %v2947, %v2946
    %v2954 = vpack.c.b16 %v2949, %v2948
    %v2955 = vpack.c.b16 %v2951, %v2950
    %v2964 = vunpack.c.l.b16 %v2912
    %v2965 = vunpack.c.h.b16 %v2912
    %v2966 = vunpack.c.l.b16 %v2913
    %v2967 = vunpack.c.h.b16 %v2913
    %v2968 = vunpack.c.l.b16 %v2914
    %v2969 = vunpack.c.h.b16 %v2914
    %v2970 = vunpack.c.l.b16 %v2915
    %v2971 = vunpack.c.h.b16 %v2915
    %v2972 = vunpack.c.l.b16 %v2916
    %v2973 = vunpack.c.h.b16 %v2916
    %v2974 = vunpack.c.l.b16 %v2917
    %v2975 = vunpack.c.h.b16 %v2917
    %v2976 = vunpack.c.l.b16 %v2918
    %v2977 = vunpack.c.h.b16 %v2918
    %v2978 = vunpack.c.l.b16 %v2919
    %v2979 = vunpack.c.h.b16 %v2919
    %v2980 = vpack.c.b16 %v2966, %v2964
    %v2981 = vpack.c.b16 %v2967, %v2965
    %v2982 = vpack.c.b16 %v2970, %v2968
    %v2983 = vpack.c.b16 %v2971, %v2969
    %v2984 = vpack.c.b16 %v2974, %v2972
    %v2985 = vpack.c.b16 %v2975, %v2973
    %v2986 = vpack.c.b16 %v2978, %v2976
    %v2987 = vpack.c.b16 %v2979, %v2977
    %v2997 = vsel %vm745, %v2952, 0
    %v3000 = vsel %vm745, %v2953, 0
    %v3003 = vsel %vm745, %v2954, 0
    %v3006 = vsel %vm745, %v2955, 0
    %3008 = vmatpush.bf16.msra.mxu0 0
    %3009 = vmatpush.bf16.msra.mxu0 0
    %3010 = vmatpush.bf16.msra.mxu0 0
    %3011 = vmatpush.bf16.msra.mxu0 0
    %3012 = vmatpush.bf16.msra.mxu0 %v2986
    %3013 = vmatpush.bf16.msra.mxu0 %v2984
    %3014 = vmatpush.bf16.msra.mxu0 %v2982
    %3015 = vmatpush.bf16.msra.mxu0 %v2980
    %3016 = vmatmul.bf16.gmra.mxu0 %v2997
    %v3017 = vpop.f32.mrf.mxu0
    %v3018 = vadd.f32 0.0, %v3017
    %v3019 = vpop.f32.mrf.mxu0
    %v3020 = vadd.f32 0.0, %v3019
    %3021 = vmatmul.bf16.gmra.mxu0 %v3000
    %v3022 = vpop.f32.mrf.mxu0
    %v3023 = vadd.f32 0.0, %v3022
    %v3024 = vpop.f32.mrf.mxu0
    %v3025 = vadd.f32 0.0, %v3024
    %3026 = vmatmul.bf16.gmra.mxu0 %v3003
    %v3027 = vpop.f32.mrf.mxu0
    %v3028 = vadd.f32 0.0, %v3027
    %v3029 = vpop.f32.mrf.mxu0
    %v3030 = vadd.f32 0.0, %v3029
    %3031 = vmatmul.bf16.gmra.mxu0 %v3006
    %v3032 = vpop.f32.mrf.mxu0
    %v3033 = vadd.f32 0.0, %v3032
    %v3034 = vpop.f32.mrf.mxu0
    %v3035 = vadd.f32 0.0, %v3034
    %3036 = vdwg.mxu0
    %3037 = vmatpush.bf16.msra.mxu0 0
    %3038 = vmatpush.bf16.msra.mxu0 0
    %3039 = vmatpush.bf16.msra.mxu0 0
    %3040 = vmatpush.bf16.msra.mxu0 0
    %3041 = vmatpush.bf16.msra.mxu0 %v2987
    %3042 = vmatpush.bf16.msra.mxu0 %v2985
    %3043 = vmatpush.bf16.msra.mxu0 %v2983
    %3044 = vmatpush.bf16.msra.mxu0 %v2981
    %3045 = vmatmul.bf16.gmra.mxu0 %v2997
    %v3046 = vpop.f32.mrf.mxu0
    %v3047 = vadd.f32 0.0, %v3046
    %v3048 = vpop.f32.mrf.mxu0
    %v3049 = vadd.f32 0.0, %v3048
    %3050 = vmatmul.bf16.gmra.mxu0 %v3000
    %v3051 = vpop.f32.mrf.mxu0
    %v3052 = vadd.f32 0.0, %v3051
    %v3053 = vpop.f32.mrf.mxu0
    %v3054 = vadd.f32 0.0, %v3053
    %3055 = vmatmul.bf16.gmra.mxu0 %v3003
    %v3056 = vpop.f32.mrf.mxu0
    %v3057 = vadd.f32 0.0, %v3056
    %v3058 = vpop.f32.mrf.mxu0
    %v3059 = vadd.f32 0.0, %v3058
    %3060 = vmatmul.bf16.gmra.mxu0 %v3006
    %v3061 = vpop.f32.mrf.mxu0
    %v3062 = vadd.f32 0.0, %v3061
    %v3063 = vpop.f32.mrf.mxu0
    %v3064 = vadd.f32 0.0, %v3063
    %3065 = vdwg.mxu0
    %v3074 = vunpack.c.l.b16 %v2920
    %v3075 = vunpack.c.h.b16 %v2920
    %v3076 = vunpack.c.l.b16 %v2921
    %v3077 = vunpack.c.h.b16 %v2921
    %v3078 = vunpack.c.l.b16 %v2922
    %v3079 = vunpack.c.h.b16 %v2922
    %v3080 = vunpack.c.l.b16 %v2923
    %v3081 = vunpack.c.h.b16 %v2923
    %v3082 = vunpack.c.l.b16 %v2924
    %v3083 = vunpack.c.h.b16 %v2924
    %v3084 = vunpack.c.l.b16 %v2925
    %v3085 = vunpack.c.h.b16 %v2925
    %v3086 = vunpack.c.l.b16 %v2926
    %v3087 = vunpack.c.h.b16 %v2926
    %v3088 = vunpack.c.l.b16 %v2927
    %v3089 = vunpack.c.h.b16 %v2927
    %v3090 = vpack.c.b16 %v3076, %v3074
    %v3091 = vpack.c.b16 %v3077, %v3075
    %v3092 = vpack.c.b16 %v3080, %v3078
    %v3093 = vpack.c.b16 %v3081, %v3079
    %v3094 = vpack.c.b16 %v3084, %v3082
    %v3095 = vpack.c.b16 %v3085, %v3083
    %v3096 = vpack.c.b16 %v3088, %v3086
    %v3097 = vpack.c.b16 %v3089, %v3087
    %3106 = vmatpush.bf16.msra.mxu0 0
    %3107 = vmatpush.bf16.msra.mxu0 0
    %3108 = vmatpush.bf16.msra.mxu0 0
    %3109 = vmatpush.bf16.msra.mxu0 0
    %3110 = vmatpush.bf16.msra.mxu0 %v3096
    %3111 = vmatpush.bf16.msra.mxu0 %v3094
    %3112 = vmatpush.bf16.msra.mxu0 %v3092
    %3113 = vmatpush.bf16.msra.mxu0 %v3090
    %3114 = vmatmul.bf16.gmra.mxu0 %v2997
    %v3115 = vpop.f32.mrf.mxu0
    %v3116 = vadd.f32 0.0, %v3115
    %v3117 = vpop.f32.mrf.mxu0
    %v3118 = vadd.f32 0.0, %v3117
    %3119 = vmatmul.bf16.gmra.mxu0 %v3000
    %v3120 = vpop.f32.mrf.mxu0
    %v3121 = vadd.f32 0.0, %v3120
    %v3122 = vpop.f32.mrf.mxu0
    %v3123 = vadd.f32 0.0, %v3122
    %3124 = vmatmul.bf16.gmra.mxu0 %v3003
    %v3125 = vpop.f32.mrf.mxu0
    %v3126 = vadd.f32 0.0, %v3125
    %v3127 = vpop.f32.mrf.mxu0
    %v3128 = vadd.f32 0.0, %v3127
    %3129 = vmatmul.bf16.gmra.mxu0 %v3006
    %v3130 = vpop.f32.mrf.mxu0
    %v3131 = vadd.f32 0.0, %v3130
    %v3132 = vpop.f32.mrf.mxu0
    %v3133 = vadd.f32 0.0, %v3132
    %3134 = vdwg.mxu0
    %3135 = vmatpush.bf16.msra.mxu0 0
    %3136 = vmatpush.bf16.msra.mxu0 0
    %3137 = vmatpush.bf16.msra.mxu0 0
    %3138 = vmatpush.bf16.msra.mxu0 0
    %3139 = vmatpush.bf16.msra.mxu0 %v3097
    %3140 = vmatpush.bf16.msra.mxu0 %v3095
    %3141 = vmatpush.bf16.msra.mxu0 %v3093
    %3142 = vmatpush.bf16.msra.mxu0 %v3091
    %3143 = vmatmul.bf16.gmra.mxu0 %v2997
    %v3144 = vpop.f32.mrf.mxu0
    %v3145 = vadd.f32 0.0, %v3144
    %v3146 = vpop.f32.mrf.mxu0
    %v3147 = vadd.f32 0.0, %v3146
    %3148 = vmatmul.bf16.gmra.mxu0 %v3000
    %v3149 = vpop.f32.mrf.mxu0
    %v3150 = vadd.f32 0.0, %v3149
    %v3151 = vpop.f32.mrf.mxu0
    %v3152 = vadd.f32 0.0, %v3151
    %3153 = vmatmul.bf16.gmra.mxu0 %v3003
    %v3154 = vpop.f32.mrf.mxu0
    %v3155 = vadd.f32 0.0, %v3154
    %v3156 = vpop.f32.mrf.mxu0
    %v3157 = vadd.f32 0.0, %v3156
    %3158 = vmatmul.bf16.gmra.mxu0 %v3006
    %v3159 = vpop.f32.mrf.mxu0
    %v3160 = vadd.f32 0.0, %v3159
    %v3161 = vpop.f32.mrf.mxu0
    %v3162 = vadd.f32 0.0, %v3161
    %3163 = vdwg.mxu0
    %v3164 = vmax.f32 %v3018, %v3028
    %v3165 = vmax.f32 %v3047, %v3057
    %v3166 = vmax.f32 %v3020, %v3030
    %v3167 = vmax.f32 %v3049, %v3059
    %v3168 = vmax.f32 %v3023, %v3033
    %v3169 = vmax.f32 %v3052, %v3062
    %v3170 = vmax.f32 %v3025, %v3035
    %v3171 = vmax.f32 %v3054, %v3064
    %v3172 = vmax.f32 %v3116, %v3126
    %v3173 = vmax.f32 %v3145, %v3155
    %v3174 = vmax.f32 %v3118, %v3128
    %v3175 = vmax.f32 %v3147, %v3157
    %v3176 = vmax.f32 %v3121, %v3131
    %v3177 = vmax.f32 %v3150, %v3160
    %v3178 = vmax.f32 %v3123, %v3133
    %v3179 = vmax.f32 %v3152, %v3162
    %3180 = vst [vmem:[#allocation3] sm:$0x11] 0
    %3181 = vst [vmem:[#allocation3 + $0x28] sm:$0x11] 0
    %3182 = vst [vmem:[#allocation3 + $0x20] sm:$0x22] 0
    %3183 = vst [vmem:[#allocation3 + $0x48] sm:$0x22] 0
    %v3184 = vpack.c.bf16 %v3165, %v3164
    %v3185 = vpack.c.bf16 %v3167, %v3166
    %v3186 = vpack.c.bf16 %v3169, %v3168
    %v3187 = vpack.c.bf16 %v3171, %v3170
    %v3188 = vpack.c.bf16 %v3173, %v3172
    %v3189 = vpack.c.bf16 %v3175, %v3174
    %v3190 = vpack.c.bf16 %v3177, %v3176
    %v3191 = vpack.c.bf16 %v3179, %v3178
    %v3200 = vrot.slane %v3184, 7
    %v3201 = vrot.slane %v3200, 4
    %v3202 = vrot.slane %v3185, 7
    %v3203 = vsel %vm74, %v3201, %v3202
    %v3204 = vrot.slane %v3202, 4
    %v3205 = vrot.slane %v3186, 7
    %v3206 = vsel %vm74, %v3204, %v3205
    %v3207 = vrot.slane %v3205, 4
    %v3208 = vrot.slane %v3187, 7
    %v3209 = vsel %vm74, %v3207, %v3208
    %v3210 = vrot.slane %v3208, 4
    %v3211 = vrot.slane %v3188, 7
    %v3212 = vrot.slane %v3211, 4
    %v3213 = vrot.slane %v3189, 7
    %v3214 = vsel %vm74, %v3212, %v3213
    %v3215 = vrot.slane %v3213, 4
    %v3216 = vrot.slane %v3190, 7
    %v3217 = vsel %vm74, %v3215, %v3216
    %v3218 = vrot.slane %v3216, 4
    %v3219 = vrot.slane %v3191, 7
    %v3220 = vsel %vm74, %v3218, %v3219
    %v3221 = vrot.slane %v3219, 4
    %3232 = vst [vmem:[#allocation3] sm:$0xee] %v3200
    %3233 = vst [vmem:[#allocation3 + $0x8] sm:$0xff] %v3203
    %3234 = vst [vmem:[#allocation3 + $0x10] sm:$0xff] %v3206
    %3235 = vst [vmem:[#allocation3 + $0x18] sm:$0xff] %v3209
    %3236 = vst [vmem:[#allocation3 + $0x20] sm:$0x11] %v3210
    %3237 = vst [vmem:[#allocation3 + $0x28] sm:$0xee] %v3211
    %3238 = vst [vmem:[#allocation3 + $0x30] sm:$0xff] %v3214
    %3239 = vst [vmem:[#allocation3 + $0x38] sm:$0xff] %v3217
    %3240 = vst [vmem:[#allocation3 + $0x40] sm:$0xff] %v3220
    %3241 = vst [vmem:[#allocation3 + $0x48] sm:$0x11] %v3221
    %v3242 = vld [vmem:[#allocation3] sm:$0xff]
    %v3243 = vld [vmem:[#allocation3 + $0x8] sm:$0xff]
    %v3244 = vld [vmem:[#allocation3 + $0x10] sm:$0xff]
    %v3245 = vld [vmem:[#allocation3 + $0x18] sm:$0xff]
    %v3246 = vld [vmem:[#allocation3 + $0x28] sm:$0xff]
    %v3247 = vld [vmem:[#allocation3 + $0x30] sm:$0xff]
    %v3248 = vld [vmem:[#allocation3 + $0x38] sm:$0xff]
    %v3249 = vld [vmem:[#allocation3 + $0x40] sm:$0xff]
    %v3250 = vld [vmem:[%s2] sm:$0xf]
    %v3251 = vld [vmem:[%s2 + $0x4] sm:$0xf]
    %v3252 = vld [vmem:[%s2 + $0x8] sm:$0xf]
    %v3253 = vld [vmem:[%s2 + $0xc] sm:$0xf]
    %v3254 = vld [vmem:[%s2 + $0x10] sm:$0xf]
    %v3255 = vld [vmem:[%s2 + $0x14] sm:$0xf]
    %v3256 = vld [vmem:[%s2 + $0x18] sm:$0xf]
    %v3257 = vld [vmem:[%s2 + $0x1c] sm:$0xf]
    %v3258 = vld [vmem:[%s2 + $0x20] sm:$0xf]
    %v3259 = vld [vmem:[%s2 + $0x24] sm:$0xf]
    %v3260 = vld [vmem:[%s2 + $0x28] sm:$0xf]
    %v3261 = vld [vmem:[%s2 + $0x2c] sm:$0xf]
    %v3262 = vld [vmem:[%s2 + $0x30] sm:$0xf]
    %v3263 = vld [vmem:[%s2 + $0x34] sm:$0xf]
    %v3264 = vld [vmem:[%s2 + $0x38] sm:$0xf]
    %v3265 = vld [vmem:[%s2 + $0x3c] sm:$0xf]
    %v3266 = vld [vmem:[%s2 + $0x40] sm:$0xf]
    %v3267 = vld [vmem:[%s2 + $0x44] sm:$0xf]
    %v3268 = vld [vmem:[%s2 + $0x48] sm:$0xf]
    %v3269 = vld [vmem:[%s2 + $0x4c] sm:$0xf]
    %v3270 = vld [vmem:[%s2 + $0x50] sm:$0xf]
    %v3271 = vld [vmem:[%s2 + $0x54] sm:$0xf]
    %v3272 = vld [vmem:[%s2 + $0x58] sm:$0xf]
    %v3273 = vld [vmem:[%s2 + $0x5c] sm:$0xf]
    %v3274 = vld [vmem:[%s2 + $0x60] sm:$0xf]
    %v3275 = vld [vmem:[%s2 + $0x64] sm:$0xf]
    %v3276 = vld [vmem:[%s2 + $0x68] sm:$0xf]
    %v3277 = vld [vmem:[%s2 + $0x6c] sm:$0xf]
    %v3278 = vld [vmem:[%s2 + $0x70] sm:$0xf]
    %v3279 = vld [vmem:[%s2 + $0x74] sm:$0xf]
    %v3280 = vld [vmem:[%s2 + $0x78] sm:$0xf]
    %v3281 = vld [vmem:[%s2 + $0x7c] sm:$0xf]
    %v3282 = vld [vmem:[#allocation3 + $0x20] sm:$0x11]
    %v3283 = vld [vmem:[#allocation3 + $0x48] sm:$0x11]
    %v3285 = vshrl.u32 %v3242, 16
    %v3287 = vrot.slane %v3285, 4
    %v3288 = vshll.u32 %v3242, 16
    %v3290 = vrot.slane %v3288, 5
    %v3291 = vor.u32 %v3287, %v3290
    %v3292 = vrot.slane %v3291, 4
    %v3294 = vshll.u32 %v3243, 16
    %v3296 = vrot.slane %v3294, 5
    %v3297 = vsel %vm179, %v3292, %v3296
    %v3298 = vshrl.u32 %v3243, 16
    %v3300 = vrot.slane %v3298, 4
    %v3301 = vor.u32 %v3300, %v3296
    %v3302 = vrot.slane %v3301, 4
    %v3304 = vshll.u32 %v3244, 16
    %v3306 = vrot.slane %v3304, 5
    %v3307 = vsel %vm179, %v3302, %v3306
    %v3308 = vshrl.u32 %v3244, 16
    %v3310 = vrot.slane %v3308, 4
    %v3311 = vor.u32 %v3310, %v3306
    %v3312 = vrot.slane %v3311, 4
    %v3314 = vshll.u32 %v3245, 16
    %v3316 = vrot.slane %v3314, 5
    %v3317 = vsel %vm179, %v3312, %v3316
    %v3318 = vshrl.u32 %v3245, 16
    %v3320 = vrot.slane %v3318, 4
    %v3321 = vor.u32 %v3320, %v3316
    %v3322 = vrot.slane %v3321, 4
    %v3324 = vshll.u32 %v3282, 16
    %v3326 = vrot.slane %v3324, 5
    %v3327 = vsel %vm179, %v3322, %v3326
    %v3329 = vshrl.u32 %v3246, 16
    %v3331 = vrot.slane %v3329, 4
    %v3332 = vshll.u32 %v3246, 16
    %v3334 = vrot.slane %v3332, 5
    %v3335 = vor.u32 %v3331, %v3334
    %v3336 = vrot.slane %v3335, 4
    %v3338 = vshll.u32 %v3247, 16
    %v3340 = vrot.slane %v3338, 5
    %v3341 = vsel %vm179, %v3336, %v3340
    %v3342 = vshrl.u32 %v3247, 16
    %v3344 = vrot.slane %v3342, 4
    %v3345 = vor.u32 %v3344, %v3340
    %v3346 = vrot.slane %v3345, 4
    %v3348 = vshll.u32 %v3248, 16
    %v3350 = vrot.slane %v3348, 5
    %v3351 = vsel %vm179, %v3346, %v3350
    %v3352 = vshrl.u32 %v3248, 16
    %v3354 = vrot.slane %v3352, 4
    %v3355 = vor.u32 %v3354, %v3350
    %v3356 = vrot.slane %v3355, 4
    %v3358 = vshll.u32 %v3249, 16
    %v3360 = vrot.slane %v3358, 5
    %v3361 = vsel %vm179, %v3356, %v3360
    %v3362 = vshrl.u32 %v3249, 16
    %v3364 = vrot.slane %v3362, 4
    %v3365 = vor.u32 %v3364, %v3360
    %v3366 = vrot.slane %v3365, 4
    %v3368 = vshll.u32 %v3283, 16
    %v3370 = vrot.slane %v3368, 5
    %v3371 = vsel %vm179, %v3366, %v3370
    %s3372 = scalar_lea.vmem %s2, 128
    %v3373 = vld [vmem:[%s3372] sm:$0xf]
    %v3374 = vld [vmem:[%s3372 + $0x4] sm:$0xf]
    %v3375 = vld [vmem:[%s3372 + $0x8] sm:$0xf]
    %v3376 = vld [vmem:[%s3372 + $0xc] sm:$0xf]
    %v3377 = vld [vmem:[%s3372 + $0x10] sm:$0xf]
    %v3378 = vld [vmem:[%s3372 + $0x14] sm:$0xf]
    %v3379 = vld [vmem:[%s3372 + $0x18] sm:$0xf]
    %v3380 = vld [vmem:[%s3372 + $0x1c] sm:$0xf]
    %v3381 = vld [vmem:[%s3372 + $0x20] sm:$0xf]
    %v3382 = vld [vmem:[%s3372 + $0x24] sm:$0xf]
    %v3383 = vld [vmem:[%s3372 + $0x28] sm:$0xf]
    %v3384 = vld [vmem:[%s3372 + $0x2c] sm:$0xf]
    %v3385 = vld [vmem:[%s3372 + $0x30] sm:$0xf]
    %v3386 = vld [vmem:[%s3372 + $0x34] sm:$0xf]
    %v3387 = vld [vmem:[%s3372 + $0x38] sm:$0xf]
    %v3388 = vld [vmem:[%s3372 + $0x3c] sm:$0xf]
    %v3389 = vld [vmem:[%s3372 + $0x40] sm:$0xf]
    %v3390 = vld [vmem:[%s3372 + $0x44] sm:$0xf]
    %v3391 = vld [vmem:[%s3372 + $0x48] sm:$0xf]
    %v3392 = vld [vmem:[%s3372 + $0x4c] sm:$0xf]
    %v3393 = vld [vmem:[%s3372 + $0x50] sm:$0xf]
    %v3394 = vld [vmem:[%s3372 + $0x54] sm:$0xf]
    %v3395 = vld [vmem:[%s3372 + $0x58] sm:$0xf]
    %v3396 = vld [vmem:[%s3372 + $0x5c] sm:$0xf]
    %v3397 = vld [vmem:[%s3372 + $0x60] sm:$0xf]
    %v3398 = vld [vmem:[%s3372 + $0x64] sm:$0xf]
    %v3399 = vld [vmem:[%s3372 + $0x68] sm:$0xf]
    %v3400 = vld [vmem:[%s3372 + $0x6c] sm:$0xf]
    %v3401 = vld [vmem:[%s3372 + $0x70] sm:$0xf]
    %v3402 = vld [vmem:[%s3372 + $0x74] sm:$0xf]
    %v3403 = vld [vmem:[%s3372 + $0x78] sm:$0xf]
    %v3404 = vld [vmem:[%s3372 + $0x7c] sm:$0xf]
    %v3405 = vunpack.c.l.b16 %v3297
    %v3406 = vunpack.c.h.b16 %v3297
    %v3407 = vunpack.c.l.b16 %v3307
    %v3408 = vunpack.c.h.b16 %v3307
    %v3409 = vunpack.c.l.b16 %v3317
    %v3410 = vunpack.c.h.b16 %v3317
    %v3411 = vunpack.c.l.b16 %v3327
    %v3412 = vunpack.c.h.b16 %v3327
    %v3413 = vunpack.c.l.b16 %v3341
    %v3414 = vunpack.c.h.b16 %v3341
    %v3415 = vunpack.c.l.b16 %v3351
    %v3416 = vunpack.c.h.b16 %v3351
    %v3417 = vunpack.c.l.b16 %v3361
    %v3418 = vunpack.c.h.b16 %v3361
    %v3419 = vunpack.c.l.b16 %v3371
    %v3420 = vunpack.c.h.b16 %v3371
    %v3421 = vpack.c.b16 %v3407, %v3405
    %v3422 = vpack.c.b16 %v3408, %v3406
    %v3423 = vpack.c.b16 %v3411, %v3409
    %v3424 = vpack.c.b16 %v3412, %v3410
    %v3425 = vpack.c.b16 %v3415, %v3413
    %v3426 = vpack.c.b16 %v3416, %v3414
    %v3427 = vpack.c.b16 %v3419, %v3417
    %v3428 = vpack.c.b16 %v3420, %v3418
    %v3469 = vunpack.c.l.b16 %v3373
    %v3470 = vunpack.c.l.b16 %v3374
    %v3471 = vunpack.c.l.b16 %v3375
    %v3472 = vunpack.c.l.b16 %v3376
    %v3473 = vunpack.c.l.b16 %v3377
    %v3474 = vunpack.c.l.b16 %v3378
    %v3475 = vunpack.c.l.b16 %v3379
    %v3476 = vunpack.c.l.b16 %v3380
    %v3477 = vunpack.c.l.b16 %v3381
    %v3478 = vunpack.c.l.b16 %v3382
    %v3479 = vunpack.c.l.b16 %v3383
    %v3480 = vunpack.c.l.b16 %v3384
    %v3481 = vunpack.c.l.b16 %v3385
    %v3482 = vunpack.c.l.b16 %v3386
    %v3483 = vunpack.c.l.b16 %v3387
    %v3484 = vunpack.c.l.b16 %v3388
    %v3485 = vunpack.c.l.b16 %v3389
    %v3486 = vunpack.c.l.b16 %v3390
    %v3487 = vunpack.c.l.b16 %v3391
    %v3488 = vunpack.c.l.b16 %v3392
    %v3489 = vunpack.c.l.b16 %v3393
    %v3490 = vunpack.c.l.b16 %v3394
    %v3491 = vunpack.c.l.b16 %v3395
    %v3492 = vunpack.c.l.b16 %v3396
    %v3493 = vunpack.c.l.b16 %v3397
    %v3494 = vunpack.c.l.b16 %v3398
    %v3495 = vunpack.c.l.b16 %v3399
    %v3496 = vunpack.c.l.b16 %v3400
    %v3497 = vunpack.c.l.b16 %v3401
    %v3498 = vunpack.c.l.b16 %v3402
    %v3499 = vunpack.c.l.b16 %v3403
    %v3500 = vunpack.c.l.b16 %v3404
    %v3501 = vpack.c.b16 %v3470, %v3469
    %v3502 = vpack.c.b16 %v3472, %v3471
    %v3503 = vpack.c.b16 %v3474, %v3473
    %v3504 = vpack.c.b16 %v3476, %v3475
    %v3505 = vpack.c.b16 %v3478, %v3477
    %v3506 = vpack.c.b16 %v3480, %v3479
    %v3507 = vpack.c.b16 %v3482, %v3481
    %v3508 = vpack.c.b16 %v3484, %v3483
    %v3509 = vpack.c.b16 %v3486, %v3485
    %v3510 = vpack.c.b16 %v3488, %v3487
    %v3511 = vpack.c.b16 %v3490, %v3489
    %v3512 = vpack.c.b16 %v3492, %v3491
    %v3513 = vpack.c.b16 %v3494, %v3493
    %v3514 = vpack.c.b16 %v3496, %v3495
    %v3515 = vpack.c.b16 %v3498, %v3497
    %v3516 = vpack.c.b16 %v3500, %v3499
    %3533 = vmatpush.bf16.msra.mxu0 %v3508
    %3534 = vmatpush.bf16.msra.mxu0 %v3507
    %3535 = vmatpush.bf16.msra.mxu0 %v3506
    %3536 = vmatpush.bf16.msra.mxu0 %v3505
    %3537 = vmatpush.bf16.msra.mxu0 %v3504
    %3538 = vmatpush.bf16.msra.mxu0 %v3503
    %3539 = vmatpush.bf16.msra.mxu0 %v3502
    %3540 = vmatpush.bf16.msra.mxu0 %v3501
    %3541 = vmatmul.bf16.gmra.mxu0 %v3421
    %v3542 = vpop.f32.mrf.mxu0
    %v3543 = vadd.f32 0.0, %v3542
    %v3544 = vpop.f32.mrf.mxu0
    %v3545 = vadd.f32 0.0, %v3544
    %3546 = vmatmul.bf16.gmra.mxu0 %v3423
    %v3547 = vpop.f32.mrf.mxu0
    %v3548 = vadd.f32 0.0, %v3547
    %v3549 = vpop.f32.mrf.mxu0
    %v3550 = vadd.f32 0.0, %v3549
    %3551 = vmatmul.bf16.gmra.mxu0 %v3425
    %v3552 = vpop.f32.mrf.mxu0
    %v3553 = vadd.f32 0.0, %v3552
    %v3554 = vpop.f32.mrf.mxu0
    %v3555 = vadd.f32 0.0, %v3554
    %3556 = vmatmul.bf16.gmra.mxu0 %v3427
    %v3557 = vpop.f32.mrf.mxu0
    %v3558 = vadd.f32 0.0, %v3557
    %v3559 = vpop.f32.mrf.mxu0
    %v3560 = vadd.f32 0.0, %v3559
    %3561 = vdwg.mxu0
    %3562 = vmatpush.bf16.msra.mxu0 %v3516
    %3563 = vmatpush.bf16.msra.mxu0 %v3515
    %3564 = vmatpush.bf16.msra.mxu0 %v3514
    %3565 = vmatpush.bf16.msra.mxu0 %v3513
    %3566 = vmatpush.bf16.msra.mxu0 %v3512
    %3567 = vmatpush.bf16.msra.mxu0 %v3511
    %3568 = vmatpush.bf16.msra.mxu0 %v3510
    %3569 = vmatpush.bf16.msra.mxu0 %v3509
    %3570 = vmatmul.bf16.gmra.mxu0 %v3422
    %v3571 = vpop.f32.mrf.mxu0
    %v3572 = vadd.f32 %v3543, %v3571
    %v3573 = vpop.f32.mrf.mxu0
    %v3574 = vadd.f32 %v3545, %v3573
    %3575 = vmatmul.bf16.gmra.mxu0 %v3424
    %v3576 = vpop.f32.mrf.mxu0
    %v3577 = vadd.f32 %v3548, %v3576
    %v3578 = vpop.f32.mrf.mxu0
    %v3579 = vadd.f32 %v3550, %v3578
    %3580 = vmatmul.bf16.gmra.mxu0 %v3426
    %v3581 = vpop.f32.mrf.mxu0
    %v3582 = vadd.f32 %v3553, %v3581
    %v3583 = vpop.f32.mrf.mxu0
    %v3584 = vadd.f32 %v3555, %v3583
    %3585 = vmatmul.bf16.gmra.mxu0 %v3428
    %v3586 = vpop.f32.mrf.mxu0
    %v3587 = vadd.f32 %v3558, %v3586
    %v3588 = vpop.f32.mrf.mxu0
    %v3589 = vadd.f32 %v3560, %v3588
    %3590 = vdwg.mxu0
    %v3599 = vunpack.c.l.b16 %v3242
    %v3600 = vunpack.c.h.b16 %v3242
    %v3601 = vunpack.c.l.b16 %v3243
    %v3602 = vunpack.c.h.b16 %v3243
    %v3603 = vunpack.c.l.b16 %v3244
    %v3604 = vunpack.c.h.b16 %v3244
    %v3605 = vunpack.c.l.b16 %v3245
    %v3606 = vunpack.c.h.b16 %v3245
    %v3607 = vunpack.c.l.b16 %v3246
    %v3608 = vunpack.c.h.b16 %v3246
    %v3609 = vunpack.c.l.b16 %v3247
    %v3610 = vunpack.c.h.b16 %v3247
    %v3611 = vunpack.c.l.b16 %v3248
    %v3612 = vunpack.c.h.b16 %v3248
    %v3613 = vunpack.c.l.b16 %v3249
    %v3614 = vunpack.c.h.b16 %v3249
    %v3615 = vpack.c.b16 %v3601, %v3599
    %v3616 = vpack.c.b16 %v3602, %v3600
    %v3617 = vpack.c.b16 %v3605, %v3603
    %v3618 = vpack.c.b16 %v3606, %v3604
    %v3619 = vpack.c.b16 %v3609, %v3607
    %v3620 = vpack.c.b16 %v3610, %v3608
    %v3621 = vpack.c.b16 %v3613, %v3611
    %v3622 = vpack.c.b16 %v3614, %v3612
    %v3663 = vunpack.c.l.b16 %v3250
    %v3664 = vunpack.c.l.b16 %v3251
    %v3665 = vunpack.c.l.b16 %v3252
    %v3666 = vunpack.c.l.b16 %v3253
    %v3667 = vunpack.c.l.b16 %v3254
    %v3668 = vunpack.c.l.b16 %v3255
    %v3669 = vunpack.c.l.b16 %v3256
    %v3670 = vunpack.c.l.b16 %v3257
    %v3671 = vunpack.c.l.b16 %v3258
    %v3672 = vunpack.c.l.b16 %v3259
    %v3673 = vunpack.c.l.b16 %v3260
    %v3674 = vunpack.c.l.b16 %v3261
    %v3675 = vunpack.c.l.b16 %v3262
    %v3676 = vunpack.c.l.b16 %v3263
    %v3677 = vunpack.c.l.b16 %v3264
    %v3678 = vunpack.c.l.b16 %v3265
    %v3679 = vunpack.c.l.b16 %v3266
    %v3680 = vunpack.c.l.b16 %v3267
    %v3681 = vunpack.c.l.b16 %v3268
    %v3682 = vunpack.c.l.b16 %v3269
    %v3683 = vunpack.c.l.b16 %v3270
    %v3684 = vunpack.c.l.b16 %v3271
    %v3685 = vunpack.c.l.b16 %v3272
    %v3686 = vunpack.c.l.b16 %v3273
    %v3687 = vunpack.c.l.b16 %v3274
    %v3688 = vunpack.c.l.b16 %v3275
    %v3689 = vunpack.c.l.b16 %v3276
    %v3690 = vunpack.c.l.b16 %v3277
    %v3691 = vunpack.c.l.b16 %v3278
    %v3692 = vunpack.c.l.b16 %v3279
    %v3693 = vunpack.c.l.b16 %v3280
    %v3694 = vunpack.c.l.b16 %v3281
    %v3695 = vpack.c.b16 %v3664, %v3663
    %v3696 = vpack.c.b16 %v3666, %v3665
    %v3697 = vpack.c.b16 %v3668, %v3667
    %v3698 = vpack.c.b16 %v3670, %v3669
    %v3699 = vpack.c.b16 %v3672, %v3671
    %v3700 = vpack.c.b16 %v3674, %v3673
    %v3701 = vpack.c.b16 %v3676, %v3675
    %v3702 = vpack.c.b16 %v3678, %v3677
    %v3703 = vpack.c.b16 %v3680, %v3679
    %v3704 = vpack.c.b16 %v3682, %v3681
    %v3705 = vpack.c.b16 %v3684, %v3683
    %v3706 = vpack.c.b16 %v3686, %v3685
    %v3707 = vpack.c.b16 %v3688, %v3687
    %v3708 = vpack.c.b16 %v3690, %v3689
    %v3709 = vpack.c.b16 %v3692, %v3691
    %v3710 = vpack.c.b16 %v3694, %v3693
    %3727 = vmatpush.bf16.msra.mxu0 %v3702
    %3728 = vmatpush.bf16.msra.mxu0 %v3701
    %3729 = vmatpush.bf16.msra.mxu0 %v3700
    %3730 = vmatpush.bf16.msra.mxu0 %v3699
    %3731 = vmatpush.bf16.msra.mxu0 %v3698
    %3732 = vmatpush.bf16.msra.mxu0 %v3697
    %3733 = vmatpush.bf16.msra.mxu0 %v3696
    %3734 = vmatpush.bf16.msra.mxu0 %v3695
    %3735 = vmatmul.bf16.gmra.mxu0 %v3615
    %v3736 = vpop.f32.mrf.mxu0
    %v3737 = vadd.f32 %v3572, %v3736
    %v3738 = vpop.f32.mrf.mxu0
    %v3739 = vadd.f32 %v3574, %v3738
    %3740 = vmatmul.bf16.gmra.mxu0 %v3617
    %v3741 = vpop.f32.mrf.mxu0
    %v3742 = vadd.f32 %v3577, %v3741
    %v3743 = vpop.f32.mrf.mxu0
    %v3744 = vadd.f32 %v3579, %v3743
    %3745 = vmatmul.bf16.gmra.mxu0 %v3619
    %v3746 = vpop.f32.mrf.mxu0
    %v3747 = vadd.f32 %v3582, %v3746
    %v3748 = vpop.f32.mrf.mxu0
    %v3749 = vadd.f32 %v3584, %v3748
    %3750 = vmatmul.bf16.gmra.mxu0 %v3621
    %v3751 = vpop.f32.mrf.mxu0
    %v3752 = vadd.f32 %v3587, %v3751
    %v3753 = vpop.f32.mrf.mxu0
    %v3754 = vadd.f32 %v3589, %v3753
    %3755 = vdwg.mxu0
    %3756 = vmatpush.bf16.msra.mxu0 %v3710
    %3757 = vmatpush.bf16.msra.mxu0 %v3709
    %3758 = vmatpush.bf16.msra.mxu0 %v3708
    %3759 = vmatpush.bf16.msra.mxu0 %v3707
    %3760 = vmatpush.bf16.msra.mxu0 %v3706
    %3761 = vmatpush.bf16.msra.mxu0 %v3705
    %3762 = vmatpush.bf16.msra.mxu0 %v3704
    %3763 = vmatpush.bf16.msra.mxu0 %v3703
    %3764 = vmatmul.bf16.gmra.mxu0 %v3616
    %v3765 = vpop.f32.mrf.mxu0
    %v3766 = vadd.f32 %v3737, %v3765
    %v3767 = vpop.f32.mrf.mxu0
    %v3768 = vadd.f32 %v3739, %v3767
    %3769 = vmatmul.bf16.gmra.mxu0 %v3618
    %v3770 = vpop.f32.mrf.mxu0
    %v3771 = vadd.f32 %v3742, %v3770
    %v3772 = vpop.f32.mrf.mxu0
    %v3773 = vadd.f32 %v3744, %v3772
    %3774 = vmatmul.bf16.gmra.mxu0 %v3620
    %v3775 = vpop.f32.mrf.mxu0
    %v3776 = vadd.f32 %v3747, %v3775
    %v3777 = vpop.f32.mrf.mxu0
    %v3778 = vadd.f32 %v3749, %v3777
    %3779 = vmatmul.bf16.gmra.mxu0 %v3622
    %v3780 = vpop.f32.mrf.mxu0
    %v3781 = vadd.f32 %v3752, %v3780
    %v3782 = vpop.f32.mrf.mxu0
    %v3783 = vadd.f32 %v3754, %v3782
    %3784 = vdwg.mxu0
    %v3785 = vld [vmem:[#allocation3] sm:$0xee]
    %v3786 = vld [vmem:[#allocation3 + $0x28] sm:$0xee]
    %v3791 = vrot.slane %v3785, 5
    %v3792 = vrot.slane %v3791, 4
    %v3793 = vrot.slane %v3243, 5
    %v3794 = vsel %vm370, %v3792, %v3793
    %v3795 = vrot.slane %v3793, 4
    %v3796 = vrot.slane %v3244, 5
    %v3797 = vsel %vm370, %v3795, %v3796
    %v3798 = vrot.slane %v3796, 4
    %v3799 = vrot.slane %v3245, 5
    %v3800 = vsel %vm370, %v3798, %v3799
    %v3801 = vrot.slane %v3799, 4
    %v3802 = vrot.slane %v3282, 5
    %v3803 = vsel %vm370, %v3801, %v3802
    %v3804 = vrot.slane %v3786, 5
    %v3805 = vrot.slane %v3804, 4
    %v3806 = vrot.slane %v3247, 5
    %v3807 = vsel %vm370, %v3805, %v3806
    %v3808 = vrot.slane %v3806, 4
    %v3809 = vrot.slane %v3248, 5
    %v3810 = vsel %vm370, %v3808, %v3809
    %v3811 = vrot.slane %v3809, 4
    %v3812 = vrot.slane %v3249, 5
    %v3813 = vsel %vm370, %v3811, %v3812
    %v3814 = vrot.slane %v3812, 4
    %v3815 = vrot.slane %v3283, 5
    %v3816 = vsel %vm370, %v3814, %v3815
    %s3817 = scalar_lea.vmem %s2, 256
    %v3818 = vld [vmem:[%s3817] sm:$0xf]
    %v3819 = vld [vmem:[%s3817 + $0x4] sm:$0xf]
    %v3820 = vld [vmem:[%s3817 + $0x8] sm:$0xf]
    %v3821 = vld [vmem:[%s3817 + $0xc] sm:$0xf]
    %v3822 = vld [vmem:[%s3817 + $0x10] sm:$0xf]
    %v3823 = vld [vmem:[%s3817 + $0x14] sm:$0xf]
    %v3824 = vld [vmem:[%s3817 + $0x18] sm:$0xf]
    %v3825 = vld [vmem:[%s3817 + $0x1c] sm:$0xf]
    %v3826 = vld [vmem:[%s3817 + $0x20] sm:$0xf]
    %v3827 = vld [vmem:[%s3817 + $0x24] sm:$0xf]
    %v3828 = vld [vmem:[%s3817 + $0x28] sm:$0xf]
    %v3829 = vld [vmem:[%s3817 + $0x2c] sm:$0xf]
    %v3830 = vld [vmem:[%s3817 + $0x30] sm:$0xf]
    %v3831 = vld [vmem:[%s3817 + $0x34] sm:$0xf]
    %v3832 = vld [vmem:[%s3817 + $0x38] sm:$0xf]
    %v3833 = vld [vmem:[%s3817 + $0x3c] sm:$0xf]
    %v3834 = vld [vmem:[%s3817 + $0x40] sm:$0xf]
    %v3835 = vld [vmem:[%s3817 + $0x44] sm:$0xf]
    %v3836 = vld [vmem:[%s3817 + $0x48] sm:$0xf]
    %v3837 = vld [vmem:[%s3817 + $0x4c] sm:$0xf]
    %v3838 = vld [vmem:[%s3817 + $0x50] sm:$0xf]
    %v3839 = vld [vmem:[%s3817 + $0x54] sm:$0xf]
    %v3840 = vld [vmem:[%s3817 + $0x58] sm:$0xf]
    %v3841 = vld [vmem:[%s3817 + $0x5c] sm:$0xf]
    %v3842 = vld [vmem:[%s3817 + $0x60] sm:$0xf]
    %v3843 = vld [vmem:[%s3817 + $0x64] sm:$0xf]
    %v3844 = vld [vmem:[%s3817 + $0x68] sm:$0xf]
    %v3845 = vld [vmem:[%s3817 + $0x6c] sm:$0xf]
    %v3846 = vld [vmem:[%s3817 + $0x70] sm:$0xf]
    %v3847 = vld [vmem:[%s3817 + $0x74] sm:$0xf]
    %v3848 = vld [vmem:[%s3817 + $0x78] sm:$0xf]
    %v3849 = vld [vmem:[%s3817 + $0x7c] sm:$0xf]
    %v3850 = vunpack.c.l.b16 %v3794
    %v3851 = vunpack.c.h.b16 %v3794
    %v3852 = vunpack.c.l.b16 %v3797
    %v3853 = vunpack.c.h.b16 %v3797
    %v3854 = vunpack.c.l.b16 %v3800
    %v3855 = vunpack.c.h.b16 %v3800
    %v3856 = vunpack.c.l.b16 %v3803
    %v3857 = vunpack.c.h.b16 %v3803
    %v3858 = vunpack.c.l.b16 %v3807
    %v3859 = vunpack.c.h.b16 %v3807
    %v3860 = vunpack.c.l.b16 %v3810
    %v3861 = vunpack.c.h.b16 %v3810
    %v3862 = vunpack.c.l.b16 %v3813
    %v3863 = vunpack.c.h.b16 %v3813
    %v3864 = vunpack.c.l.b16 %v3816
    %v3865 = vunpack.c.h.b16 %v3816
    %v3866 = vpack.c.b16 %v3852, %v3850
    %v3867 = vpack.c.b16 %v3853, %v3851
    %v3868 = vpack.c.b16 %v3856, %v3854
    %v3869 = vpack.c.b16 %v3857, %v3855
    %v3870 = vpack.c.b16 %v3860, %v3858
    %v3871 = vpack.c.b16 %v3861, %v3859
    %v3872 = vpack.c.b16 %v3864, %v3862
    %v3873 = vpack.c.b16 %v3865, %v3863
    %v3914 = vunpack.c.l.b16 %v3818
    %v3915 = vunpack.c.l.b16 %v3819
    %v3916 = vunpack.c.l.b16 %v3820
    %v3917 = vunpack.c.l.b16 %v3821
    %v3918 = vunpack.c.l.b16 %v3822
    %v3919 = vunpack.c.l.b16 %v3823
    %v3920 = vunpack.c.l.b16 %v3824
    %v3921 = vunpack.c.l.b16 %v3825
    %v3922 = vunpack.c.l.b16 %v3826
    %v3923 = vunpack.c.l.b16 %v3827
    %v3924 = vunpack.c.l.b16 %v3828
    %v3925 = vunpack.c.l.b16 %v3829
    %v3926 = vunpack.c.l.b16 %v3830
    %v3927 = vunpack.c.l.b16 %v3831
    %v3928 = vunpack.c.l.b16 %v3832
    %v3929 = vunpack.c.l.b16 %v3833
    %v3930 = vunpack.c.l.b16 %v3834
    %v3931 = vunpack.c.l.b16 %v3835
    %v3932 = vunpack.c.l.b16 %v3836
    %v3933 = vunpack.c.l.b16 %v3837
    %v3934 = vunpack.c.l.b16 %v3838
    %v3935 = vunpack.c.l.b16 %v3839
    %v3936 = vunpack.c.l.b16 %v3840
    %v3937 = vunpack.c.l.b16 %v3841
    %v3938 = vunpack.c.l.b16 %v3842
    %v3939 = vunpack.c.l.b16 %v3843
    %v3940 = vunpack.c.l.b16 %v3844
    %v3941 = vunpack.c.l.b16 %v3845
    %v3942 = vunpack.c.l.b16 %v3846
    %v3943 = vunpack.c.l.b16 %v3847
    %v3944 = vunpack.c.l.b16 %v3848
    %v3945 = vunpack.c.l.b16 %v3849
    %v3946 = vpack.c.b16 %v3915, %v3914
    %v3947 = vpack.c.b16 %v3917, %v3916
    %v3948 = vpack.c.b16 %v3919, %v3918
    %v3949 = vpack.c.b16 %v3921, %v3920
    %v3950 = vpack.c.b16 %v3923, %v3922
    %v3951 = vpack.c.b16 %v3925, %v3924
    %v3952 = vpack.c.b16 %v3927, %v3926
    %v3953 = vpack.c.b16 %v3929, %v3928
    %v3954 = vpack.c.b16 %v3931, %v3930
    %v3955 = vpack.c.b16 %v3933, %v3932
    %v3956 = vpack.c.b16 %v3935, %v3934
    %v3957 = vpack.c.b16 %v3937, %v3936
    %v3958 = vpack.c.b16 %v3939, %v3938
    %v3959 = vpack.c.b16 %v3941, %v3940
    %v3960 = vpack.c.b16 %v3943, %v3942
    %v3961 = vpack.c.b16 %v3945, %v3944
    %3978 = vmatpush.bf16.msra.mxu0 %v3953
    %3979 = vmatpush.bf16.msra.mxu0 %v3952
    %3980 = vmatpush.bf16.msra.mxu0 %v3951
    %3981 = vmatpush.bf16.msra.mxu0 %v3950
    %3982 = vmatpush.bf16.msra.mxu0 %v3949
    %3983 = vmatpush.bf16.msra.mxu0 %v3948
    %3984 = vmatpush.bf16.msra.mxu0 %v3947
    %3985 = vmatpush.bf16.msra.mxu0 %v3946
    %3986 = vmatmul.bf16.gmra.mxu0 %v3866
    %v3987 = vpop.f32.mrf.mxu0
    %v3988 = vadd.f32 0.0, %v3987
    %v3989 = vpop.f32.mrf.mxu0
    %v3990 = vadd.f32 0.0, %v3989
    %3991 = vmatmul.bf16.gmra.mxu0 %v3868
    %v3992 = vpop.f32.mrf.mxu0
    %v3993 = vadd.f32 0.0, %v3992
    %v3994 = vpop.f32.mrf.mxu0
    %v3995 = vadd.f32 0.0, %v3994
    %3996 = vmatmul.bf16.gmra.mxu0 %v3870
    %v3997 = vpop.f32.mrf.mxu0
    %v3998 = vadd.f32 0.0, %v3997
    %v3999 = vpop.f32.mrf.mxu0
    %v4000 = vadd.f32 0.0, %v3999
    %4001 = vmatmul.bf16.gmra.mxu0 %v3872
    %v4002 = vpop.f32.mrf.mxu0
    %v4003 = vadd.f32 0.0, %v4002
    %v4004 = vpop.f32.mrf.mxu0
    %v4005 = vadd.f32 0.0, %v4004
    %4006 = vdwg.mxu0
    %4007 = vmatpush.bf16.msra.mxu0 %v3961
    %4008 = vmatpush.bf16.msra.mxu0 %v3960
    %4009 = vmatpush.bf16.msra.mxu0 %v3959
    %4010 = vmatpush.bf16.msra.mxu0 %v3958
    %4011 = vmatpush.bf16.msra.mxu0 %v3957
    %4012 = vmatpush.bf16.msra.mxu0 %v3956
    %4013 = vmatpush.bf16.msra.mxu0 %v3955
    %4014 = vmatpush.bf16.msra.mxu0 %v3954
    %4015 = vmatmul.bf16.gmra.mxu0 %v3867
    %v4016 = vpop.f32.mrf.mxu0
    %v4017 = vadd.f32 %v3988, %v4016
    %v4018 = vpop.f32.mrf.mxu0
    %v4019 = vadd.f32 %v3990, %v4018
    %4020 = vmatmul.bf16.gmra.mxu0 %v3869
    %v4021 = vpop.f32.mrf.mxu0
    %v4022 = vadd.f32 %v3993, %v4021
    %v4023 = vpop.f32.mrf.mxu0
    %v4024 = vadd.f32 %v3995, %v4023
    %4025 = vmatmul.bf16.gmra.mxu0 %v3871
    %v4026 = vpop.f32.mrf.mxu0
    %v4027 = vadd.f32 %v3998, %v4026
    %v4028 = vpop.f32.mrf.mxu0
    %v4029 = vadd.f32 %v4000, %v4028
    %4030 = vmatmul.bf16.gmra.mxu0 %v3873
    %v4031 = vpop.f32.mrf.mxu0
    %v4032 = vadd.f32 %v4003, %v4031
    %v4033 = vpop.f32.mrf.mxu0
    %v4034 = vadd.f32 %v4005, %v4033
    %4035 = vdwg.mxu0
    %v4036 = vadd.f32 %v3766, %v4017
    %v4037 = vadd.f32 %v3768, %v4019
    %v4038 = vadd.f32 %v3771, %v4022
    %v4039 = vadd.f32 %v3773, %v4024
    %v4040 = vadd.f32 %v3776, %v4027
    %v4041 = vadd.f32 %v3778, %v4029
    %v4042 = vadd.f32 %v3781, %v4032
    %v4043 = vadd.f32 %v3783, %v4034
    %v4044 = vld [vmem:[#allocation3 + $0x20] sm:$0x33]
    %v4045 = vld [vmem:[#allocation3 + $0x48] sm:$0x33]
    %v4047 = vshrl.u32 %v3785, 16
    %v4049 = vrot.slane %v4047, 5
    %v4050 = vshll.u32 %v3785, 16
    %v4052 = vrot.slane %v4050, 6
    %v4053 = vor.u32 %v4049, %v4052
    %v4054 = vrot.slane %v4053, 4
    %v4055 = vrot.slane %v3298, 5
    %v4056 = vrot.slane %v3294, 6
    %v4057 = vor.u32 %v4055, %v4056
    %v4058 = vsel %vm425, %v4054, %v4057
    %v4059 = vrot.slane %v4057, 4
    %v4060 = vrot.slane %v3308, 5
    %v4061 = vrot.slane %v3304, 6
    %v4062 = vor.u32 %v4060, %v4061
    %v4063 = vsel %vm425, %v4059, %v4062
    %v4064 = vrot.slane %v4062, 4
    %v4065 = vrot.slane %v3318, 5
    %v4066 = vrot.slane %v3314, 6
    %v4067 = vor.u32 %v4065, %v4066
    %v4068 = vsel %vm425, %v4064, %v4067
    %v4069 = vrot.slane %v4067, 4
    %v4071 = vshrl.u32 %v4044, 16
    %v4073 = vrot.slane %v4071, 5
    %v4074 = vshll.u32 %v4044, 16
    %v4076 = vrot.slane %v4074, 6
    %v4077 = vor.u32 %v4073, %v4076
    %v4078 = vsel %vm425, %v4069, %v4077
    %v4080 = vshrl.u32 %v3786, 16
    %v4082 = vrot.slane %v4080, 5
    %v4083 = vshll.u32 %v3786, 16
    %v4085 = vrot.slane %v4083, 6
    %v4086 = vor.u32 %v4082, %v4085
    %v4087 = vrot.slane %v4086, 4
    %v4088 = vrot.slane %v3342, 5
    %v4089 = vrot.slane %v3338, 6
    %v4090 = vor.u32 %v4088, %v4089
    %v4091 = vsel %vm425, %v4087, %v4090
    %v4092 = vrot.slane %v4090, 4
    %v4093 = vrot.slane %v3352, 5
    %v4094 = vrot.slane %v3348, 6
    %v4095 = vor.u32 %v4093, %v4094
    %v4096 = vsel %vm425, %v4092, %v4095
    %v4097 = vrot.slane %v4095, 4
    %v4098 = vrot.slane %v3362, 5
    %v4099 = vrot.slane %v3358, 6
    %v4100 = vor.u32 %v4098, %v4099
    %v4101 = vsel %vm425, %v4097, %v4100
    %v4102 = vrot.slane %v4100, 4
    %v4104 = vshrl.u32 %v4045, 16
    %v4106 = vrot.slane %v4104, 5
    %v4107 = vshll.u32 %v4045, 16
    %v4109 = vrot.slane %v4107, 6
    %v4110 = vor.u32 %v4106, %v4109
    %v4111 = vsel %vm425, %v4102, %v4110
    %s4112 = scalar_lea.vmem %s2, 384
    %v4113 = vld [vmem:[%s4112] sm:$0xf]
    %v4114 = vld [vmem:[%s4112 + $0x4] sm:$0xf]
    %v4115 = vld [vmem:[%s4112 + $0x8] sm:$0xf]
    %v4116 = vld [vmem:[%s4112 + $0xc] sm:$0xf]
    %v4117 = vld [vmem:[%s4112 + $0x10] sm:$0xf]
    %v4118 = vld [vmem:[%s4112 + $0x14] sm:$0xf]
    %v4119 = vld [vmem:[%s4112 + $0x18] sm:$0xf]
    %v4120 = vld [vmem:[%s4112 + $0x1c] sm:$0xf]
    %v4121 = vld [vmem:[%s4112 + $0x20] sm:$0xf]
    %v4122 = vld [vmem:[%s4112 + $0x24] sm:$0xf]
    %v4123 = vld [vmem:[%s4112 + $0x28] sm:$0xf]
    %v4124 = vld [vmem:[%s4112 + $0x2c] sm:$0xf]
    %v4125 = vld [vmem:[%s4112 + $0x30] sm:$0xf]
    %v4126 = vld [vmem:[%s4112 + $0x34] sm:$0xf]
    %v4127 = vld [vmem:[%s4112 + $0x38] sm:$0xf]
    %v4128 = vld [vmem:[%s4112 + $0x3c] sm:$0xf]
    %v4129 = vld [vmem:[%s4112 + $0x40] sm:$0xf]
    %v4130 = vld [vmem:[%s4112 + $0x44] sm:$0xf]
    %v4131 = vld [vmem:[%s4112 + $0x48] sm:$0xf]
    %v4132 = vld [vmem:[%s4112 + $0x4c] sm:$0xf]
    %v4133 = vld [vmem:[%s4112 + $0x50] sm:$0xf]
    %v4134 = vld [vmem:[%s4112 + $0x54] sm:$0xf]
    %v4135 = vld [vmem:[%s4112 + $0x58] sm:$0xf]
    %v4136 = vld [vmem:[%s4112 + $0x5c] sm:$0xf]
    %v4137 = vld [vmem:[%s4112 + $0x60] sm:$0xf]
    %v4138 = vld [vmem:[%s4112 + $0x64] sm:$0xf]
    %v4139 = vld [vmem:[%s4112 + $0x68] sm:$0xf]
    %v4140 = vld [vmem:[%s4112 + $0x6c] sm:$0xf]
    %v4141 = vld [vmem:[%s4112 + $0x70] sm:$0xf]
    %v4142 = vld [vmem:[%s4112 + $0x74] sm:$0xf]
    %v4143 = vld [vmem:[%s4112 + $0x78] sm:$0xf]
    %v4144 = vld [vmem:[%s4112 + $0x7c] sm:$0xf]
    %v4145 = vunpack.c.l.b16 %v4058
    %v4146 = vunpack.c.h.b16 %v4058
    %v4147 = vunpack.c.l.b16 %v4063
    %v4148 = vunpack.c.h.b16 %v4063
    %v4149 = vunpack.c.l.b16 %v4068
    %v4150 = vunpack.c.h.b16 %v4068
    %v4151 = vunpack.c.l.b16 %v4078
    %v4152 = vunpack.c.h.b16 %v4078
    %v4153 = vunpack.c.l.b16 %v4091
    %v4154 = vunpack.c.h.b16 %v4091
    %v4155 = vunpack.c.l.b16 %v4096
    %v4156 = vunpack.c.h.b16 %v4096
    %v4157 = vunpack.c.l.b16 %v4101
    %v4158 = vunpack.c.h.b16 %v4101
    %v4159 = vunpack.c.l.b16 %v4111
    %v4160 = vunpack.c.h.b16 %v4111
    %v4161 = vpack.c.b16 %v4147, %v4145
    %v4162 = vpack.c.b16 %v4148, %v4146
    %v4163 = vpack.c.b16 %v4151, %v4149
    %v4164 = vpack.c.b16 %v4152, %v4150
    %v4165 = vpack.c.b16 %v4155, %v4153
    %v4166 = vpack.c.b16 %v4156, %v4154
    %v4167 = vpack.c.b16 %v4159, %v4157
    %v4168 = vpack.c.b16 %v4160, %v4158
    %v4209 = vunpack.c.l.b16 %v4113
    %v4210 = vunpack.c.l.b16 %v4114
    %v4211 = vunpack.c.l.b16 %v4115
    %v4212 = vunpack.c.l.b16 %v4116
    %v4213 = vunpack.c.l.b16 %v4117
    %v4214 = vunpack.c.l.b16 %v4118
    %v4215 = vunpack.c.l.b16 %v4119
    %v4216 = vunpack.c.l.b16 %v4120
    %v4217 = vunpack.c.l.b16 %v4121
    %v4218 = vunpack.c.l.b16 %v4122
    %v4219 = vunpack.c.l.b16 %v4123
    %v4220 = vunpack.c.l.b16 %v4124
    %v4221 = vunpack.c.l.b16 %v4125
    %v4222 = vunpack.c.l.b16 %v4126
    %v4223 = vunpack.c.l.b16 %v4127
    %v4224 = vunpack.c.l.b16 %v4128
    %v4225 = vunpack.c.l.b16 %v4129
    %v4226 = vunpack.c.l.b16 %v4130
    %v4227 = vunpack.c.l.b16 %v4131
    %v4228 = vunpack.c.l.b16 %v4132
    %v4229 = vunpack.c.l.b16 %v4133
    %v4230 = vunpack.c.l.b16 %v4134
    %v4231 = vunpack.c.l.b16 %v4135
    %v4232 = vunpack.c.l.b16 %v4136
    %v4233 = vunpack.c.l.b16 %v4137
    %v4234 = vunpack.c.l.b16 %v4138
    %v4235 = vunpack.c.l.b16 %v4139
    %v4236 = vunpack.c.l.b16 %v4140
    %v4237 = vunpack.c.l.b16 %v4141
    %v4238 = vunpack.c.l.b16 %v4142
    %v4239 = vunpack.c.l.b16 %v4143
    %v4240 = vunpack.c.l.b16 %v4144
    %v4241 = vpack.c.b16 %v4210, %v4209
    %v4242 = vpack.c.b16 %v4212, %v4211
    %v4243 = vpack.c.b16 %v4214, %v4213
    %v4244 = vpack.c.b16 %v4216, %v4215
    %v4245 = vpack.c.b16 %v4218, %v4217
    %v4246 = vpack.c.b16 %v4220, %v4219
    %v4247 = vpack.c.b16 %v4222, %v4221
    %v4248 = vpack.c.b16 %v4224, %v4223
    %v4249 = vpack.c.b16 %v4226, %v4225
    %v4250 = vpack.c.b16 %v4228, %v4227
    %v4251 = vpack.c.b16 %v4230, %v4229
    %v4252 = vpack.c.b16 %v4232, %v4231
    %v4253 = vpack.c.b16 %v4234, %v4233
    %v4254 = vpack.c.b16 %v4236, %v4235
    %v4255 = vpack.c.b16 %v4238, %v4237
    %v4256 = vpack.c.b16 %v4240, %v4239
    %4273 = vmatpush.bf16.msra.mxu0 %v4248
    %4274 = vmatpush.bf16.msra.mxu0 %v4247
    %4275 = vmatpush.bf16.msra.mxu0 %v4246
    %4276 = vmatpush.bf16.msra.mxu0 %v4245
    %4277 = vmatpush.bf16.msra.mxu0 %v4244
    %4278 = vmatpush.bf16.msra.mxu0 %v4243
    %4279 = vmatpush.bf16.msra.mxu0 %v4242
    %4280 = vmatpush.bf16.msra.mxu0 %v4241
    %4281 = vmatmul.bf16.gmra.mxu0 %v4161
    %v4282 = vpop.f32.mrf.mxu0
    %v4283 = vadd.f32 0.0, %v4282
    %v4284 = vpop.f32.mrf.mxu0
    %v4285 = vadd.f32 0.0, %v4284
    %4286 = vmatmul.bf16.gmra.mxu0 %v4163
    %v4287 = vpop.f32.mrf.mxu0
    %v4288 = vadd.f32 0.0, %v4287
    %v4289 = vpop.f32.mrf.mxu0
    %v4290 = vadd.f32 0.0, %v4289
    %4291 = vmatmul.bf16.gmra.mxu0 %v4165
    %v4292 = vpop.f32.mrf.mxu0
    %v4293 = vadd.f32 0.0, %v4292
    %v4294 = vpop.f32.mrf.mxu0
    %v4295 = vadd.f32 0.0, %v4294
    %4296 = vmatmul.bf16.gmra.mxu0 %v4167
    %v4297 = vpop.f32.mrf.mxu0
    %v4298 = vadd.f32 0.0, %v4297
    %v4299 = vpop.f32.mrf.mxu0
    %v4300 = vadd.f32 0.0, %v4299
    %4301 = vdwg.mxu0
    %4302 = vmatpush.bf16.msra.mxu0 %v4256
    %4303 = vmatpush.bf16.msra.mxu0 %v4255
    %4304 = vmatpush.bf16.msra.mxu0 %v4254
    %4305 = vmatpush.bf16.msra.mxu0 %v4253
    %4306 = vmatpush.bf16.msra.mxu0 %v4252
    %4307 = vmatpush.bf16.msra.mxu0 %v4251
    %4308 = vmatpush.bf16.msra.mxu0 %v4250
    %4309 = vmatpush.bf16.msra.mxu0 %v4249
    %4310 = vmatmul.bf16.gmra.mxu0 %v4162
    %v4311 = vpop.f32.mrf.mxu0
    %v4312 = vadd.f32 %v4283, %v4311
    %v4313 = vpop.f32.mrf.mxu0
    %v4314 = vadd.f32 %v4285, %v4313
    %4315 = vmatmul.bf16.gmra.mxu0 %v4164
    %v4316 = vpop.f32.mrf.mxu0
    %v4317 = vadd.f32 %v4288, %v4316
    %v4318 = vpop.f32.mrf.mxu0
    %v4319 = vadd.f32 %v4290, %v4318
    %4320 = vmatmul.bf16.gmra.mxu0 %v4166
    %v4321 = vpop.f32.mrf.mxu0
    %v4322 = vadd.f32 %v4293, %v4321
    %v4323 = vpop.f32.mrf.mxu0
    %v4324 = vadd.f32 %v4295, %v4323
    %4325 = vmatmul.bf16.gmra.mxu0 %v4168
    %v4326 = vpop.f32.mrf.mxu0
    %v4327 = vadd.f32 %v4298, %v4326
    %v4328 = vpop.f32.mrf.mxu0
    %v4329 = vadd.f32 %v4300, %v4328
    %4330 = vdwg.mxu0
    %v4331 = vadd.f32 %v4036, %v4312
    %v4332 = vadd.f32 %v4037, %v4314
    %v4333 = vadd.f32 %v4038, %v4317
    %v4334 = vadd.f32 %v4039, %v4319
    %v4335 = vadd.f32 %v4040, %v4322
    %v4336 = vadd.f32 %v4041, %v4324
    %v4337 = vadd.f32 %v4042, %v4327
    %v4338 = vadd.f32 %v4043, %v4329
    %v4339 = vld [vmem:[#allocation3] sm:$0xcc]
    %v4340 = vld [vmem:[#allocation3 + $0x28] sm:$0xcc]
    %v4345 = vrot.slane %v4339, 6
    %v4346 = vrot.slane %v4345, 4
    %v4347 = vrot.slane %v3243, 6
    %v4348 = vsel %vm540, %v4346, %v4347
    %v4349 = vrot.slane %v4347, 4
    %v4350 = vrot.slane %v3244, 6
    %v4351 = vsel %vm540, %v4349, %v4350
    %v4352 = vrot.slane %v4350, 4
    %v4353 = vrot.slane %v3245, 6
    %v4354 = vsel %vm540, %v4352, %v4353
    %v4355 = vrot.slane %v4353, 4
    %v4356 = vrot.slane %v4044, 6
    %v4357 = vsel %vm540, %v4355, %v4356
    %v4358 = vrot.slane %v4340, 6
    %v4359 = vrot.slane %v4358, 4
    %v4360 = vrot.slane %v3247, 6
    %v4361 = vsel %vm540, %v4359, %v4360
    %v4362 = vrot.slane %v4360, 4
    %v4363 = vrot.slane %v3248, 6
    %v4364 = vsel %vm540, %v4362, %v4363
    %v4365 = vrot.slane %v4363, 4
    %v4366 = vrot.slane %v3249, 6
    %v4367 = vsel %vm540, %v4365, %v4366
    %v4368 = vrot.slane %v4366, 4
    %v4369 = vrot.slane %v4045, 6
    %v4370 = vsel %vm540, %v4368, %v4369
    %s4371 = scalar_lea.vmem %s2, 512
    %v4372 = vld [vmem:[%s4371] sm:$0xf]
    %v4373 = vld [vmem:[%s4371 + $0x4] sm:$0xf]
    %v4374 = vld [vmem:[%s4371 + $0x8] sm:$0xf]
    %v4375 = vld [vmem:[%s4371 + $0xc] sm:$0xf]
    %v4376 = vld [vmem:[%s4371 + $0x10] sm:$0xf]
    %v4377 = vld [vmem:[%s4371 + $0x14] sm:$0xf]
    %v4378 = vld [vmem:[%s4371 + $0x18] sm:$0xf]
    %v4379 = vld [vmem:[%s4371 + $0x1c] sm:$0xf]
    %v4380 = vld [vmem:[%s4371 + $0x20] sm:$0xf]
    %v4381 = vld [vmem:[%s4371 + $0x24] sm:$0xf]
    %v4382 = vld [vmem:[%s4371 + $0x28] sm:$0xf]
    %v4383 = vld [vmem:[%s4371 + $0x2c] sm:$0xf]
    %v4384 = vld [vmem:[%s4371 + $0x30] sm:$0xf]
    %v4385 = vld [vmem:[%s4371 + $0x34] sm:$0xf]
    %v4386 = vld [vmem:[%s4371 + $0x38] sm:$0xf]
    %v4387 = vld [vmem:[%s4371 + $0x3c] sm:$0xf]
    %v4388 = vld [vmem:[%s4371 + $0x40] sm:$0xf]
    %v4389 = vld [vmem:[%s4371 + $0x44] sm:$0xf]
    %v4390 = vld [vmem:[%s4371 + $0x48] sm:$0xf]
    %v4391 = vld [vmem:[%s4371 + $0x4c] sm:$0xf]
    %v4392 = vld [vmem:[%s4371 + $0x50] sm:$0xf]
    %v4393 = vld [vmem:[%s4371 + $0x54] sm:$0xf]
    %v4394 = vld [vmem:[%s4371 + $0x58] sm:$0xf]
    %v4395 = vld [vmem:[%s4371 + $0x5c] sm:$0xf]
    %v4396 = vld [vmem:[%s4371 + $0x60] sm:$0xf]
    %v4397 = vld [vmem:[%s4371 + $0x64] sm:$0xf]
    %v4398 = vld [vmem:[%s4371 + $0x68] sm:$0xf]
    %v4399 = vld [vmem:[%s4371 + $0x6c] sm:$0xf]
    %v4400 = vld [vmem:[%s4371 + $0x70] sm:$0xf]
    %v4401 = vld [vmem:[%s4371 + $0x74] sm:$0xf]
    %v4402 = vld [vmem:[%s4371 + $0x78] sm:$0xf]
    %v4403 = vld [vmem:[%s4371 + $0x7c] sm:$0xf]
    %v4404 = vunpack.c.l.b16 %v4348
    %v4405 = vunpack.c.h.b16 %v4348
    %v4406 = vunpack.c.l.b16 %v4351
    %v4407 = vunpack.c.h.b16 %v4351
    %v4408 = vunpack.c.l.b16 %v4354
    %v4409 = vunpack.c.h.b16 %v4354
    %v4410 = vunpack.c.l.b16 %v4357
    %v4411 = vunpack.c.h.b16 %v4357
    %v4412 = vunpack.c.l.b16 %v4361
    %v4413 = vunpack.c.h.b16 %v4361
    %v4414 = vunpack.c.l.b16 %v4364
    %v4415 = vunpack.c.h.b16 %v4364
    %v4416 = vunpack.c.l.b16 %v4367
    %v4417 = vunpack.c.h.b16 %v4367
    %v4418 = vunpack.c.l.b16 %v4370
    %v4419 = vunpack.c.h.b16 %v4370
    %v4420 = vpack.c.b16 %v4406, %v4404
    %v4421 = vpack.c.b16 %v4407, %v4405
    %v4422 = vpack.c.b16 %v4410, %v4408
    %v4423 = vpack.c.b16 %v4411, %v4409
    %v4424 = vpack.c.b16 %v4414, %v4412
    %v4425 = vpack.c.b16 %v4415, %v4413
    %v4426 = vpack.c.b16 %v4418, %v4416
    %v4427 = vpack.c.b16 %v4419, %v4417
    %v4468 = vunpack.c.l.b16 %v4372
    %v4469 = vunpack.c.l.b16 %v4373
    %v4470 = vunpack.c.l.b16 %v4374
    %v4471 = vunpack.c.l.b16 %v4375
    %v4472 = vunpack.c.l.b16 %v4376
    %v4473 = vunpack.c.l.b16 %v4377
    %v4474 = vunpack.c.l.b16 %v4378
    %v4475 = vunpack.c.l.b16 %v4379
    %v4476 = vunpack.c.l.b16 %v4380
    %v4477 = vunpack.c.l.b16 %v4381
    %v4478 = vunpack.c.l.b16 %v4382
    %v4479 = vunpack.c.l.b16 %v4383
    %v4480 = vunpack.c.l.b16 %v4384
    %v4481 = vunpack.c.l.b16 %v4385
    %v4482 = vunpack.c.l.b16 %v4386
    %v4483 = vunpack.c.l.b16 %v4387
    %v4484 = vunpack.c.l.b16 %v4388
    %v4485 = vunpack.c.l.b16 %v4389
    %v4486 = vunpack.c.l.b16 %v4390
    %v4487 = vunpack.c.l.b16 %v4391
    %v4488 = vunpack.c.l.b16 %v4392
    %v4489 = vunpack.c.l.b16 %v4393
    %v4490 = vunpack.c.l.b16 %v4394
    %v4491 = vunpack.c.l.b16 %v4395
    %v4492 = vunpack.c.l.b16 %v4396
    %v4493 = vunpack.c.l.b16 %v4397
    %v4494 = vunpack.c.l.b16 %v4398
    %v4495 = vunpack.c.l.b16 %v4399
    %v4496 = vunpack.c.l.b16 %v4400
    %v4497 = vunpack.c.l.b16 %v4401
    %v4498 = vunpack.c.l.b16 %v4402
    %v4499 = vunpack.c.l.b16 %v4403
    %v4500 = vpack.c.b16 %v4469, %v4468
    %v4501 = vpack.c.b16 %v4471, %v4470
    %v4502 = vpack.c.b16 %v4473, %v4472
    %v4503 = vpack.c.b16 %v4475, %v4474
    %v4504 = vpack.c.b16 %v4477, %v4476
    %v4505 = vpack.c.b16 %v4479, %v4478
    %v4506 = vpack.c.b16 %v4481, %v4480
    %v4507 = vpack.c.b16 %v4483, %v4482
    %v4508 = vpack.c.b16 %v4485, %v4484
    %v4509 = vpack.c.b16 %v4487, %v4486
    %v4510 = vpack.c.b16 %v4489, %v4488
    %v4511 = vpack.c.b16 %v4491, %v4490
    %v4512 = vpack.c.b16 %v4493, %v4492
    %v4513 = vpack.c.b16 %v4495, %v4494
    %v4514 = vpack.c.b16 %v4497, %v4496
    %v4515 = vpack.c.b16 %v4499, %v4498
    %4532 = vmatpush.bf16.msra.mxu0 %v4507
    %4533 = vmatpush.bf16.msra.mxu0 %v4506
    %4534 = vmatpush.bf16.msra.mxu0 %v4505
    %4535 = vmatpush.bf16.msra.mxu0 %v4504
    %4536 = vmatpush.bf16.msra.mxu0 %v4503
    %4537 = vmatpush.bf16.msra.mxu0 %v4502
    %4538 = vmatpush.bf16.msra.mxu0 %v4501
    %4539 = vmatpush.bf16.msra.mxu0 %v4500
    %4540 = vmatmul.bf16.gmra.mxu0 %v4420
    %v4541 = vpop.f32.mrf.mxu0
    %v4542 = vadd.f32 0.0, %v4541
    %v4543 = vpop.f32.mrf.mxu0
    %v4544 = vadd.f32 0.0, %v4543
    %4545 = vmatmul.bf16.gmra.mxu0 %v4422
    %v4546 = vpop.f32.mrf.mxu0
    %v4547 = vadd.f32 0.0, %v4546
    %v4548 = vpop.f32.mrf.mxu0
    %v4549 = vadd.f32 0.0, %v4548
    %4550 = vmatmul.bf16.gmra.mxu0 %v4424
    %v4551 = vpop.f32.mrf.mxu0
    %v4552 = vadd.f32 0.0, %v4551
    %v4553 = vpop.f32.mrf.mxu0
    %v4554 = vadd.f32 0.0, %v4553
    %4555 = vmatmul.bf16.gmra.mxu0 %v4426
    %v4556 = vpop.f32.mrf.mxu0
    %v4557 = vadd.f32 0.0, %v4556
    %v4558 = vpop.f32.mrf.mxu0
    %v4559 = vadd.f32 0.0, %v4558
    %4560 = vdwg.mxu0
    %4561 = vmatpush.bf16.msra.mxu0 %v4515
    %4562 = vmatpush.bf16.msra.mxu0 %v4514
    %4563 = vmatpush.bf16.msra.mxu0 %v4513
    %4564 = vmatpush.bf16.msra.mxu0 %v4512
    %4565 = vmatpush.bf16.msra.mxu0 %v4511
    %4566 = vmatpush.bf16.msra.mxu0 %v4510
    %4567 = vmatpush.bf16.msra.mxu0 %v4509
    %4568 = vmatpush.bf16.msra.mxu0 %v4508
    %4569 = vmatmul.bf16.gmra.mxu0 %v4421
    %v4570 = vpop.f32.mrf.mxu0
    %v4571 = vadd.f32 %v4542, %v4570
    %v4572 = vpop.f32.mrf.mxu0
    %v4573 = vadd.f32 %v4544, %v4572
    %4574 = vmatmul.bf16.gmra.mxu0 %v4423
    %v4575 = vpop.f32.mrf.mxu0
    %v4576 = vadd.f32 %v4547, %v4575
    %v4577 = vpop.f32.mrf.mxu0
    %v4578 = vadd.f32 %v4549, %v4577
    %4579 = vmatmul.bf16.gmra.mxu0 %v4425
    %v4580 = vpop.f32.mrf.mxu0
    %v4581 = vadd.f32 %v4552, %v4580
    %v4582 = vpop.f32.mrf.mxu0
    %v4583 = vadd.f32 %v4554, %v4582
    %4584 = vmatmul.bf16.gmra.mxu0 %v4427
    %v4585 = vpop.f32.mrf.mxu0
    %v4586 = vadd.f32 %v4557, %v4585
    %v4587 = vpop.f32.mrf.mxu0
    %v4588 = vadd.f32 %v4559, %v4587
    %4589 = vdwg.mxu0
    %v4590 = vadd.f32 %v4331, %v4571
    %v4591 = vadd.f32 %v4332, %v4573
    %v4592 = vadd.f32 %v4333, %v4576
    %v4593 = vadd.f32 %v4334, %v4578
    %v4594 = vadd.f32 %v4335, %v4581
    %v4595 = vadd.f32 %v4336, %v4583
    %v4596 = vadd.f32 %v4337, %v4586
    %v4597 = vadd.f32 %v4338, %v4588
    %v4598 = vadd.f32 %v4590, %v4591
    %v4599 = vadd.f32 %v4598, %v4592
    %v4600 = vadd.f32 %v4599, %v4593
    %v4601 = vadd.f32 %v4600, %v4594
    %v4602 = vadd.f32 %v4601, %v4595
    %v4603 = vadd.f32 %v4602, %v4596
    %v4604 = vadd.f32 %v4603, %v4597
    %v4605 = vrot.slane %v4604, 4
    %v4606 = vadd.f32 %v4604, %v4605
    %v4607 = vrot.slane %v4606, 2
    %v4608 = vadd.f32 %v4606, %v4607
    %v4609 = vrot.slane %v4608, 1
    %v4610 = vadd.f32 %v4608, %v4609
    %v4611 = vmul.f32 %v4590, %v4590
    %v4612 = vmul.f32 %v4591, %v4591
    %v4613 = vmul.f32 %v4592, %v4592
    %v4614 = vmul.f32 %v4593, %v4593
    %v4615 = vmul.f32 %v4594, %v4594
    %v4616 = vmul.f32 %v4595, %v4595
    %v4617 = vmul.f32 %v4596, %v4596
    %v4618 = vmul.f32 %v4597, %v4597
    %v4619 = vadd.f32 %v4611, %v4612
    %v4620 = vadd.f32 %v4619, %v4613
    %v4621 = vadd.f32 %v4620, %v4614
    %v4622 = vadd.f32 %v4621, %v4615
    %v4623 = vadd.f32 %v4622, %v4616
    %v4624 = vadd.f32 %v4623, %v4617
    %v4625 = vadd.f32 %v4624, %v4618
    %v4626 = vrot.slane %v4625, 4
    %v4627 = vadd.f32 %v4625, %v4626
    %v4628 = vrot.slane %v4627, 2
    %v4629 = vadd.f32 %v4627, %v4628
    %v4630 = vrot.slane %v4629, 1
    %v4631 = vadd.f32 %v4629, %v4630
    %v4632 = vld [vmem:[%s7] sm:$0xff]
    %v4633 = vld [vmem:[%s7 + $0x8] sm:$0xff]
    %v4634 = vld [vmem:[%s7 + $0x10] sm:$0xff]
    %v4635 = vld [vmem:[%s7 + $0x18] sm:$0xff]
    %v4636 = vld [vmem:[%s7 + $0x20] sm:$0xff]
    %v4637 = vld [vmem:[%s7 + $0x28] sm:$0xff]
    %v4638 = vld [vmem:[%s7 + $0x30] sm:$0xff]
    %v4639 = vld [vmem:[%s7 + $0x38] sm:$0xff]
    %v4640 = vld [vmem:[%s7 + $0x40] sm:$0xff]
    %v4641 = vld [vmem:[%s7 + $0x48] sm:$0xff]
    %v4642 = vld [vmem:[%s7 + $0x50] sm:$0xff]
    %v4643 = vld [vmem:[%s7 + $0x58] sm:$0xff]
    %v4644 = vld [vmem:[%s7 + $0x60] sm:$0xff]
    %v4645 = vld [vmem:[%s7 + $0x68] sm:$0xff]
    %v4646 = vld [vmem:[%s7 + $0x70] sm:$0xff]
    %v4647 = vld [vmem:[%s7 + $0x78] sm:$0xff]
    %4648 = vmatpush.msra.mxu0 %v4647
    %4649 = vmatpush.msra.mxu0 %v4646
    %4650 = vmatpush.msra.mxu0 %v4645
    %4651 = vmatpush.msra.mxu0 %v4644
    %4652 = vmatpush.msra.mxu0 %v4643
    %4653 = vmatpush.msra.mxu0 %v4642
    %4654 = vmatpush.msra.mxu0 %v4641
    %4655 = vmatpush.msra.mxu0 %v4640
    %4656 = vmatpush.msra.mxu0 %v4639
    %4657 = vmatpush.msra.mxu0 %v4638
    %4658 = vmatpush.msra.mxu0 %v4637
    %4659 = vmatpush.msra.mxu0 %v4636
    %4660 = vmatpush.msra.mxu0 %v4635
    %4661 = vmatpush.msra.mxu0 %v4634
    %4662 = vmatpush.msra.mxu0 %v4633
    %4663 = vmatpush.msra.mxu0 %v4632
    %4664 = vmatmul.f32.gmra.mxu0 %v4610
    %v4665 = vpop.f32.mrf.mxu0
    %v4666 = vadd.f32 0.0, %v4665
    %4667 = vdwg.mxu0
    %4668 = vmatpush.msra.mxu0 %v4647
    %4669 = vmatpush.msra.mxu0 %v4646
    %4670 = vmatpush.msra.mxu0 %v4645
    %4671 = vmatpush.msra.mxu0 %v4644
    %4672 = vmatpush.msra.mxu0 %v4643
    %4673 = vmatpush.msra.mxu0 %v4642
    %4674 = vmatpush.msra.mxu0 %v4641
    %4675 = vmatpush.msra.mxu0 %v4640
    %4676 = vmatpush.msra.mxu0 %v4639
    %4677 = vmatpush.msra.mxu0 %v4638
    %4678 = vmatpush.msra.mxu0 %v4637
    %4679 = vmatpush.msra.mxu0 %v4636
    %4680 = vmatpush.msra.mxu0 %v4635
    %4681 = vmatpush.msra.mxu0 %v4634
    %4682 = vmatpush.msra.mxu0 %v4633
    %4683 = vmatpush.msra.mxu0 %v4632
    %4684 = vmatmul.f32.gmra.mxu0 %v4631
    %v4685 = vpop.f32.mrf.mxu0
    %v4686 = vadd.f32 0.0, %v4685
    %4687 = vdwg.mxu0
    %v4688 = vrcp.pop 2048.0
    %v4689 = vmul.f32 2048.0, %v4688
    %v4690 = vsub.f32 1.0, %v4689
    %v4691 = vmul.f32 %v4688, %v4690
    %v4692 = vadd.f32 %v4688, %v4691
    %vm4693 = vweird.f32 %v4688
    %v4694 = vsel %vm4693, %v4688, %v4692
    %v4695 = vmul.f32 %v4666, %v4694
    %v4696 = vmul.f32 %v4686, %v4694
    %v4697 = vmul.f32 %v4695, %v4695
    %v4698 = vsub.f32 %v4696, %v4697
    %v4699 = vmax.f32 %v4698, 0.0
    %v4700 = vadd.f32 %v4699, 0.0001
    %v4701 = vrsqrt.pop %v4700
    %v4702 = vmul.f32 %v4701, %v4700
    %v4703 = vmul.f32 %v4702, %v4701
    %v4704 = vmul.f32 0.5, %v4703
    %v4705 = vsub.f32 1.5, %v4704
    %v4706 = vmul.f32 %v4701, %v4705
    %vm4707 = vweird.f32 %v4700
    %vm4708 = vweird.f32 %v4701
    %vm4709 = vmor %vm4707, %vm4708
    %v4710 = vsel %vm4709, %v4701, %v4706
    %v4711 = vld [vmem:[%s8] sm:$0xf]
    %vm4712 = vcmask 31744
    %v4714 = vsel %vm4712, %v4695, 0
    %vm4716 = vcmask 1043456
    %v4718 = vsel %vm4716, %v4711, 0
    %4720 = vmatpush.msra.mxu0 0.0
    %4721 = vmatpush.msra.mxu0 0.0
    %4722 = vmatpush.msra.mxu0 0.0
    %4723 = vmatpush.msra.mxu0 0.0
    %4724 = vmatpush.msra.mxu0 0.0
    %4725 = vmatpush.msra.mxu0 0.0
    %4726 = vmatpush.msra.mxu0 0.0
    %4727 = vmatpush.msra.mxu0 0.0
    %4728 = vmatpush.msra.mxu0 0.0
    %4729 = vmatpush.msra.mxu0 0.0
    %4730 = vmatpush.msra.mxu0 0.0
    %4731 = vmatpush.msra.mxu0 0.0
    %4732 = vmatpush.msra.mxu0 0.0
    %4733 = vmatpush.msra.mxu0 0.0
    %4734 = vmatpush.msra.mxu0 0.0
    %4735 = vmatpush.msra.mxu0 %v4718
    %4736 = vmatmul.f32.gmra.mxu0 %v4714
    %v4737 = vpop.f32.mrf.mxu0
    %v4738 = vadd.f32 0.0, %v4737
    %4739 = vdwg.mxu0
    %v4741 = vsel %vm4712, %v4710, 0
    %4743 = vmatpush.msra.mxu0 0.0
    %4744 = vmatpush.msra.mxu0 0.0
    %4745 = vmatpush.msra.mxu0 0.0
    %4746 = vmatpush.msra.mxu0 0.0
    %4747 = vmatpush.msra.mxu0 0.0
    %4748 = vmatpush.msra.mxu0 0.0
    %4749 = vmatpush.msra.mxu0 0.0
    %4750 = vmatpush.msra.mxu0 0.0
    %4751 = vmatpush.msra.mxu0 0.0
    %4752 = vmatpush.msra.mxu0 0.0
    %4753 = vmatpush.msra.mxu0 0.0
    %4754 = vmatpush.msra.mxu0 0.0
    %4755 = vmatpush.msra.mxu0 0.0
    %4756 = vmatpush.msra.mxu0 0.0
    %4757 = vmatpush.msra.mxu0 0.0
    %4758 = vmatpush.msra.mxu0 %v4718
    %4759 = vmatmul.f32.gmra.mxu0 %v4741
    %v4760 = vpop.f32.mrf.mxu0
    %v4761 = vadd.f32 0.0, %v4760
    %4762 = vdwg.mxu0
    %v4763 = vperm.slane %v4738, 0
    %v4764 = vsub.f32 %v4590, %v4763
    %v4765 = vsub.f32 %v4591, %v4763
    %v4766 = vsub.f32 %v4592, %v4763
    %v4767 = vsub.f32 %v4593, %v4763
    %v4768 = vsub.f32 %v4594, %v4763
    %v4769 = vsub.f32 %v4595, %v4763
    %v4770 = vsub.f32 %v4596, %v4763
    %v4771 = vsub.f32 %v4597, %v4763
    %v4772 = vperm.slane %v4761, 0
    %v4773 = vmul.f32 %v4764, %v4772
    %v4774 = vmul.f32 %v4765, %v4772
    %v4775 = vmul.f32 %v4766, %v4772
    %v4776 = vmul.f32 %v4767, %v4772
    %v4777 = vmul.f32 %v4768, %v4772
    %v4778 = vmul.f32 %v4769, %v4772
    %v4779 = vmul.f32 %v4770, %v4772
    %v4780 = vmul.f32 %v4771, %v4772
    %vm4781 = vcmp.ge.f32.partialorder %v4773, 0.0
    %vm4782 = vcmp.ge.f32.partialorder %v4774, 0.0
    %vm4783 = vcmp.ge.f32.partialorder %v4775, 0.0
    %vm4784 = vcmp.ge.f32.partialorder %v4776, 0.0
    %vm4785 = vcmp.ge.f32.partialorder %v4777, 0.0
    %vm4786 = vcmp.ge.f32.partialorder %v4778, 0.0
    %vm4787 = vcmp.ge.f32.partialorder %v4779, 0.0
    %vm4788 = vcmp.ge.f32.partialorder %v4780, 0.0
    %v4789 = vmul.f32 %v4773, 0.01
    %v4790 = vmul.f32 %v4774, 0.01
    %v4791 = vmul.f32 %v4775, 0.01
    %v4792 = vmul.f32 %v4776, 0.01
    %v4793 = vmul.f32 %v4777, 0.01
    %v4794 = vmul.f32 %v4778, 0.01
    %v4795 = vmul.f32 %v4779, 0.01
    %v4796 = vmul.f32 %v4780, 0.01
    %v4797 = vsel %vm4781, %v4773, %v4789
    %v4798 = vsel %vm4782, %v4774, %v4790
    %v4799 = vsel %vm4783, %v4775, %v4791
    %v4800 = vsel %vm4784, %v4776, %v4792
    %v4801 = vsel %vm4785, %v4777, %v4793
    %v4802 = vsel %vm4786, %v4778, %v4794
    %v4803 = vsel %vm4787, %v4779, %v4795
    %v4804 = vsel %vm4788, %v4780, %v4796
    %4813 = vrot.lane.b32.xlu0 %v4797, 64
    %v4814 = vpop.permute.xlu0 %4813
    %4815 = vrot.lane.b32.xlu0 %v4798, 64
    %v4816 = vpop.permute.xlu0 %4815
    %4817 = vrot.lane.b32.xlu0 %v4799, 64
    %v4818 = vpop.permute.xlu0 %4817
    %4819 = vrot.lane.b32.xlu0 %v4800, 64
    %v4820 = vpop.permute.xlu0 %4819
    %4821 = vrot.lane.b32.xlu0 %v4801, 64
    %v4822 = vpop.permute.xlu0 %4821
    %4823 = vrot.lane.b32.xlu0 %v4802, 64
    %v4824 = vpop.permute.xlu0 %4823
    %4825 = vrot.lane.b32.xlu0 %v4803, 64
    %v4826 = vpop.permute.xlu0 %4825
    %4827 = vrot.lane.b32.xlu0 %v4804, 64
    %v4828 = vpop.permute.xlu0 %4827
    %v4837 = vmax.f32 %v4797, %v4814
    %v4838 = vmax.f32 %v4798, %v4816
    %v4839 = vmax.f32 %v4799, %v4818
    %v4840 = vmax.f32 %v4800, %v4820
    %v4841 = vmax.f32 %v4801, %v4822
    %v4842 = vmax.f32 %v4802, %v4824
    %v4843 = vmax.f32 %v4803, %v4826
    %v4844 = vmax.f32 %v4804, %v4828
    %v4847 = vrot.slane %v4837, 1
    %v4848 = vrot.slane %v4841, 1
    %v4851 = vmax.f32 %v4837, %v4847
    %v4852 = vmax.f32 %v4841, %v4848
    %v4853 = vpack.c.bf16 %v4851, %v4851
    %v4854 = vpack.c.bf16 %v4852, %v4852
    %v4855 = vld [vmem:[%s3] sm:$0xf]
    %v4856 = vld [vmem:[%s3 + $0x4] sm:$0xf]
    %v4857 = vld [vmem:[%s3 + $0x8] sm:$0xf]
    %v4858 = vld [vmem:[%s3 + $0xc] sm:$0xf]
    %v4859 = vld [vmem:[%s3 + $0x10] sm:$0xf]
    %v4860 = vld [vmem:[%s3 + $0x14] sm:$0xf]
    %v4861 = vld [vmem:[%s3 + $0x18] sm:$0xf]
    %v4862 = vld [vmem:[%s3 + $0x1c] sm:$0xf]
    %s4863 = scalar_lea.vmem %s3, 32
    %v4864 = vld [vmem:[%s4863] sm:$0xf]
    %v4865 = vld [vmem:[%s4863 + $0x4] sm:$0xf]
    %v4866 = vld [vmem:[%s4863 + $0x8] sm:$0xf]
    %v4867 = vld [vmem:[%s4863 + $0xc] sm:$0xf]
    %v4868 = vld [vmem:[%s4863 + $0x10] sm:$0xf]
    %v4869 = vld [vmem:[%s4863 + $0x14] sm:$0xf]
    %v4870 = vld [vmem:[%s4863 + $0x18] sm:$0xf]
    %v4871 = vld [vmem:[%s4863 + $0x1c] sm:$0xf]
    %v4874 = vunpack.c.l.b16 %v4853
    %v4875 = vunpack.c.l.b16 %v4854
    %v4876 = vrot.slane %v4874, 2
    %v4877 = vrot.slane %v4875, 1
    %vm4878 = vcmask 1041409
    %v4879 = vsel %vm4878, %v4877, %v4876
    %v4880 = vpack.c.b16 %v4879, %v4879
    %v4889 = vunpack.c.l.b16 %v4864
    %v4890 = vunpack.c.l.b16 %v4865
    %v4891 = vunpack.c.l.b16 %v4866
    %v4892 = vunpack.c.l.b16 %v4867
    %v4893 = vunpack.c.l.b16 %v4868
    %v4894 = vunpack.c.l.b16 %v4869
    %v4895 = vunpack.c.l.b16 %v4870
    %v4896 = vunpack.c.l.b16 %v4871
    %v4897 = vpack.c.b16 %v4890, %v4889
    %v4898 = vpack.c.b16 %v4892, %v4891
    %v4899 = vpack.c.b16 %v4894, %v4893
    %v4900 = vpack.c.b16 %v4896, %v4895
    %v4906 = vsel %vm745, %v4880, 0
    %4908 = vmatpush.bf16.msra.mxu0 0
    %4909 = vmatpush.bf16.msra.mxu0 0
    %4910 = vmatpush.bf16.msra.mxu0 0
    %4911 = vmatpush.bf16.msra.mxu0 0
    %4912 = vmatpush.bf16.msra.mxu0 %v4900
    %4913 = vmatpush.bf16.msra.mxu0 %v4899
    %4914 = vmatpush.bf16.msra.mxu0 %v4898
    %4915 = vmatpush.bf16.msra.mxu0 %v4897
    %4916 = vmatmul.bf16.gmra.mxu0 %v4906
    %v4917 = vpop.f32.mrf.mxu0
    %v4918 = vadd.f32 0.0, %v4917
    %v4919 = vpop.f32.mrf.mxu0
    %4920 = vdwg.mxu0
    %v4921 = vrot.slane %v4875, 7
    %v4922 = vsel %vm4878, %v4921, %v4874
    %v4923 = vpack.c.b16 %v4922, %v4922
    %v4932 = vunpack.c.l.b16 %v4855
    %v4933 = vunpack.c.l.b16 %v4856
    %v4934 = vunpack.c.l.b16 %v4857
    %v4935 = vunpack.c.l.b16 %v4858
    %v4936 = vunpack.c.l.b16 %v4859
    %v4937 = vunpack.c.l.b16 %v4860
    %v4938 = vunpack.c.l.b16 %v4861
    %v4939 = vunpack.c.l.b16 %v4862
    %v4940 = vpack.c.b16 %v4933, %v4932
    %v4941 = vpack.c.b16 %v4935, %v4934
    %v4942 = vpack.c.b16 %v4937, %v4936
    %v4943 = vpack.c.b16 %v4939, %v4938
    %v4949 = vsel %vm745, %v4923, 0
    %4951 = vmatpush.bf16.msra.mxu0 0
    %4952 = vmatpush.bf16.msra.mxu0 0
    %4953 = vmatpush.bf16.msra.mxu0 0
    %4954 = vmatpush.bf16.msra.mxu0 0
    %4955 = vmatpush.bf16.msra.mxu0 %v4943
    %4956 = vmatpush.bf16.msra.mxu0 %v4942
    %4957 = vmatpush.bf16.msra.mxu0 %v4941
    %4958 = vmatpush.bf16.msra.mxu0 %v4940
    %4959 = vmatmul.bf16.gmra.mxu0 %v4949
    %v4960 = vpop.f32.mrf.mxu0
    %v4961 = vadd.f32 %v4918, %v4960
    %v4962 = vpop.f32.mrf.mxu0
    %4963 = vdwg.mxu0
    %s4964 = scalar_lea.vmem %s3, 64
    %v4965 = vld [vmem:[%s4964] sm:$0xf]
    %v4966 = vld [vmem:[%s4964 + $0x4] sm:$0xf]
    %v4967 = vld [vmem:[%s4964 + $0x8] sm:$0xf]
    %v4968 = vld [vmem:[%s4964 + $0xc] sm:$0xf]
    %v4969 = vld [vmem:[%s4964 + $0x10] sm:$0xf]
    %v4970 = vld [vmem:[%s4964 + $0x14] sm:$0xf]
    %v4971 = vld [vmem:[%s4964 + $0x18] sm:$0xf]
    %v4972 = vld [vmem:[%s4964 + $0x1c] sm:$0xf]
    %v4973 = vrot.slane %v4874, 4
    %v4974 = vrot.slane %v4875, 3
    %v4975 = vsel %vm4878, %v4974, %v4973
    %v4976 = vpack.c.b16 %v4975, %v4975
    %v4985 = vunpack.c.l.b16 %v4965
    %v4986 = vunpack.c.l.b16 %v4966
    %v4987 = vunpack.c.l.b16 %v4967
    %v4988 = vunpack.c.l.b16 %v4968
    %v4989 = vunpack.c.l.b16 %v4969
    %v4990 = vunpack.c.l.b16 %v4970
    %v4991 = vunpack.c.l.b16 %v4971
    %v4992 = vunpack.c.l.b16 %v4972
    %v4993 = vpack.c.b16 %v4986, %v4985
    %v4994 = vpack.c.b16 %v4988, %v4987
    %v4995 = vpack.c.b16 %v4990, %v4989
    %v4996 = vpack.c.b16 %v4992, %v4991
    %v5002 = vsel %vm745, %v4976, 0
    %5004 = vmatpush.bf16.msra.mxu0 0
    %5005 = vmatpush.bf16.msra.mxu0 0
    %5006 = vmatpush.bf16.msra.mxu0 0
    %5007 = vmatpush.bf16.msra.mxu0 0
    %5008 = vmatpush.bf16.msra.mxu0 %v4996
    %5009 = vmatpush.bf16.msra.mxu0 %v4995
    %5010 = vmatpush.bf16.msra.mxu0 %v4994
    %5011 = vmatpush.bf16.msra.mxu0 %v4993
    %5012 = vmatmul.bf16.gmra.mxu0 %v5002
    %v5013 = vpop.f32.mrf.mxu0
    %v5014 = vadd.f32 0.0, %v5013
    %v5015 = vpop.f32.mrf.mxu0
    %5016 = vdwg.mxu0
    %v5017 = vadd.f32 %v4961, %v5014
    %s5018 = scalar_lea.vmem %s3, 96
    %v5019 = vld [vmem:[%s5018] sm:$0xf]
    %v5020 = vld [vmem:[%s5018 + $0x4] sm:$0xf]
    %v5021 = vld [vmem:[%s5018 + $0x8] sm:$0xf]
    %v5022 = vld [vmem:[%s5018 + $0xc] sm:$0xf]
    %v5023 = vld [vmem:[%s5018 + $0x10] sm:$0xf]
    %v5024 = vld [vmem:[%s5018 + $0x14] sm:$0xf]
    %v5025 = vld [vmem:[%s5018 + $0x18] sm:$0xf]
    %v5026 = vld [vmem:[%s5018 + $0x1c] sm:$0xf]
    %v5027 = vrot.slane %v4874, 6
    %v5028 = vrot.slane %v4875, 5
    %v5029 = vsel %vm4878, %v5028, %v5027
    %v5030 = vpack.c.b16 %v5029, %v5029
    %v5039 = vunpack.c.l.b16 %v5019
    %v5040 = vunpack.c.l.b16 %v5020
    %v5041 = vunpack.c.l.b16 %v5021
    %v5042 = vunpack.c.l.b16 %v5022
    %v5043 = vunpack.c.l.b16 %v5023
    %v5044 = vunpack.c.l.b16 %v5024
    %v5045 = vunpack.c.l.b16 %v5025
    %v5046 = vunpack.c.l.b16 %v5026
    %v5047 = vpack.c.b16 %v5040, %v5039
    %v5048 = vpack.c.b16 %v5042, %v5041
    %v5049 = vpack.c.b16 %v5044, %v5043
    %v5050 = vpack.c.b16 %v5046, %v5045
    %v5056 = vsel %vm745, %v5030, 0
    %5058 = vmatpush.bf16.msra.mxu0 0
    %5059 = vmatpush.bf16.msra.mxu0 0
    %5060 = vmatpush.bf16.msra.mxu0 0
    %5061 = vmatpush.bf16.msra.mxu0 0
    %5062 = vmatpush.bf16.msra.mxu0 %v5050
    %5063 = vmatpush.bf16.msra.mxu0 %v5049
    %5064 = vmatpush.bf16.msra.mxu0 %v5048
    %5065 = vmatpush.bf16.msra.mxu0 %v5047
    %5066 = vmatmul.bf16.gmra.mxu0 %v5056
    %v5067 = vpop.f32.mrf.mxu0
    %v5068 = vadd.f32 0.0, %v5067
    %v5069 = vpop.f32.mrf.mxu0
    %5070 = vdwg.mxu0
    %v5071 = vadd.f32 %v5017, %v5068
    %v5074 = vrot.slane %v4838, 1
    %v5075 = vrot.slane %v4842, 1
    %v5078 = vmax.f32 %v4838, %v5074
    %v5079 = vmax.f32 %v4842, %v5075
    %v5080 = vpack.c.bf16 %v5078, %v5078
    %v5081 = vpack.c.bf16 %v5079, %v5079
    %s5082 = scalar_lea.vmem %s3, 128
    %v5083 = vld [vmem:[%s5082] sm:$0xf]
    %v5084 = vld [vmem:[%s5082 + $0x4] sm:$0xf]
    %v5085 = vld [vmem:[%s5082 + $0x8] sm:$0xf]
    %v5086 = vld [vmem:[%s5082 + $0xc] sm:$0xf]
    %v5087 = vld [vmem:[%s5082 + $0x10] sm:$0xf]
    %v5088 = vld [vmem:[%s5082 + $0x14] sm:$0xf]
    %v5089 = vld [vmem:[%s5082 + $0x18] sm:$0xf]
    %v5090 = vld [vmem:[%s5082 + $0x1c] sm:$0xf]
    %v5093 = vunpack.c.l.b16 %v5080
    %v5094 = vunpack.c.l.b16 %v5081
    %v5095 = vrot.slane %v5094, 7
    %v5096 = vsel %vm4878, %v5095, %v5093
    %v5097 = vpack.c.b16 %v5096, %v5096
    %v5106 = vunpack.c.l.b16 %v5083
    %v5107 = vunpack.c.l.b16 %v5084
    %v5108 = vunpack.c.l.b16 %v5085
    %v5109 = vunpack.c.l.b16 %v5086
    %v5110 = vunpack.c.l.b16 %v5087
    %v5111 = vunpack.c.l.b16 %v5088
    %v5112 = vunpack.c.l.b16 %v5089
    %v5113 = vunpack.c.l.b16 %v5090
    %v5114 = vpack.c.b16 %v5107, %v5106
    %v5115 = vpack.c.b16 %v5109, %v5108
    %v5116 = vpack.c.b16 %v5111, %v5110
    %v5117 = vpack.c.b16 %v5113, %v5112
    %v5123 = vsel %vm745, %v5097, 0
    %5125 = vmatpush.bf16.msra.mxu0 0
    %5126 = vmatpush.bf16.msra.mxu0 0
    %5127 = vmatpush.bf16.msra.mxu0 0
    %5128 = vmatpush.bf16.msra.mxu0 0
    %5129 = vmatpush.bf16.msra.mxu0 %v5117
    %5130 = vmatpush.bf16.msra.mxu0 %v5116
    %5131 = vmatpush.bf16.msra.mxu0 %v5115
    %5132 = vmatpush.bf16.msra.mxu0 %v5114
    %5133 = vmatmul.bf16.gmra.mxu0 %v5123
    %v5134 = vpop.f32.mrf.mxu0
    %v5135 = vadd.f32 0.0, %v5134
    %v5136 = vpop.f32.mrf.mxu0
    %5137 = vdwg.mxu0
    %v5138 = vadd.f32 %v5071, %v5135
    %s5139 = scalar_lea.vmem %s3, 160
    %v5140 = vld [vmem:[%s5139] sm:$0xf]
    %v5141 = vld [vmem:[%s5139 + $0x4] sm:$0xf]
    %v5142 = vld [vmem:[%s5139 + $0x8] sm:$0xf]
    %v5143 = vld [vmem:[%s5139 + $0xc] sm:$0xf]
    %v5144 = vld [vmem:[%s5139 + $0x10] sm:$0xf]
    %v5145 = vld [vmem:[%s5139 + $0x14] sm:$0xf]
    %v5146 = vld [vmem:[%s5139 + $0x18] sm:$0xf]
    %v5147 = vld [vmem:[%s5139 + $0x1c] sm:$0xf]
    %v5148 = vrot.slane %v5093, 2
    %v5149 = vrot.slane %v5094, 1
    %v5150 = vsel %vm4878, %v5149, %v5148
    %v5151 = vpack.c.b16 %v5150, %v5150
    %v5160 = vunpack.c.l.b16 %v5140
    %v5161 = vunpack.c.l.b16 %v5141
    %v5162 = vunpack.c.l.b16 %v5142
    %v5163 = vunpack.c.l.b16 %v5143
    %v5164 = vunpack.c.l.b16 %v5144
    %v5165 = vunpack.c.l.b16 %v5145
    %v5166 = vunpack.c.l.b16 %v5146
    %v5167 = vunpack.c.l.b16 %v5147
    %v5168 = vpack.c.b16 %v5161, %v5160
    %v5169 = vpack.c.b16 %v5163, %v5162
    %v5170 = vpack.c.b16 %v5165, %v5164
    %v5171 = vpack.c.b16 %v5167, %v5166
    %v5177 = vsel %vm745, %v5151, 0
    %5179 = vmatpush.bf16.msra.mxu0 0
    %5180 = vmatpush.bf16.msra.mxu0 0
    %5181 = vmatpush.bf16.msra.mxu0 0
    %5182 = vmatpush.bf16.msra.mxu0 0
    %5183 = vmatpush.bf16.msra.mxu0 %v5171
    %5184 = vmatpush.bf16.msra.mxu0 %v5170
    %5185 = vmatpush.bf16.msra.mxu0 %v5169
    %5186 = vmatpush.bf16.msra.mxu0 %v5168
    %5187 = vmatmul.bf16.gmra.mxu0 %v5177
    %v5188 = vpop.f32.mrf.mxu0
    %v5189 = vadd.f32 0.0, %v5188
    %v5190 = vpop.f32.mrf.mxu0
    %5191 = vdwg.mxu0
    %v5192 = vadd.f32 %v5138, %v5189
    %s5193 = scalar_lea.vmem %s3, 192
    %v5194 = vld [vmem:[%s5193] sm:$0xf]
    %v5195 = vld [vmem:[%s5193 + $0x4] sm:$0xf]
    %v5196 = vld [vmem:[%s5193 + $0x8] sm:$0xf]
    %v5197 = vld [vmem:[%s5193 + $0xc] sm:$0xf]
    %v5198 = vld [vmem:[%s5193 + $0x10] sm:$0xf]
    %v5199 = vld [vmem:[%s5193 + $0x14] sm:$0xf]
    %v5200 = vld [vmem:[%s5193 + $0x18] sm:$0xf]
    %v5201 = vld [vmem:[%s5193 + $0x1c] sm:$0xf]
    %v5202 = vrot.slane %v5093, 4
    %v5203 = vrot.slane %v5094, 3
    %v5204 = vsel %vm4878, %v5203, %v5202
    %v5205 = vpack.c.b16 %v5204, %v5204
    %v5214 = vunpack.c.l.b16 %v5194
    %v5215 = vunpack.c.l.b16 %v5195
    %v5216 = vunpack.c.l.b16 %v5196
    %v5217 = vunpack.c.l.b16 %v5197
    %v5218 = vunpack.c.l.b16 %v5198
    %v5219 = vunpack.c.l.b16 %v5199
    %v5220 = vunpack.c.l.b16 %v5200
    %v5221 = vunpack.c.l.b16 %v5201
    %v5222 = vpack.c.b16 %v5215, %v5214
    %v5223 = vpack.c.b16 %v5217, %v5216
    %v5224 = vpack.c.b16 %v5219, %v5218
    %v5225 = vpack.c.b16 %v5221, %v5220
    %v5231 = vsel %vm745, %v5205, 0
    %5233 = vmatpush.bf16.msra.mxu0 0
    %5234 = vmatpush.bf16.msra.mxu0 0
    %5235 = vmatpush.bf16.msra.mxu0 0
    %5236 = vmatpush.bf16.msra.mxu0 0
    %5237 = vmatpush.bf16.msra.mxu0 %v5225
    %5238 = vmatpush.bf16.msra.mxu0 %v5224
    %5239 = vmatpush.bf16.msra.mxu0 %v5223
    %5240 = vmatpush.bf16.msra.mxu0 %v5222
    %5241 = vmatmul.bf16.gmra.mxu0 %v5231
    %v5242 = vpop.f32.mrf.mxu0
    %v5243 = vadd.f32 0.0, %v5242
    %v5244 = vpop.f32.mrf.mxu0
    %5245 = vdwg.mxu0
    %v5246 = vadd.f32 %v5192, %v5243
    %s5247 = scalar_lea.vmem %s3, 224
    %v5248 = vld [vmem:[%s5247] sm:$0xf]
    %v5249 = vld [vmem:[%s5247 + $0x4] sm:$0xf]
    %v5250 = vld [vmem:[%s5247 + $0x8] sm:$0xf]
    %v5251 = vld [vmem:[%s5247 + $0xc] sm:$0xf]
    %v5252 = vld [vmem:[%s5247 + $0x10] sm:$0xf]
    %v5253 = vld [vmem:[%s5247 + $0x14] sm:$0xf]
    %v5254 = vld [vmem:[%s5247 + $0x18] sm:$0xf]
    %v5255 = vld [vmem:[%s5247 + $0x1c] sm:$0xf]
    %v5256 = vrot.slane %v5093, 6
    %v5257 = vrot.slane %v5094, 5
    %v5258 = vsel %vm4878, %v5257, %v5256
    %v5259 = vpack.c.b16 %v5258, %v5258
    %v5268 = vunpack.c.l.b16 %v5248
    %v5269 = vunpack.c.l.b16 %v5249
    %v5270 = vunpack.c.l.b16 %v5250
    %v5271 = vunpack.c.l.b16 %v5251
    %v5272 = vunpack.c.l.b16 %v5252
    %v5273 = vunpack.c.l.b16 %v5253
    %v5274 = vunpack.c.l.b16 %v5254
    %v5275 = vunpack.c.l.b16 %v5255
    %v5276 = vpack.c.b16 %v5269, %v5268
    %v5277 = vpack.c.b16 %v5271, %v5270
    %v5278 = vpack.c.b16 %v5273, %v5272
    %v5279 = vpack.c.b16 %v5275, %v5274
    %v5285 = vsel %vm745, %v5259, 0
    %5287 = vmatpush.bf16.msra.mxu0 0
    %5288 = vmatpush.bf16.msra.mxu0 0
    %5289 = vmatpush.bf16.msra.mxu0 0
    %5290 = vmatpush.bf16.msra.mxu0 0
    %5291 = vmatpush.bf16.msra.mxu0 %v5279
    %5292 = vmatpush.bf16.msra.mxu0 %v5278
    %5293 = vmatpush.bf16.msra.mxu0 %v5277
    %5294 = vmatpush.bf16.msra.mxu0 %v5276
    %5295 = vmatmul.bf16.gmra.mxu0 %v5285
    %v5296 = vpop.f32.mrf.mxu0
    %v5297 = vadd.f32 0.0, %v5296
    %v5298 = vpop.f32.mrf.mxu0
    %5299 = vdwg.mxu0
    %v5300 = vadd.f32 %v5246, %v5297
    %v5303 = vrot.slane %v4839, 1
    %v5304 = vrot.slane %v4843, 1
    %v5307 = vmax.f32 %v4839, %v5303
    %v5308 = vmax.f32 %v4843, %v5304
    %v5309 = vpack.c.bf16 %v5307, %v5307
    %v5310 = vpack.c.bf16 %v5308, %v5308
    %s5311 = scalar_lea.vmem %s3, 256
    %v5312 = vld [vmem:[%s5311] sm:$0xf]
    %v5313 = vld [vmem:[%s5311 + $0x4] sm:$0xf]
    %v5314 = vld [vmem:[%s5311 + $0x8] sm:$0xf]
    %v5315 = vld [vmem:[%s5311 + $0xc] sm:$0xf]
    %v5316 = vld [vmem:[%s5311 + $0x10] sm:$0xf]
    %v5317 = vld [vmem:[%s5311 + $0x14] sm:$0xf]
    %v5318 = vld [vmem:[%s5311 + $0x18] sm:$0xf]
    %v5319 = vld [vmem:[%s5311 + $0x1c] sm:$0xf]
    %v5322 = vunpack.c.l.b16 %v5309
    %v5323 = vunpack.c.l.b16 %v5310
    %v5324 = vrot.slane %v5323, 7
    %v5325 = vsel %vm4878, %v5324, %v5322
    %v5326 = vpack.c.b16 %v5325, %v5325
    %v5335 = vunpack.c.l.b16 %v5312
    %v5336 = vunpack.c.l.b16 %v5313
    %v5337 = vunpack.c.l.b16 %v5314
    %v5338 = vunpack.c.l.b16 %v5315
    %v5339 = vunpack.c.l.b16 %v5316
    %v5340 = vunpack.c.l.b16 %v5317
    %v5341 = vunpack.c.l.b16 %v5318
    %v5342 = vunpack.c.l.b16 %v5319
    %v5343 = vpack.c.b16 %v5336, %v5335
    %v5344 = vpack.c.b16 %v5338, %v5337
    %v5345 = vpack.c.b16 %v5340, %v5339
    %v5346 = vpack.c.b16 %v5342, %v5341
    %v5352 = vsel %vm745, %v5326, 0
    %5354 = vmatpush.bf16.msra.mxu0 0
    %5355 = vmatpush.bf16.msra.mxu0 0
    %5356 = vmatpush.bf16.msra.mxu0 0
    %5357 = vmatpush.bf16.msra.mxu0 0
    %5358 = vmatpush.bf16.msra.mxu0 %v5346
    %5359 = vmatpush.bf16.msra.mxu0 %v5345
    %5360 = vmatpush.bf16.msra.mxu0 %v5344
    %5361 = vmatpush.bf16.msra.mxu0 %v5343
    %5362 = vmatmul.bf16.gmra.mxu0 %v5352
    %v5363 = vpop.f32.mrf.mxu0
    %v5364 = vadd.f32 0.0, %v5363
    %v5365 = vpop.f32.mrf.mxu0
    %5366 = vdwg.mxu0
    %v5367 = vadd.f32 %v5300, %v5364
    %s5368 = scalar_lea.vmem %s3, 288
    %v5369 = vld [vmem:[%s5368] sm:$0xf]
    %v5370 = vld [vmem:[%s5368 + $0x4] sm:$0xf]
    %v5371 = vld [vmem:[%s5368 + $0x8] sm:$0xf]
    %v5372 = vld [vmem:[%s5368 + $0xc] sm:$0xf]
    %v5373 = vld [vmem:[%s5368 + $0x10] sm:$0xf]
    %v5374 = vld [vmem:[%s5368 + $0x14] sm:$0xf]
    %v5375 = vld [vmem:[%s5368 + $0x18] sm:$0xf]
    %v5376 = vld [vmem:[%s5368 + $0x1c] sm:$0xf]
    %v5377 = vrot.slane %v5322, 2
    %v5378 = vrot.slane %v5323, 1
    %v5379 = vsel %vm4878, %v5378, %v5377
    %v5380 = vpack.c.b16 %v5379, %v5379
    %v5389 = vunpack.c.l.b16 %v5369
    %v5390 = vunpack.c.l.b16 %v5370
    %v5391 = vunpack.c.l.b16 %v5371
    %v5392 = vunpack.c.l.b16 %v5372
    %v5393 = vunpack.c.l.b16 %v5373
    %v5394 = vunpack.c.l.b16 %v5374
    %v5395 = vunpack.c.l.b16 %v5375
    %v5396 = vunpack.c.l.b16 %v5376
    %v5397 = vpack.c.b16 %v5390, %v5389
    %v5398 = vpack.c.b16 %v5392, %v5391
    %v5399 = vpack.c.b16 %v5394, %v5393
    %v5400 = vpack.c.b16 %v5396, %v5395
    %v5406 = vsel %vm745, %v5380, 0
    %5408 = vmatpush.bf16.msra.mxu0 0
    %5409 = vmatpush.bf16.msra.mxu0 0
    %5410 = vmatpush.bf16.msra.mxu0 0
    %5411 = vmatpush.bf16.msra.mxu0 0
    %5412 = vmatpush.bf16.msra.mxu0 %v5400
    %5413 = vmatpush.bf16.msra.mxu0 %v5399
    %5414 = vmatpush.bf16.msra.mxu0 %v5398
    %5415 = vmatpush.bf16.msra.mxu0 %v5397
    %5416 = vmatmul.bf16.gmra.mxu0 %v5406
    %v5417 = vpop.f32.mrf.mxu0
    %v5418 = vadd.f32 0.0, %v5417
    %v5419 = vpop.f32.mrf.mxu0
    %5420 = vdwg.mxu0
    %v5421 = vadd.f32 %v5367, %v5418
    %s5422 = scalar_lea.vmem %s3, 320
    %v5423 = vld [vmem:[%s5422] sm:$0xf]
    %v5424 = vld [vmem:[%s5422 + $0x4] sm:$0xf]
    %v5425 = vld [vmem:[%s5422 + $0x8] sm:$0xf]
    %v5426 = vld [vmem:[%s5422 + $0xc] sm:$0xf]
    %v5427 = vld [vmem:[%s5422 + $0x10] sm:$0xf]
    %v5428 = vld [vmem:[%s5422 + $0x14] sm:$0xf]
    %v5429 = vld [vmem:[%s5422 + $0x18] sm:$0xf]
    %v5430 = vld [vmem:[%s5422 + $0x1c] sm:$0xf]
    %v5431 = vrot.slane %v5322, 4
    %v5432 = vrot.slane %v5323, 3
    %v5433 = vsel %vm4878, %v5432, %v5431
    %v5434 = vpack.c.b16 %v5433, %v5433
    %v5443 = vunpack.c.l.b16 %v5423
    %v5444 = vunpack.c.l.b16 %v5424
    %v5445 = vunpack.c.l.b16 %v5425
    %v5446 = vunpack.c.l.b16 %v5426
    %v5447 = vunpack.c.l.b16 %v5427
    %v5448 = vunpack.c.l.b16 %v5428
    %v5449 = vunpack.c.l.b16 %v5429
    %v5450 = vunpack.c.l.b16 %v5430
    %v5451 = vpack.c.b16 %v5444, %v5443
    %v5452 = vpack.c.b16 %v5446, %v5445
    %v5453 = vpack.c.b16 %v5448, %v5447
    %v5454 = vpack.c.b16 %v5450, %v5449
    %v5460 = vsel %vm745, %v5434, 0
    %5462 = vmatpush.bf16.msra.mxu0 0
    %5463 = vmatpush.bf16.msra.mxu0 0
    %5464 = vmatpush.bf16.msra.mxu0 0
    %5465 = vmatpush.bf16.msra.mxu0 0
    %5466 = vmatpush.bf16.msra.mxu0 %v5454
    %5467 = vmatpush.bf16.msra.mxu0 %v5453
    %5468 = vmatpush.bf16.msra.mxu0 %v5452
    %5469 = vmatpush.bf16.msra.mxu0 %v5451
    %5470 = vmatmul.bf16.gmra.mxu0 %v5460
    %v5471 = vpop.f32.mrf.mxu0
    %v5472 = vadd.f32 0.0, %v5471
    %v5473 = vpop.f32.mrf.mxu0
    %5474 = vdwg.mxu0
    %v5475 = vadd.f32 %v5421, %v5472
    %s5476 = scalar_lea.vmem %s3, 352
    %v5477 = vld [vmem:[%s5476] sm:$0xf]
    %v5478 = vld [vmem:[%s5476 + $0x4] sm:$0xf]
    %v5479 = vld [vmem:[%s5476 + $0x8] sm:$0xf]
    %v5480 = vld [vmem:[%s5476 + $0xc] sm:$0xf]
    %v5481 = vld [vmem:[%s5476 + $0x10] sm:$0xf]
    %v5482 = vld [vmem:[%s5476 + $0x14] sm:$0xf]
    %v5483 = vld [vmem:[%s5476 + $0x18] sm:$0xf]
    %v5484 = vld [vmem:[%s5476 + $0x1c] sm:$0xf]
    %v5485 = vrot.slane %v5322, 6
    %v5486 = vrot.slane %v5323, 5
    %v5487 = vsel %vm4878, %v5486, %v5485
    %v5488 = vpack.c.b16 %v5487, %v5487
    %v5497 = vunpack.c.l.b16 %v5477
    %v5498 = vunpack.c.l.b16 %v5478
    %v5499 = vunpack.c.l.b16 %v5479
    %v5500 = vunpack.c.l.b16 %v5480
    %v5501 = vunpack.c.l.b16 %v5481
    %v5502 = vunpack.c.l.b16 %v5482
    %v5503 = vunpack.c.l.b16 %v5483
    %v5504 = vunpack.c.l.b16 %v5484
    %v5505 = vpack.c.b16 %v5498, %v5497
    %v5506 = vpack.c.b16 %v5500, %v5499
    %v5507 = vpack.c.b16 %v5502, %v5501
    %v5508 = vpack.c.b16 %v5504, %v5503
    %v5514 = vsel %vm745, %v5488, 0
    %5516 = vmatpush.bf16.msra.mxu0 0
    %5517 = vmatpush.bf16.msra.mxu0 0
    %5518 = vmatpush.bf16.msra.mxu0 0
    %5519 = vmatpush.bf16.msra.mxu0 0
    %5520 = vmatpush.bf16.msra.mxu0 %v5508
    %5521 = vmatpush.bf16.msra.mxu0 %v5507
    %5522 = vmatpush.bf16.msra.mxu0 %v5506
    %5523 = vmatpush.bf16.msra.mxu0 %v5505
    %5524 = vmatmul.bf16.gmra.mxu0 %v5514
    %v5525 = vpop.f32.mrf.mxu0
    %v5526 = vadd.f32 0.0, %v5525
    %v5527 = vpop.f32.mrf.mxu0
    %5528 = vdwg.mxu0
    %v5529 = vadd.f32 %v5475, %v5526
    %v5532 = vrot.slane %v4840, 1
    %v5533 = vrot.slane %v4844, 1
    %v5536 = vmax.f32 %v4840, %v5532
    %v5537 = vmax.f32 %v4844, %v5533
    %v5538 = vpack.c.bf16 %v5536, %v5536
    %v5539 = vpack.c.bf16 %v5537, %v5537
    %s5540 = scalar_lea.vmem %s3, 384
    %v5541 = vld [vmem:[%s5540] sm:$0xf]
    %v5542 = vld [vmem:[%s5540 + $0x4] sm:$0xf]
    %v5543 = vld [vmem:[%s5540 + $0x8] sm:$0xf]
    %v5544 = vld [vmem:[%s5540 + $0xc] sm:$0xf]
    %v5545 = vld [vmem:[%s5540 + $0x10] sm:$0xf]
    %v5546 = vld [vmem:[%s5540 + $0x14] sm:$0xf]
    %v5547 = vld [vmem:[%s5540 + $0x18] sm:$0xf]
    %v5548 = vld [vmem:[%s5540 + $0x1c] sm:$0xf]
    %v5551 = vunpack.c.l.b16 %v5538
    %v5552 = vunpack.c.l.b16 %v5539
    %v5553 = vrot.slane %v5552, 7
    %v5554 = vsel %vm4878, %v5553, %v5551
    %v5555 = vpack.c.b16 %v5554, %v5554
    %v5564 = vunpack.c.l.b16 %v5541
    %v5565 = vunpack.c.l.b16 %v5542
    %v5566 = vunpack.c.l.b16 %v5543
    %v5567 = vunpack.c.l.b16 %v5544
    %v5568 = vunpack.c.l.b16 %v5545
    %v5569 = vunpack.c.l.b16 %v5546
    %v5570 = vunpack.c.l.b16 %v5547
    %v5571 = vunpack.c.l.b16 %v5548
    %v5572 = vpack.c.b16 %v5565, %v5564
    %v5573 = vpack.c.b16 %v5567, %v5566
    %v5574 = vpack.c.b16 %v5569, %v5568
    %v5575 = vpack.c.b16 %v5571, %v5570
    %v5581 = vsel %vm745, %v5555, 0
    %5583 = vmatpush.bf16.msra.mxu0 0
    %5584 = vmatpush.bf16.msra.mxu0 0
    %5585 = vmatpush.bf16.msra.mxu0 0
    %5586 = vmatpush.bf16.msra.mxu0 0
    %5587 = vmatpush.bf16.msra.mxu0 %v5575
    %5588 = vmatpush.bf16.msra.mxu0 %v5574
    %5589 = vmatpush.bf16.msra.mxu0 %v5573
    %5590 = vmatpush.bf16.msra.mxu0 %v5572
    %5591 = vmatmul.bf16.gmra.mxu0 %v5581
    %v5592 = vpop.f32.mrf.mxu0
    %v5593 = vadd.f32 0.0, %v5592
    %v5594 = vpop.f32.mrf.mxu0
    %5595 = vdwg.mxu0
    %v5596 = vadd.f32 %v5529, %v5593
    %s5597 = scalar_lea.vmem %s3, 416
    %v5598 = vld [vmem:[%s5597] sm:$0xf]
    %v5599 = vld [vmem:[%s5597 + $0x4] sm:$0xf]
    %v5600 = vld [vmem:[%s5597 + $0x8] sm:$0xf]
    %v5601 = vld [vmem:[%s5597 + $0xc] sm:$0xf]
    %v5602 = vld [vmem:[%s5597 + $0x10] sm:$0xf]
    %v5603 = vld [vmem:[%s5597 + $0x14] sm:$0xf]
    %v5604 = vld [vmem:[%s5597 + $0x18] sm:$0xf]
    %v5605 = vld [vmem:[%s5597 + $0x1c] sm:$0xf]
    %v5606 = vrot.slane %v5551, 2
    %v5607 = vrot.slane %v5552, 1
    %v5608 = vsel %vm4878, %v5607, %v5606
    %v5609 = vpack.c.b16 %v5608, %v5608
    %v5618 = vunpack.c.l.b16 %v5598
    %v5619 = vunpack.c.l.b16 %v5599
    %v5620 = vunpack.c.l.b16 %v5600
    %v5621 = vunpack.c.l.b16 %v5601
    %v5622 = vunpack.c.l.b16 %v5602
    %v5623 = vunpack.c.l.b16 %v5603
    %v5624 = vunpack.c.l.b16 %v5604
    %v5625 = vunpack.c.l.b16 %v5605
    %v5626 = vpack.c.b16 %v5619, %v5618
    %v5627 = vpack.c.b16 %v5621, %v5620
    %v5628 = vpack.c.b16 %v5623, %v5622
    %v5629 = vpack.c.b16 %v5625, %v5624
    %v5635 = vsel %vm745, %v5609, 0
    %5637 = vmatpush.bf16.msra.mxu0 0
    %5638 = vmatpush.bf16.msra.mxu0 0
    %5639 = vmatpush.bf16.msra.mxu0 0
    %5640 = vmatpush.bf16.msra.mxu0 0
    %5641 = vmatpush.bf16.msra.mxu0 %v5629
    %5642 = vmatpush.bf16.msra.mxu0 %v5628
    %5643 = vmatpush.bf16.msra.mxu0 %v5627
    %5644 = vmatpush.bf16.msra.mxu0 %v5626
    %5645 = vmatmul.bf16.gmra.mxu0 %v5635
    %v5646 = vpop.f32.mrf.mxu0
    %v5647 = vadd.f32 0.0, %v5646
    %v5648 = vpop.f32.mrf.mxu0
    %5649 = vdwg.mxu0
    %v5650 = vadd.f32 %v5596, %v5647
    %s5651 = scalar_lea.vmem %s3, 448
    %v5652 = vld [vmem:[%s5651] sm:$0xf]
    %v5653 = vld [vmem:[%s5651 + $0x4] sm:$0xf]
    %v5654 = vld [vmem:[%s5651 + $0x8] sm:$0xf]
    %v5655 = vld [vmem:[%s5651 + $0xc] sm:$0xf]
    %v5656 = vld [vmem:[%s5651 + $0x10] sm:$0xf]
    %v5657 = vld [vmem:[%s5651 + $0x14] sm:$0xf]
    %v5658 = vld [vmem:[%s5651 + $0x18] sm:$0xf]
    %v5659 = vld [vmem:[%s5651 + $0x1c] sm:$0xf]
    %v5660 = vrot.slane %v5551, 4
    %v5661 = vrot.slane %v5552, 3
    %v5662 = vsel %vm4878, %v5661, %v5660
    %v5663 = vpack.c.b16 %v5662, %v5662
    %v5672 = vunpack.c.l.b16 %v5652
    %v5673 = vunpack.c.l.b16 %v5653
    %v5674 = vunpack.c.l.b16 %v5654
    %v5675 = vunpack.c.l.b16 %v5655
    %v5676 = vunpack.c.l.b16 %v5656
    %v5677 = vunpack.c.l.b16 %v5657
    %v5678 = vunpack.c.l.b16 %v5658
    %v5679 = vunpack.c.l.b16 %v5659
    %v5680 = vpack.c.b16 %v5673, %v5672
    %v5681 = vpack.c.b16 %v5675, %v5674
    %v5682 = vpack.c.b16 %v5677, %v5676
    %v5683 = vpack.c.b16 %v5679, %v5678
    %v5689 = vsel %vm745, %v5663, 0
    %5691 = vmatpush.bf16.msra.mxu0 0
    %5692 = vmatpush.bf16.msra.mxu0 0
    %5693 = vmatpush.bf16.msra.mxu0 0
    %5694 = vmatpush.bf16.msra.mxu0 0
    %5695 = vmatpush.bf16.msra.mxu0 %v5683
    %5696 = vmatpush.bf16.msra.mxu0 %v5682
    %5697 = vmatpush.bf16.msra.mxu0 %v5681
    %5698 = vmatpush.bf16.msra.mxu0 %v5680
    %5699 = vmatmul.bf16.gmra.mxu0 %v5689
    %v5700 = vpop.f32.mrf.mxu0
    %v5701 = vadd.f32 0.0, %v5700
    %v5702 = vpop.f32.mrf.mxu0
    %5703 = vdwg.mxu0
    %v5704 = vadd.f32 %v5650, %v5701
    %s5705 = scalar_lea.vmem %s3, 480
    %v5706 = vld [vmem:[%s5705] sm:$0xf]
    %v5707 = vld [vmem:[%s5705 + $0x4] sm:$0xf]
    %v5708 = vld [vmem:[%s5705 + $0x8] sm:$0xf]
    %v5709 = vld [vmem:[%s5705 + $0xc] sm:$0xf]
    %v5710 = vld [vmem:[%s5705 + $0x10] sm:$0xf]
    %v5711 = vld [vmem:[%s5705 + $0x14] sm:$0xf]
    %v5712 = vld [vmem:[%s5705 + $0x18] sm:$0xf]
    %v5713 = vld [vmem:[%s5705 + $0x1c] sm:$0xf]
    %v5714 = vrot.slane %v5551, 6
    %v5715 = vrot.slane %v5552, 5
    %v5716 = vsel %vm4878, %v5715, %v5714
    %v5717 = vpack.c.b16 %v5716, %v5716
    %v5726 = vunpack.c.l.b16 %v5706
    %v5727 = vunpack.c.l.b16 %v5707
    %v5728 = vunpack.c.l.b16 %v5708
    %v5729 = vunpack.c.l.b16 %v5709
    %v5730 = vunpack.c.l.b16 %v5710
    %v5731 = vunpack.c.l.b16 %v5711
    %v5732 = vunpack.c.l.b16 %v5712
    %v5733 = vunpack.c.l.b16 %v5713
    %v5734 = vpack.c.b16 %v5727, %v5726
    %v5735 = vpack.c.b16 %v5729, %v5728
    %v5736 = vpack.c.b16 %v5731, %v5730
    %v5737 = vpack.c.b16 %v5733, %v5732
    %v5743 = vsel %vm745, %v5717, 0
    %5745 = vmatpush.bf16.msra.mxu0 0
    %5746 = vmatpush.bf16.msra.mxu0 0
    %5747 = vmatpush.bf16.msra.mxu0 0
    %5748 = vmatpush.bf16.msra.mxu0 0
    %5749 = vmatpush.bf16.msra.mxu0 %v5737
    %5750 = vmatpush.bf16.msra.mxu0 %v5736
    %5751 = vmatpush.bf16.msra.mxu0 %v5735
    %5752 = vmatpush.bf16.msra.mxu0 %v5734
    %5753 = vmatmul.bf16.gmra.mxu0 %v5743
    %v5754 = vpop.f32.mrf.mxu0
    %v5755 = vadd.f32 0.0, %v5754
    %v5756 = vpop.f32.mrf.mxu0
    %5757 = vdwg.mxu0
    %v5758 = vadd.f32 %v5704, %v5755
    %vm5759 = vcmask 254976
    %5760 = vst.msk [vmem:[#allocation4] sm:$0x3] %vm5759, %v5758
    // Predicated region
    $region38: #{deep_svdd_forward.1} parent=1 // pred_check
      _
    $region39: #{deep_svdd_forward.1} parent=1 // pred_check_branch
      %5762 = sbr.rel (0) target = $region41
    $region40: #{deep_svdd_forward.1} parent=1 // pred_region
      %5764 = vsyncadd [#allocation5], 0
      %s5766 = sshll.u32 [#allocation4], 4
      %s5767 = int_to_ptr.vmem [resolvable:$true] %s5766
      %s5768 = sshll.u32 %s9, 4
      %s5769 = int_to_ptr.hbm [resolvable:$true] %s5768
      %5771 = dma.vmem_to_hbm [thread:$0]  %s5767, 32, %s5769, [#allocation5]
    $region41: #{deep_svdd_forward.1} parent=1 // pred_fallthru
      _
    // Predicated region
    $region42: #{deep_svdd_forward.1} parent=1 // pred_check
      _
    $region43: #{deep_svdd_forward.1} parent=1 // pred_check_branch
      %5773 = sbr.rel (0) target = $region45
    $region44: #{deep_svdd_forward.1} parent=1 // pred_region
      %5775 = dma.done [#allocation5], 32
    $region45: #{deep_svdd_forward.1} parent=1 // pred_fallthru
      _
    %5776 = vsyncpa [#allocation5], 1

</llo_original>
